<compile_context>
chip_gen: v5e
topology: v5e:2x2
jax: 0.10.0
libtpu: 0.0.40
codegen_flags: <defaults>
</compile_context>

<pallas_src>
import functools

import jax
import jax.numpy as jnp
from jax.experimental import pallas as pl
from jax.experimental.pallas import tpu as pltpu


# ----------------------------------------------------------------------------
# Fused Pallas kernel (single grid point; everything VMEM resident)
# ----------------------------------------------------------------------------
def fused_decoder_kernel(x_ref, h0_ref, *rest, n_layers, seq_len, batch, HP):
    """Whole decoder in one kernel.

    x_ref   : (S*B, I)      time-major flattened input (row = t*B + b)
    h0_ref  : (L, B, HP)    initial hidden state (lane-padded)
    rest    : per layer l:  wih (in_pad_l, 3HP), whh (HP, 3HP),
                            b_gi (1, 3HP)  = b_ih (+ b_hh for r,z gates),
                            b_hn (1, HP)   = b_hh n-gate
              then tdd_w (HP, OP), tdd_b (1, OP)
              then outputs: out_ref (S*B, OP), hid_ref (L, B, HP)
              then scratch: gi_ref (S*B, 3HP), seq_ref (S*B, HP)
    """
    nw = 4 * n_layers
    tddw_ref, tddb_ref = rest[nw], rest[nw + 1]
    out_ref, hid_ref = rest[nw + 2], rest[nw + 3]
    gi_ref, seq_ref = rest[nw + 4], rest[nw + 5]

    S, B, L = seq_len, batch, n_layers

    # Hoisted layer-0 input projection for the whole sequence: one MXU matmul,
    # with b_ih (all gates) + b_hh (r,z gates) folded in.
    gi_ref[...] = (jnp.dot(x_ref[...], rest[0][...],
                           preferred_element_type=jnp.float32) + rest[2][...])

    # Per-layer hidden state lives in vregs for the whole recurrence.
    h = [h0_ref[l] for l in range(L)]       # list of (B, HP) f32 values
    prev_out = [None] * L                   # layer outputs from previous wave

    # Wavefront over (layer, time): wave w runs layer l at step t = w - l.
    # The dependent chain is S + L - 1 segments instead of L * S, and the
    # per-wave layer bodies are mutually independent.
    for w in range(S + L - 1):
        new_prev = list(prev_out)
        for l in range(L):
            t = w - l
            if not (0 <= t < S):
                continue
            if l == 0:
                gi_t = gi_ref[t * B:(t + 1) * B, :]          # (B, 3HP)
            else:
                # Input is the previous layer's step-t output, still in vregs.
                gi_t = (jnp.dot(prev_out[l - 1], rest[4 * l][...],
                                preferred_element_type=jnp.float32)
                        + rest[4 * l + 2][...])
            # Weights are read from their refs at each use (never held live
            # across the unroll as whole-array values).
            gh = jnp.dot(h[l], rest[4 * l + 1][...],
                         preferred_element_type=jnp.float32)  # (B, 3HP)
            b_hn = rest[4 * l + 3][...]                       # (1, HP)

            # One sigmoid over the contiguous [r|z] lane slab, then slice.
            rz = jax.nn.sigmoid(gi_t[:, :2 * HP] + gh[:, :2 * HP])
            r = rz[:, :HP]
            z = rz[:, HP:]
            n = jnp.tanh(gi_t[:, 2 * HP:] + r * (gh[:, 2 * HP:] + b_hn))
            h_new = (1.0 - z) * n + z * h[l]

            h[l] = h_new
            new_prev[l] = h_new
            if l == L - 1:
                # Off-critical-path spill of the last layer's step output so
                # the tdd matmul can consume one lane-dense (S*B, HP) operand.
                seq_ref[t * B:(t + 1) * B, :] = h_new
        prev_out = new_prev

    for l in range(L):
        hid_ref[l] = h[l]

    # Fused tdd Linear over the whole last-layer output sequence.
    out_ref[...] = (jnp.dot(seq_ref[...], tddw_ref[...],
                            preferred_element_type=jnp.float32)
                    + tddb_ref[...]).astype(out_ref.dtype)


# ----------------------------------------------------------------------------
# Host-side parameter prep (done ONCE, outside the jitted forward)
# ----------------------------------------------------------------------------
def _round_up(v, m):
    return ((v + m - 1) // m) * m


def _pad_gate_weight_t(w, H, HP, in_pad):
    """PyTorch (3H, in_dim) gate weight -> transposed, per-gate lane-padded
    (in_pad, 3*HP).  Gate g's real columns live at [g*HP, g*HP + H)."""
    in_dim = w.shape[1]
    wt = w.T.astype(jnp.float32)                            # (in_dim, 3H)
    cols = [jnp.pad(wt[:, g * H:(g + 1) * H],
                    ((0, in_pad - in_dim), (0, HP - H))) for g in range(3)]
    return jnp.concatenate(cols, axis=1)


def _pad_gate_bias(b, H, HP):
    segs = [jnp.pad(b[g * H:(g + 1) * H].astype(jnp.float32), (0, HP - H))
            for g in range(3)]
    return jnp.concatenate(segs).reshape(1, 3 * HP)


def prepare_decoder_params(gru_params, tdd_w, tdd_b, input_size):
    """Pad / transpose all weights once; returns a flat tuple for the kernel."""
    H = gru_params[0][1].shape[1]
    O = tdd_w.shape[0]
    HP = _round_up(H, 128)
    OP = _round_up(O, 128)
    flat = []
    for l, (w_ih, w_hh, b_ih, b_hh) in enumerate(gru_params):
        in_pad = input_size if l == 0 else HP
        wih_p = _pad_gate_weight_t(w_ih, H, HP, in_pad)
        whh_p = _pad_gate_weight_t(w_hh, H, HP, HP)
        bhh_p = _pad_gate_bias(b_hh, H, HP)
        # Fold b_ih (all gates) + b_hh (r,z gates) into the input projection;
        # keep the n-gate b_hh separate (needed inside r * (...)).
        b_gi = _pad_gate_bias(b_ih, H, HP) + bhh_p.at[:, 2 * HP:].set(0.0)
        b_hn = bhh_p[:, 2 * HP:]
        flat += [wih_p, whh_p, b_gi, b_hn]
    tddw_p = jnp.pad(tdd_w.T.astype(jnp.float32), ((0, HP - H), (0, OP - O)))
    tddb_p = jnp.pad(tdd_b.astype(jnp.float32), (0, OP - O)).reshape(1, OP)
    flat += [tddw_p, tddb_p]
    return tuple(flat)


# ----------------------------------------------------------------------------
# Forward wrapper (jit this; prepared params are passed in, not rebuilt)
# ----------------------------------------------------------------------------
def decoder_gru_forward(x, encoder_hidden, prepared, output_size):
    """Matches DecoderGRU.forward.

    x:              (B, S, input_size)   (batch_first, like PyTorch)
    encoder_hidden: (n_layers, B, H)
    prepared:       tuple from prepare_decoder_params
    returns (dec_out (B, S, output_size), dec_hidden (n_layers, B, H))
    """
    B, S, I = x.shape
    L, _, H = encoder_hidden.shape
    HP = prepared[1].shape[0]           # whh_p is (HP, 3HP)
    OP = prepared[-2].shape[1]          # tddw_p is (HP, OP)
    O = output_size

    x_tm = jnp.transpose(x.astype(jnp.float32), (1, 0, 2)).reshape(S * B, I)
    h0_p = jnp.pad(encoder_hidden.astype(jnp.float32),
                   ((0, 0), (0, 0), (0, HP - H)))
    args = [x_tm, h0_p, *prepared]

    kernel = functools.partial(fused_decoder_kernel, n_layers=L,
                               seq_len=S, batch=B, HP=HP)
    out_p, hid_p = pl.pallas_call(
        kernel,
        out_shape=(jax.ShapeDtypeStruct((S * B, OP), jnp.float32),
                   jax.ShapeDtypeStruct((L, B, HP), jnp.float32)),
        in_specs=[pl.BlockSpec(memory_space=pltpu.MemorySpace.VMEM)
                  for _ in args],
        out_specs=(pl.BlockSpec(memory_space=pltpu.MemorySpace.VMEM),
                   pl.BlockSpec(memory_space=pltpu.MemorySpace.VMEM)),
        scratch_shapes=[pltpu.VMEM((S * B, 3 * HP), jnp.float32),
                        pltpu.VMEM((S * B, HP), jnp.float32)],
    )(*args)

    # Un-pad / restore batch_first layout (tiny arrays; fuses under jit).
    dec_out = jnp.transpose(out_p.reshape(S, B, OP), (1, 0, 2))[:, :, :O]
    dec_hidden = hid_p[:, :, :H]
    return dec_out, dec_hidden


# ----------------------------------------------------------------------------
# Pure-JAX reference (for correctness check)
# ----------------------------------------------------------------------------
def decoder_gru_ref(x, h0, gru_params, tdd_w, tdd_b):
    B, S, _ = x.shape
    layer_in = x.astype(jnp.float32)
    h_finals = []
    for l, (wih, whh, bih, bhh) in enumerate(gru_params):
        h = h0[l]
        Hd = h.shape[1]
        outs = []
        for t in range(S):
            xt = layer_in[:, t, :]
            gi = xt @ wih.T + bih
            gh = h @ whh.T + bhh
            r = jax.nn.sigmoid(gi[:, :Hd] + gh[:, :Hd])
            z = jax.nn.sigmoid(gi[:, Hd:2 * Hd] + gh[:, Hd:2 * Hd])
            n = jnp.tanh(gi[:, 2 * Hd:] + r * gh[:, 2 * Hd:])
            h = (1.0 - z) * n + z * h
            outs.append(h)
        layer_in = jnp.stack(outs, axis=1)
        h_finals.append(h)
    dec_hidden = jnp.stack(h_finals, axis=0)
    dec_out = layer_in @ tdd_w.T + tdd_b
    return dec_out, dec_hidden


# ----------------------------------------------------------------------------
# Main
# ----------------------------------------------------------------------------
if __name__ == "__main__":
    B, S = 2, 8
    input_size, hidden_size, output_size, n_layers = 16, 32, 8, 2

    key = jax.random.PRNGKey(0)
    k = 1.0 / jnp.sqrt(hidden_size)

    def uni(key, shape):
        return jax.random.uniform(key, shape, jnp.float32, minval=-k, maxval=k)

    # GRU parameters (PyTorch layout: weight_ih (3H, in), weight_hh (3H, H),
    # biases (3H,), gate order r, z, n).
    gru_params = []
    for l in range(n_layers):
        in_dim = input_size if l == 0 else hidden_size
        key, k1, k2, k3, k4 = jax.random.split(key, 5)
        gru_params.append((uni(k1, (3 * hidden_size, in_dim)),
                           uni(k2, (3 * hidden_size, hidden_size)),
                           uni(k3, (3 * hidden_size,)),
                           uni(k4, (3 * hidden_size,))))

    key, k1, k2, k3, k4 = jax.random.split(key, 5)
    tdd_w = uni(k1, (output_size, hidden_size))
    tdd_b = uni(k2, (output_size,))

    x = jax.random.normal(k3, (B, S, input_size), jnp.float32)
    encoder_hidden = jax.random.normal(k4, (n_layers, B, hidden_size),
                                       jnp.float32)

    # Pad / transpose weights ONCE (outside jit), reuse across calls.
    prepared = prepare_decoder_params(gru_params, tdd_w, tdd_b, input_size)
    prepared = jax.block_until_ready(prepared)

    fwd = jax.jit(decoder_gru_forward, static_argnums=(3,))
    dec_out, dec_hidden = fwd(x, encoder_hidden, prepared, output_size)
    jax.block_until_ready((dec_out, dec_hidden))

    ref_out, ref_hidden = decoder_gru_ref(x, encoder_hidden, gru_params,
                                          tdd_w, tdd_b)
    assert dec_out.shape == (B, S, output_size)
    assert dec_hidden.shape == (n_layers, B, hidden_size)
    assert jnp.allclose(dec_out, ref_out, atol=2e-5, rtol=2e-5)
    assert jnp.allclose(dec_hidden, ref_hidden, atol=2e-5, rtol=2e-5)

    print("KERNEL_OK")
</pallas_src>

<mosaic_0001>
module attributes {stable_mosaic.version = 11 : i64} {
  func.func @fused_decoder_kernel(%arg0: memref<16x16xf32, #tpu.memory_space<vmem>>, %arg1: memref<2x2x128xf32, #tpu.memory_space<vmem>>, %arg2: memref<16x384xf32, #tpu.memory_space<vmem>>, %arg3: memref<128x384xf32, #tpu.memory_space<vmem>>, %arg4: memref<1x384xf32, #tpu.memory_space<vmem>>, %arg5: memref<1x128xf32, #tpu.memory_space<vmem>>, %arg6: memref<128x384xf32, #tpu.memory_space<vmem>>, %arg7: memref<128x384xf32, #tpu.memory_space<vmem>>, %arg8: memref<1x384xf32, #tpu.memory_space<vmem>>, %arg9: memref<1x128xf32, #tpu.memory_space<vmem>>, %arg10: memref<128x128xf32, #tpu.memory_space<vmem>>, %arg11: memref<1x128xf32, #tpu.memory_space<vmem>>, %arg12: memref<16x128xf32, #tpu.memory_space<vmem>>, %arg13: memref<2x2x128xf32, #tpu.memory_space<vmem>>, %arg14: memref<16x384xf32, #tpu.memory_space<vmem>>, %arg15: memref<16x128xf32, #tpu.memory_space<vmem>>) attributes {dimension_semantics = [], scalar_prefetch = 0 : i64, scratch_operands = 2 : i64, tpu.core_type = #tpu.core_type<tc>} {
    %c0 = arith.constant 0 : index
    %c0_0 = arith.constant 0 : index
    %0 = vector.load %arg0[%c0, %c0_0] : memref<16x16xf32, #tpu.memory_space<vmem>>, vector<16x16xf32>
    %c0_1 = arith.constant 0 : index
    %c0_2 = arith.constant 0 : index
    %1 = vector.load %arg2[%c0_1, %c0_2] : memref<16x384xf32, #tpu.memory_space<vmem>>, vector<16x384xf32>
    %cst = arith.constant dense<0.000000e+00> : vector<16x384xf32>
    %2 = tpu.matmul %0, %1, %cst {dimension_numbers = #tpu.dot_dimension_numbers<[1], [0], [0], [1], [0, 0, 1, 1], [], []>} : vector<16x16xf32>, vector<16x384xf32>, vector<16x384xf32> -> vector<16x384xf32>
    %c0_3 = arith.constant 0 : index
    %c0_4 = arith.constant 0 : index
    %3 = vector.load %arg4[%c0_3, %c0_4] : memref<1x384xf32, #tpu.memory_space<vmem>>, vector<1x384xf32>
    %4 = vector.broadcast %3 : vector<1x384xf32> to vector<16x384xf32>
    %5 = arith.addf %2, %4 : vector<16x384xf32>
    %c0_5 = arith.constant 0 : index
    %c0_6 = arith.constant 0 : index
    %6 = vector.load %arg14[%c0_5, %c0_6] : memref<16x384xf32, #tpu.memory_space<vmem>>, vector<16x384xf32>
    tpu.vector_store %arg14[%c0_5, %c0_6], %5 {strides = array<i32>} : memref<16x384xf32, #tpu.memory_space<vmem>>, vector<16x384xf32>,
    %c0_7 = arith.constant 0 : index
    %c0_8 = arith.constant 0 : index
    %c0_9 = arith.constant 0 : index
    %7 = vector.load %arg1[%c0_7, %c0_8, %c0_9] : memref<2x2x128xf32, #tpu.memory_space<vmem>>, vector<1x2x128xf32>
    %8 = vector.shape_cast %7 : vector<1x2x128xf32> to vector<2x128xf32>
    %c1 = arith.constant 1 : index
    %c0_10 = arith.constant 0 : index
    %c0_11 = arith.constant 0 : index
    %9 = vector.load %arg1[%c1, %c0_10, %c0_11] : memref<2x2x128xf32, #tpu.memory_space<vmem>>, vector<1x2x128xf32>
    %10 = vector.shape_cast %9 : vector<1x2x128xf32> to vector<2x128xf32>
    %c0_12 = arith.constant 0 : index
    %c0_13 = arith.constant 0 : index
    %11 = vector.load %arg14[%c0_12, %c0_13] : memref<16x384xf32, #tpu.memory_space<vmem>>, vector<2x384xf32>
    %c0_14 = arith.constant 0 : index
    %c0_15 = arith.constant 0 : index
    %12 = vector.load %arg3[%c0_14, %c0_15] : memref<128x384xf32, #tpu.memory_space<vmem>>, vector<128x384xf32>
    %cst_16 = arith.constant dense<0.000000e+00> : vector<2x384xf32>
    %13 = tpu.matmul %8, %12, %cst_16 {dimension_numbers = #tpu.dot_dimension_numbers<[1], [0], [0], [1], [0, 0, 1, 1], [], []>} : vector<2x128xf32>, vector<128x384xf32>, vector<2x384xf32> -> vector<2x384xf32>
    %c0_17 = arith.constant 0 : index
    %c0_18 = arith.constant 0 : index
    %14 = vector.load %arg5[%c0_17, %c0_18] : memref<1x128xf32, #tpu.memory_space<vmem>>, vector<1x128xf32>
    %15 = vector.extract_strided_slice %11 {offsets = [0, 0], sizes = [2, 256], strides = [1, 1]} : vector<2x384xf32> to vector<2x256xf32>
    %16 = vector.extract_strided_slice %13 {offsets = [0, 0], sizes = [2, 256], strides = [1, 1]} : vector<2x384xf32> to vector<2x256xf32>
    %17 = arith.addf %15, %16 : vector<2x256xf32>
    %18 = arith.negf %17 : vector<2x256xf32>
    %19 = math.exp %18 : vector<2x256xf32>
    %cst_19 = arith.constant 1.000000e+00 : f32
    %20 = vector.broadcast %cst_19 : f32 to vector<2x256xf32>
    %21 = arith.addf %20, %19 : vector<2x256xf32>
    %22 = arith.divf %20, %21 : vector<2x256xf32>
    %23 = vector.extract_strided_slice %22 {offsets = [0, 0], sizes = [2, 128], strides = [1, 1]} : vector<2x256xf32> to vector<2x128xf32>
    %24 = vector.extract_strided_slice %22 {offsets = [0, 128], sizes = [2, 128], strides = [1, 1]} : vector<2x256xf32> to vector<2x128xf32>
    %25 = vector.extract_strided_slice %11 {offsets = [0, 256], sizes = [2, 128], strides = [1, 1]} : vector<2x384xf32> to vector<2x128xf32>
    %26 = vector.extract_strided_slice %13 {offsets = [0, 256], sizes = [2, 128], strides = [1, 1]} : vector<2x384xf32> to vector<2x128xf32>
    %27 = vector.broadcast %14 : vector<1x128xf32> to vector<2x128xf32>
    %28 = arith.addf %26, %27 : vector<2x128xf32>
    %29 = arith.mulf %23, %28 : vector<2x128xf32>
    %30 = arith.addf %25, %29 : vector<2x128xf32>
    %31 = math.tanh %30 : vector<2x128xf32>
    %cst_20 = arith.constant 1.000000e+00 : f32
    %32 = vector.broadcast %cst_20 : f32 to vector<2x128xf32>
    %33 = arith.subf %32, %24 : vector<2x128xf32>
    %34 = arith.mulf %33, %31 : vector<2x128xf32>
    %35 = arith.mulf %24, %8 : vector<2x128xf32>
    %36 = arith.addf %34, %35 : vector<2x128xf32>
    %c2 = arith.constant 2 : index
    %c0_21 = arith.constant 0 : index
    %37 = vector.load %arg14[%c2, %c0_21] : memref<16x384xf32, #tpu.memory_space<vmem>>, vector<2x384xf32>
    %c0_22 = arith.constant 0 : index
    %c0_23 = arith.constant 0 : index
    %38 = vector.load %arg3[%c0_22, %c0_23] : memref<128x384xf32, #tpu.memory_space<vmem>>, vector<128x384xf32>
    %cst_24 = arith.constant dense<0.000000e+00> : vector<2x384xf32>
    %39 = tpu.matmul %36, %38, %cst_24 {dimension_numbers = #tpu.dot_dimension_numbers<[1], [0], [0], [1], [0, 0, 1, 1], [], []>} : vector<2x128xf32>, vector<128x384xf32>, vector<2x384xf32> -> vector<2x384xf32>
    %c0_25 = arith.constant 0 : index
    %c0_26 = arith.constant 0 : index
    %40 = vector.load %arg5[%c0_25, %c0_26] : memref<1x128xf32, #tpu.memory_space<vmem>>, vector<1x128xf32>
    %41 = vector.extract_strided_slice %37 {offsets = [0, 0], sizes = [2, 256], strides = [1, 1]} : vector<2x384xf32> to vector<2x256xf32>
    %42 = vector.extract_strided_slice %39 {offsets = [0, 0], sizes = [2, 256], strides = [1, 1]} : vector<2x384xf32> to vector<2x256xf32>
    %43 = arith.addf %41, %42 : vector<2x256xf32>
    %44 = arith.negf %43 : vector<2x256xf32>
    %45 = math.exp %44 : vector<2x256xf32>
    %cst_27 = arith.constant 1.000000e+00 : f32
    %46 = vector.broadcast %cst_27 : f32 to vector<2x256xf32>
    %47 = arith.addf %46, %45 : vector<2x256xf32>
    %48 = arith.divf %46, %47 : vector<2x256xf32>
    %49 = vector.extract_strided_slice %48 {offsets = [0, 0], sizes = [2, 128], strides = [1, 1]} : vector<2x256xf32> to vector<2x128xf32>
    %50 = vector.extract_strided_slice %48 {offsets = [0, 128], sizes = [2, 128], strides = [1, 1]} : vector<2x256xf32> to vector<2x128xf32>
    %51 = vector.extract_strided_slice %37 {offsets = [0, 256], sizes = [2, 128], strides = [1, 1]} : vector<2x384xf32> to vector<2x128xf32>
    %52 = vector.extract_strided_slice %39 {offsets = [0, 256], sizes = [2, 128], strides = [1, 1]} : vector<2x384xf32> to vector<2x128xf32>
    %53 = vector.broadcast %40 : vector<1x128xf32> to vector<2x128xf32>
    %54 = arith.addf %52, %53 : vector<2x128xf32>
    %55 = arith.mulf %49, %54 : vector<2x128xf32>
    %56 = arith.addf %51, %55 : vector<2x128xf32>
    %57 = math.tanh %56 : vector<2x128xf32>
    %cst_28 = arith.constant 1.000000e+00 : f32
    %58 = vector.broadcast %cst_28 : f32 to vector<2x128xf32>
    %59 = arith.subf %58, %50 : vector<2x128xf32>
    %60 = arith.mulf %59, %57 : vector<2x128xf32>
    %61 = arith.mulf %50, %36 : vector<2x128xf32>
    %62 = arith.addf %60, %61 : vector<2x128xf32>
    %c0_29 = arith.constant 0 : index
    %c0_30 = arith.constant 0 : index
    %63 = vector.load %arg6[%c0_29, %c0_30] : memref<128x384xf32, #tpu.memory_space<vmem>>, vector<128x384xf32>
    %cst_31 = arith.constant dense<0.000000e+00> : vector<2x384xf32>
    %64 = tpu.matmul %36, %63, %cst_31 {dimension_numbers = #tpu.dot_dimension_numbers<[1], [0], [0], [1], [0, 0, 1, 1], [], []>} : vector<2x128xf32>, vector<128x384xf32>, vector<2x384xf32> -> vector<2x384xf32>
    %c0_32 = arith.constant 0 : index
    %c0_33 = arith.constant 0 : index
    %65 = vector.load %arg8[%c0_32, %c0_33] : memref<1x384xf32, #tpu.memory_space<vmem>>, vector<1x384xf32>
    %66 = vector.broadcast %65 : vector<1x384xf32> to vector<2x384xf32>
    %67 = arith.addf %64, %66 : vector<2x384xf32>
    %c0_34 = arith.constant 0 : index
    %c0_35 = arith.constant 0 : index
    %68 = vector.load %arg7[%c0_34, %c0_35] : memref<128x384xf32, #tpu.memory_space<vmem>>, vector<128x384xf32>
    %cst_36 = arith.constant dense<0.000000e+00> : vector<2x384xf32>
    %69 = tpu.matmul %10, %68, %cst_36 {dimension_numbers = #tpu.dot_dimension_numbers<[1], [0], [0], [1], [0, 0, 1, 1], [], []>} : vector<2x128xf32>, vector<128x384xf32>, vector<2x384xf32> -> vector<2x384xf32>
    %c0_37 = arith.constant 0 : index
    %c0_38 = arith.constant 0 : index
    %70 = vector.load %arg9[%c0_37, %c0_38] : memref<1x128xf32, #tpu.memory_space<vmem>>, vector<1x128xf32>
    %71 = vector.extract_strided_slice %67 {offsets = [0, 0], sizes = [2, 256], strides = [1, 1]} : vector<2x384xf32> to vector<2x256xf32>
    %72 = vector.extract_strided_slice %69 {offsets = [0, 0], sizes = [2, 256], strides = [1, 1]} : vector<2x384xf32> to vector<2x256xf32>
    %73 = arith.addf %71, %72 : vector<2x256xf32>
    %74 = arith.negf %73 : vector<2x256xf32>
    %75 = math.exp %74 : vector<2x256xf32>
    %cst_39 = arith.constant 1.000000e+00 : f32
    %76 = vector.broadcast %cst_39 : f32 to vector<2x256xf32>
    %77 = arith.addf %76, %75 : vector<2x256xf32>
    %78 = arith.divf %76, %77 : vector<2x256xf32>
    %79 = vector.extract_strided_slice %78 {offsets = [0, 0], sizes = [2, 128], strides = [1, 1]} : vector<2x256xf32> to vector<2x128xf32>
    %80 = vector.extract_strided_slice %78 {offsets = [0, 128], sizes = [2, 128], strides = [1, 1]} : vector<2x256xf32> to vector<2x128xf32>
    %81 = vector.extract_strided_slice %67 {offsets = [0, 256], sizes = [2, 128], strides = [1, 1]} : vector<2x384xf32> to vector<2x128xf32>
    %82 = vector.extract_strided_slice %69 {offsets = [0, 256], sizes = [2, 128], strides = [1, 1]} : vector<2x384xf32> to vector<2x128xf32>
    %83 = vector.broadcast %70 : vector<1x128xf32> to vector<2x128xf32>
    %84 = arith.addf %82, %83 : vector<2x128xf32>
    %85 = arith.mulf %79, %84 : vector<2x128xf32>
    %86 = arith.addf %81, %85 : vector<2x128xf32>
    %87 = math.tanh %86 : vector<2x128xf32>
    %cst_40 = arith.constant 1.000000e+00 : f32
    %88 = vector.broadcast %cst_40 : f32 to vector<2x128xf32>
    %89 = arith.subf %88, %80 : vector<2x128xf32>
    %90 = arith.mulf %89, %87 : vector<2x128xf32>
    %91 = arith.mulf %80, %10 : vector<2x128xf32>
    %92 = arith.addf %90, %91 : vector<2x128xf32>
    %c0_41 = arith.constant 0 : index
    %c0_42 = arith.constant 0 : index
    %93 = vector.load %arg15[%c0_41, %c0_42] : memref<16x128xf32, #tpu.memory_space<vmem>>, vector<2x128xf32>
    tpu.vector_store %arg15[%c0_41, %c0_42], %92 {strides = array<i32>} : memref<16x128xf32, #tpu.memory_space<vmem>>, vector<2x128xf32>,
    %c4 = arith.constant 4 : index
    %c0_43 = arith.constant 0 : index
    %94 = vector.load %arg14[%c4, %c0_43] : memref<16x384xf32, #tpu.memory_space<vmem>>, vector<2x384xf32>
    %c0_44 = arith.constant 0 : index
    %c0_45 = arith.constant 0 : index
    %95 = vector.load %arg3[%c0_44, %c0_45] : memref<128x384xf32, #tpu.memory_space<vmem>>, vector<128x384xf32>
    %cst_46 = arith.constant dense<0.000000e+00> : vector<2x384xf32>
    %96 = tpu.matmul %62, %95, %cst_46 {dimension_numbers = #tpu.dot_dimension_numbers<[1], [0], [0], [1], [0, 0, 1, 1], [], []>} : vector<2x128xf32>, vector<128x384xf32>, vector<2x384xf32> -> vector<2x384xf32>
    %c0_47 = arith.constant 0 : index
    %c0_48 = arith.constant 0 : index
    %97 = vector.load %arg5[%c0_47, %c0_48] : memref<1x128xf32, #tpu.memory_space<vmem>>, vector<1x128xf32>
    %98 = vector.extract_strided_slice %94 {offsets = [0, 0], sizes = [2, 256], strides = [1, 1]} : vector<2x384xf32> to vector<2x256xf32>
    %99 = vector.extract_strided_slice %96 {offsets = [0, 0], sizes = [2, 256], strides = [1, 1]} : vector<2x384xf32> to vector<2x256xf32>
    %100 = arith.addf %98, %99 : vector<2x256xf32>
    %101 = arith.negf %100 : vector<2x256xf32>
    %102 = math.exp %101 : vector<2x256xf32>
    %cst_49 = arith.constant 1.000000e+00 : f32
    %103 = vector.broadcast %cst_49 : f32 to vector<2x256xf32>
    %104 = arith.addf %103, %102 : vector<2x256xf32>
    %105 = arith.divf %103, %104 : vector<2x256xf32>
    %106 = vector.extract_strided_slice %105 {offsets = [0, 0], sizes = [2, 128], strides = [1, 1]} : vector<2x256xf32> to vector<2x128xf32>
    %107 = vector.extract_strided_slice %105 {offsets = [0, 128], sizes = [2, 128], strides = [1, 1]} : vector<2x256xf32> to vector<2x128xf32>
    %108 = vector.extract_strided_slice %94 {offsets = [0, 256], sizes = [2, 128], strides = [1, 1]} : vector<2x384xf32> to vector<2x128xf32>
    %109 = vector.extract_strided_slice %96 {offsets = [0, 256], sizes = [2, 128], strides = [1, 1]} : vector<2x384xf32> to vector<2x128xf32>
    %110 = vector.broadcast %97 : vector<1x128xf32> to vector<2x128xf32>
    %111 = arith.addf %109, %110 : vector<2x128xf32>
    %112 = arith.mulf %106, %111 : vector<2x128xf32>
    %113 = arith.addf %108, %112 : vector<2x128xf32>
    %114 = math.tanh %113 : vector<2x128xf32>
    %cst_50 = arith.constant 1.000000e+00 : f32
    %115 = vector.broadcast %cst_50 : f32 to vector<2x128xf32>
    %116 = arith.subf %115, %107 : vector<2x128xf32>
    %117 = arith.mulf %116, %114 : vector<2x128xf32>
    %118 = arith.mulf %107, %62 : vector<2x128xf32>
    %119 = arith.addf %117, %118 : vector<2x128xf32>
    %c0_51 = arith.constant 0 : index
    %c0_52 = arith.constant 0 : index
    %120 = vector.load %arg6[%c0_51, %c0_52] : memref<128x384xf32, #tpu.memory_space<vmem>>, vector<128x384xf32>
    %cst_53 = arith.constant dense<0.000000e+00> : vector<2x384xf32>
    %121 = tpu.matmul %62, %120, %cst_53 {dimension_numbers = #tpu.dot_dimension_numbers<[1], [0], [0], [1], [0, 0, 1, 1], [], []>} : vector<2x128xf32>, vector<128x384xf32>, vector<2x384xf32> -> vector<2x384xf32>
    %c0_54 = arith.constant 0 : index
    %c0_55 = arith.constant 0 : index
    %122 = vector.load %arg8[%c0_54, %c0_55] : memref<1x384xf32, #tpu.memory_space<vmem>>, vector<1x384xf32>
    %123 = vector.broadcast %122 : vector<1x384xf32> to vector<2x384xf32>
    %124 = arith.addf %121, %123 : vector<2x384xf32>
    %c0_56 = arith.constant 0 : index
    %c0_57 = arith.constant 0 : index
    %125 = vector.load %arg7[%c0_56, %c0_57] : memref<128x384xf32, #tpu.memory_space<vmem>>, vector<128x384xf32>
    %cst_58 = arith.constant dense<0.000000e+00> : vector<2x384xf32>
    %126 = tpu.matmul %92, %125, %cst_58 {dimension_numbers = #tpu.dot_dimension_numbers<[1], [0], [0], [1], [0, 0, 1, 1], [], []>} : vector<2x128xf32>, vector<128x384xf32>, vector<2x384xf32> -> vector<2x384xf32>
    %c0_59 = arith.constant 0 : index
    %c0_60 = arith.constant 0 : index
    %127 = vector.load %arg9[%c0_59, %c0_60] : memref<1x128xf32, #tpu.memory_space<vmem>>, vector<1x128xf32>
    %128 = vector.extract_strided_slice %124 {offsets = [0, 0], sizes = [2, 256], strides = [1, 1]} : vector<2x384xf32> to vector<2x256xf32>
    %129 = vector.extract_strided_slice %126 {offsets = [0, 0], sizes = [2, 256], strides = [1, 1]} : vector<2x384xf32> to vector<2x256xf32>
    %130 = arith.addf %128, %129 : vector<2x256xf32>
    %131 = arith.negf %130 : vector<2x256xf32>
    %132 = math.exp %131 : vector<2x256xf32>
    %cst_61 = arith.constant 1.000000e+00 : f32
    %133 = vector.broadcast %cst_61 : f32 to vector<2x256xf32>
    %134 = arith.addf %133, %132 : vector<2x256xf32>
    %135 = arith.divf %133, %134 : vector<2x256xf32>
    %136 = vector.extract_strided_slice %135 {offsets = [0, 0], sizes = [2, 128], strides = [1, 1]} : vector<2x256xf32> to vector<2x128xf32>
    %137 = vector.extract_strided_slice %135 {offsets = [0, 128], sizes = [2, 128], strides = [1, 1]} : vector<2x256xf32> to vector<2x128xf32>
    %138 = vector.extract_strided_slice %124 {offsets = [0, 256], sizes = [2, 128], strides = [1, 1]} : vector<2x384xf32> to vector<2x128xf32>
    %139 = vector.extract_strided_slice %126 {offsets = [0, 256], sizes = [2, 128], strides = [1, 1]} : vector<2x384xf32> to vector<2x128xf32>
    %140 = vector.broadcast %127 : vector<1x128xf32> to vector<2x128xf32>
    %141 = arith.addf %139, %140 : vector<2x128xf32>
    %142 = arith.mulf %136, %141 : vector<2x128xf32>
    %143 = arith.addf %138, %142 : vector<2x128xf32>
    %144 = math.tanh %143 : vector<2x128xf32>
    %cst_62 = arith.constant 1.000000e+00 : f32
    %145 = vector.broadcast %cst_62 : f32 to vector<2x128xf32>
    %146 = arith.subf %145, %137 : vector<2x128xf32>
    %147 = arith.mulf %146, %144 : vector<2x128xf32>
    %148 = arith.mulf %137, %92 : vector<2x128xf32>
    %149 = arith.addf %147, %148 : vector<2x128xf32>
    %c2_63 = arith.constant 2 : index
    %c0_64 = arith.constant 0 : index
    %150 = vector.load %arg15[%c2_63, %c0_64] : memref<16x128xf32, #tpu.memory_space<vmem>>, vector<2x128xf32>
    tpu.vector_store %arg15[%c2_63, %c0_64], %149 {strides = array<i32>} : memref<16x128xf32, #tpu.memory_space<vmem>>, vector<2x128xf32>,
    %c6 = arith.constant 6 : index
    %c0_65 = arith.constant 0 : index
    %151 = vector.load %arg14[%c6, %c0_65] : memref<16x384xf32, #tpu.memory_space<vmem>>, vector<2x384xf32>
    %c0_66 = arith.constant 0 : index
    %c0_67 = arith.constant 0 : index
    %152 = vector.load %arg3[%c0_66, %c0_67] : memref<128x384xf32, #tpu.memory_space<vmem>>, vector<128x384xf32>
    %cst_68 = arith.constant dense<0.000000e+00> : vector<2x384xf32>
    %153 = tpu.matmul %119, %152, %cst_68 {dimension_numbers = #tpu.dot_dimension_numbers<[1], [0], [0], [1], [0, 0, 1, 1], [], []>} : vector<2x128xf32>, vector<128x384xf32>, vector<2x384xf32> -> vector<2x384xf32>
    %c0_69 = arith.constant 0 : index
    %c0_70 = arith.constant 0 : index
    %154 = vector.load %arg5[%c0_69, %c0_70] : memref<1x128xf32, #tpu.memory_space<vmem>>, vector<1x128xf32>
    %155 = vector.extract_strided_slice %151 {offsets = [0, 0], sizes = [2, 256], strides = [1, 1]} : vector<2x384xf32> to vector<2x256xf32>
    %156 = vector.extract_strided_slice %153 {offsets = [0, 0], sizes = [2, 256], strides = [1, 1]} : vector<2x384xf32> to vector<2x256xf32>
    %157 = arith.addf %155, %156 : vector<2x256xf32>
    %158 = arith.negf %157 : vector<2x256xf32>
    %159 = math.exp %158 : vector<2x256xf32>
    %cst_71 = arith.constant 1.000000e+00 : f32
    %160 = vector.broadcast %cst_71 : f32 to vector<2x256xf32>
    %161 = arith.addf %160, %159 : vector<2x256xf32>
    %162 = arith.divf %160, %161 : vector<2x256xf32>
    %163 = vector.extract_strided_slice %162 {offsets = [0, 0], sizes = [2, 128], strides = [1, 1]} : vector<2x256xf32> to vector<2x128xf32>
    %164 = vector.extract_strided_slice %162 {offsets = [0, 128], sizes = [2, 128], strides = [1, 1]} : vector<2x256xf32> to vector<2x128xf32>
    %165 = vector.extract_strided_slice %151 {offsets = [0, 256], sizes = [2, 128], strides = [1, 1]} : vector<2x384xf32> to vector<2x128xf32>
    %166 = vector.extract_strided_slice %153 {offsets = [0, 256], sizes = [2, 128], strides = [1, 1]} : vector<2x384xf32> to vector<2x128xf32>
    %167 = vector.broadcast %154 : vector<1x128xf32> to vector<2x128xf32>
    %168 = arith.addf %166, %167 : vector<2x128xf32>
    %169 = arith.mulf %163, %168 : vector<2x128xf32>
    %170 = arith.addf %165, %169 : vector<2x128xf32>
    %171 = math.tanh %170 : vector<2x128xf32>
    %cst_72 = arith.constant 1.000000e+00 : f32
    %172 = vector.broadcast %cst_72 : f32 to vector<2x128xf32>
    %173 = arith.subf %172, %164 : vector<2x128xf32>
    %174 = arith.mulf %173, %171 : vector<2x128xf32>
    %175 = arith.mulf %164, %119 : vector<2x128xf32>
    %176 = arith.addf %174, %175 : vector<2x128xf32>
    %c0_73 = arith.constant 0 : index
    %c0_74 = arith.constant 0 : index
    %177 = vector.load %arg6[%c0_73, %c0_74] : memref<128x384xf32, #tpu.memory_space<vmem>>, vector<128x384xf32>
    %cst_75 = arith.constant dense<0.000000e+00> : vector<2x384xf32>
    %178 = tpu.matmul %119, %177, %cst_75 {dimension_numbers = #tpu.dot_dimension_numbers<[1], [0], [0], [1], [0, 0, 1, 1], [], []>} : vector<2x128xf32>, vector<128x384xf32>, vector<2x384xf32> -> vector<2x384xf32>
    %c0_76 = arith.constant 0 : index
    %c0_77 = arith.constant 0 : index
    %179 = vector.load %arg8[%c0_76, %c0_77] : memref<1x384xf32, #tpu.memory_space<vmem>>, vector<1x384xf32>
    %180 = vector.broadcast %179 : vector<1x384xf32> to vector<2x384xf32>
    %181 = arith.addf %178, %180 : vector<2x384xf32>
    %c0_78 = arith.constant 0 : index
    %c0_79 = arith.constant 0 : index
    %182 = vector.load %arg7[%c0_78, %c0_79] : memref<128x384xf32, #tpu.memory_space<vmem>>, vector<128x384xf32>
    %cst_80 = arith.constant dense<0.000000e+00> : vector<2x384xf32>
    %183 = tpu.matmul %149, %182, %cst_80 {dimension_numbers = #tpu.dot_dimension_numbers<[1], [0], [0], [1], [0, 0, 1, 1], [], []>} : vector<2x128xf32>, vector<128x384xf32>, vector<2x384xf32> -> vector<2x384xf32>
    %c0_81 = arith.constant 0 : index
    %c0_82 = arith.constant 0 : index
    %184 = vector.load %arg9[%c0_81, %c0_82] : memref<1x128xf32, #tpu.memory_space<vmem>>, vector<1x128xf32>
    %185 = vector.extract_strided_slice %181 {offsets = [0, 0], sizes = [2, 256], strides = [1, 1]} : vector<2x384xf32> to vector<2x256xf32>
    %186 = vector.extract_strided_slice %183 {offsets = [0, 0], sizes = [2, 256], strides = [1, 1]} : vector<2x384xf32> to vector<2x256xf32>
    %187 = arith.addf %185, %186 : vector<2x256xf32>
    %188 = arith.negf %187 : vector<2x256xf32>
    %189 = math.exp %188 : vector<2x256xf32>
    %cst_83 = arith.constant 1.000000e+00 : f32
    %190 = vector.broadcast %cst_83 : f32 to vector<2x256xf32>
    %191 = arith.addf %190, %189 : vector<2x256xf32>
    %192 = arith.divf %190, %191 : vector<2x256xf32>
    %193 = vector.extract_strided_slice %192 {offsets = [0, 0], sizes = [2, 128], strides = [1, 1]} : vector<2x256xf32> to vector<2x128xf32>
    %194 = vector.extract_strided_slice %192 {offsets = [0, 128], sizes = [2, 128], strides = [1, 1]} : vector<2x256xf32> to vector<2x128xf32>
    %195 = vector.extract_strided_slice %181 {offsets = [0, 256], sizes = [2, 128], strides = [1, 1]} : vector<2x384xf32> to vector<2x128xf32>
    %196 = vector.extract_strided_slice %183 {offsets = [0, 256], sizes = [2, 128], strides = [1, 1]} : vector<2x384xf32> to vector<2x128xf32>
    %197 = vector.broadcast %184 : vector<1x128xf32> to vector<2x128xf32>
    %198 = arith.addf %196, %197 : vector<2x128xf32>
    %199 = arith.mulf %193, %198 : vector<2x128xf32>
    %200 = arith.addf %195, %199 : vector<2x128xf32>
    %201 = math.tanh %200 : vector<2x128xf32>
    %cst_84 = arith.constant 1.000000e+00 : f32
    %202 = vector.broadcast %cst_84 : f32 to vector<2x128xf32>
    %203 = arith.subf %202, %194 : vector<2x128xf32>
    %204 = arith.mulf %203, %201 : vector<2x128xf32>
    %205 = arith.mulf %194, %149 : vector<2x128xf32>
    %206 = arith.addf %204, %205 : vector<2x128xf32>
    %c4_85 = arith.constant 4 : index
    %c0_86 = arith.constant 0 : index
    %207 = vector.load %arg15[%c4_85, %c0_86] : memref<16x128xf32, #tpu.memory_space<vmem>>, vector<2x128xf32>
    tpu.vector_store %arg15[%c4_85, %c0_86], %206 {strides = array<i32>} : memref<16x128xf32, #tpu.memory_space<vmem>>, vector<2x128xf32>,
    %c8 = arith.constant 8 : index
    %c0_87 = arith.constant 0 : index
    %208 = vector.load %arg14[%c8, %c0_87] : memref<16x384xf32, #tpu.memory_space<vmem>>, vector<2x384xf32>
    %c0_88 = arith.constant 0 : index
    %c0_89 = arith.constant 0 : index
    %209 = vector.load %arg3[%c0_88, %c0_89] : memref<128x384xf32, #tpu.memory_space<vmem>>, vector<128x384xf32>
    %cst_90 = arith.constant dense<0.000000e+00> : vector<2x384xf32>
    %210 = tpu.matmul %176, %209, %cst_90 {dimension_numbers = #tpu.dot_dimension_numbers<[1], [0], [0], [1], [0, 0, 1, 1], [], []>} : vector<2x128xf32>, vector<128x384xf32>, vector<2x384xf32> -> vector<2x384xf32>
    %c0_91 = arith.constant 0 : index
    %c0_92 = arith.constant 0 : index
    %211 = vector.load %arg5[%c0_91, %c0_92] : memref<1x128xf32, #tpu.memory_space<vmem>>, vector<1x128xf32>
    %212 = vector.extract_strided_slice %208 {offsets = [0, 0], sizes = [2, 256], strides = [1, 1]} : vector<2x384xf32> to vector<2x256xf32>
    %213 = vector.extract_strided_slice %210 {offsets = [0, 0], sizes = [2, 256], strides = [1, 1]} : vector<2x384xf32> to vector<2x256xf32>
    %214 = arith.addf %212, %213 : vector<2x256xf32>
    %215 = arith.negf %214 : vector<2x256xf32>
    %216 = math.exp %215 : vector<2x256xf32>
    %cst_93 = arith.constant 1.000000e+00 : f32
    %217 = vector.broadcast %cst_93 : f32 to vector<2x256xf32>
    %218 = arith.addf %217, %216 : vector<2x256xf32>
    %219 = arith.divf %217, %218 : vector<2x256xf32>
    %220 = vector.extract_strided_slice %219 {offsets = [0, 0], sizes = [2, 128], strides = [1, 1]} : vector<2x256xf32> to vector<2x128xf32>
    %221 = vector.extract_strided_slice %219 {offsets = [0, 128], sizes = [2, 128], strides = [1, 1]} : vector<2x256xf32> to vector<2x128xf32>
    %222 = vector.extract_strided_slice %208 {offsets = [0, 256], sizes = [2, 128], strides = [1, 1]} : vector<2x384xf32> to vector<2x128xf32>
    %223 = vector.extract_strided_slice %210 {offsets = [0, 256], sizes = [2, 128], strides = [1, 1]} : vector<2x384xf32> to vector<2x128xf32>
    %224 = vector.broadcast %211 : vector<1x128xf32> to vector<2x128xf32>
    %225 = arith.addf %223, %224 : vector<2x128xf32>
    %226 = arith.mulf %220, %225 : vector<2x128xf32>
    %227 = arith.addf %222, %226 : vector<2x128xf32>
    %228 = math.tanh %227 : vector<2x128xf32>
    %cst_94 = arith.constant 1.000000e+00 : f32
    %229 = vector.broadcast %cst_94 : f32 to vector<2x128xf32>
    %230 = arith.subf %229, %221 : vector<2x128xf32>
    %231 = arith.mulf %230, %228 : vector<2x128xf32>
    %232 = arith.mulf %221, %176 : vector<2x128xf32>
    %233 = arith.addf %231, %232 : vector<2x128xf32>
    %c0_95 = arith.constant 0 : index
    %c0_96 = arith.constant 0 : index
    %234 = vector.load %arg6[%c0_95, %c0_96] : memref<128x384xf32, #tpu.memory_space<vmem>>, vector<128x384xf32>
    %cst_97 = arith.constant dense<0.000000e+00> : vector<2x384xf32>
    %235 = tpu.matmul %176, %234, %cst_97 {dimension_numbers = #tpu.dot_dimension_numbers<[1], [0], [0], [1], [0, 0, 1, 1], [], []>} : vector<2x128xf32>, vector<128x384xf32>, vector<2x384xf32> -> vector<2x384xf32>
    %c0_98 = arith.constant 0 : index
    %c0_99 = arith.constant 0 : index
    %236 = vector.load %arg8[%c0_98, %c0_99] : memref<1x384xf32, #tpu.memory_space<vmem>>, vector<1x384xf32>
    %237 = vector.broadcast %236 : vector<1x384xf32> to vector<2x384xf32>
    %238 = arith.addf %235, %237 : vector<2x384xf32>
    %c0_100 = arith.constant 0 : index
    %c0_101 = arith.constant 0 : index
    %239 = vector.load %arg7[%c0_100, %c0_101] : memref<128x384xf32, #tpu.memory_space<vmem>>, vector<128x384xf32>
    %cst_102 = arith.constant dense<0.000000e+00> : vector<2x384xf32>
    %240 = tpu.matmul %206, %239, %cst_102 {dimension_numbers = #tpu.dot_dimension_numbers<[1], [0], [0], [1], [0, 0, 1, 1], [], []>} : vector<2x128xf32>, vector<128x384xf32>, vector<2x384xf32> -> vector<2x384xf32>
    %c0_103 = arith.constant 0 : index
    %c0_104 = arith.constant 0 : index
    %241 = vector.load %arg9[%c0_103, %c0_104] : memref<1x128xf32, #tpu.memory_space<vmem>>, vector<1x128xf32>
    %242 = vector.extract_strided_slice %238 {offsets = [0, 0], sizes = [2, 256], strides = [1, 1]} : vector<2x384xf32> to vector<2x256xf32>
    %243 = vector.extract_strided_slice %240 {offsets = [0, 0], sizes = [2, 256], strides = [1, 1]} : vector<2x384xf32> to vector<2x256xf32>
    %244 = arith.addf %242, %243 : vector<2x256xf32>
    %245 = arith.negf %244 : vector<2x256xf32>
    %246 = math.exp %245 : vector<2x256xf32>
    %cst_105 = arith.constant 1.000000e+00 : f32
    %247 = vector.broadcast %cst_105 : f32 to vector<2x256xf32>
    %248 = arith.addf %247, %246 : vector<2x256xf32>
    %249 = arith.divf %247, %248 : vector<2x256xf32>
    %250 = vector.extract_strided_slice %249 {offsets = [0, 0], sizes = [2, 128], strides = [1, 1]} : vector<2x256xf32> to vector<2x128xf32>
    %251 = vector.extract_strided_slice %249 {offsets = [0, 128], sizes = [2, 128], strides = [1, 1]} : vector<2x256xf32> to vector<2x128xf32>
    %252 = vector.extract_strided_slice %238 {offsets = [0, 256], sizes = [2, 128], strides = [1, 1]} : vector<2x384xf32> to vector<2x128xf32>
    %253 = vector.extract_strided_slice %240 {offsets = [0, 256], sizes = [2, 128], strides = [1, 1]} : vector<2x384xf32> to vector<2x128xf32>
    %254 = vector.broadcast %241 : vector<1x128xf32> to vector<2x128xf32>
    %255 = arith.addf %253, %254 : vector<2x128xf32>
    %256 = arith.mulf %250, %255 : vector<2x128xf32>
    %257 = arith.addf %252, %256 : vector<2x128xf32>
    %258 = math.tanh %257 : vector<2x128xf32>
    %cst_106 = arith.constant 1.000000e+00 : f32
    %259 = vector.broadcast %cst_106 : f32 to vector<2x128xf32>
    %260 = arith.subf %259, %251 : vector<2x128xf32>
    %261 = arith.mulf %260, %258 : vector<2x128xf32>
    %262 = arith.mulf %251, %206 : vector<2x128xf32>
    %263 = arith.addf %261, %262 : vector<2x128xf32>
    %c6_107 = arith.constant 6 : index
    %c0_108 = arith.constant 0 : index
    %264 = vector.load %arg15[%c6_107, %c0_108] : memref<16x128xf32, #tpu.memory_space<vmem>>, vector<2x128xf32>
    tpu.vector_store %arg15[%c6_107, %c0_108], %263 {strides = array<i32>} : memref<16x128xf32, #tpu.memory_space<vmem>>, vector<2x128xf32>,
    %c10 = arith.constant 10 : index
    %c0_109 = arith.constant 0 : index
    %265 = vector.load %arg14[%c10, %c0_109] : memref<16x384xf32, #tpu.memory_space<vmem>>, vector<2x384xf32>
    %c0_110 = arith.constant 0 : index
    %c0_111 = arith.constant 0 : index
    %266 = vector.load %arg3[%c0_110, %c0_111] : memref<128x384xf32, #tpu.memory_space<vmem>>, vector<128x384xf32>
    %cst_112 = arith.constant dense<0.000000e+00> : vector<2x384xf32>
    %267 = tpu.matmul %233, %266, %cst_112 {dimension_numbers = #tpu.dot_dimension_numbers<[1], [0], [0], [1], [0, 0, 1, 1], [], []>} : vector<2x128xf32>, vector<128x384xf32>, vector<2x384xf32> -> vector<2x384xf32>
    %c0_113 = arith.constant 0 : index
    %c0_114 = arith.constant 0 : index
    %268 = vector.load %arg5[%c0_113, %c0_114] : memref<1x128xf32, #tpu.memory_space<vmem>>, vector<1x128xf32>
    %269 = vector.extract_strided_slice %265 {offsets = [0, 0], sizes = [2, 256], strides = [1, 1]} : vector<2x384xf32> to vector<2x256xf32>
    %270 = vector.extract_strided_slice %267 {offsets = [0, 0], sizes = [2, 256], strides = [1, 1]} : vector<2x384xf32> to vector<2x256xf32>
    %271 = arith.addf %269, %270 : vector<2x256xf32>
    %272 = arith.negf %271 : vector<2x256xf32>
    %273 = math.exp %272 : vector<2x256xf32>
    %cst_115 = arith.constant 1.000000e+00 : f32
    %274 = vector.broadcast %cst_115 : f32 to vector<2x256xf32>
    %275 = arith.addf %274, %273 : vector<2x256xf32>
    %276 = arith.divf %274, %275 : vector<2x256xf32>
    %277 = vector.extract_strided_slice %276 {offsets = [0, 0], sizes = [2, 128], strides = [1, 1]} : vector<2x256xf32> to vector<2x128xf32>
    %278 = vector.extract_strided_slice %276 {offsets = [0, 128], sizes = [2, 128], strides = [1, 1]} : vector<2x256xf32> to vector<2x128xf32>
    %279 = vector.extract_strided_slice %265 {offsets = [0, 256], sizes = [2, 128], strides = [1, 1]} : vector<2x384xf32> to vector<2x128xf32>
    %280 = vector.extract_strided_slice %267 {offsets = [0, 256], sizes = [2, 128], strides = [1, 1]} : vector<2x384xf32> to vector<2x128xf32>
    %281 = vector.broadcast %268 : vector<1x128xf32> to vector<2x128xf32>
    %282 = arith.addf %280, %281 : vector<2x128xf32>
    %283 = arith.mulf %277, %282 : vector<2x128xf32>
    %284 = arith.addf %279, %283 : vector<2x128xf32>
    %285 = math.tanh %284 : vector<2x128xf32>
    %cst_116 = arith.constant 1.000000e+00 : f32
    %286 = vector.broadcast %cst_116 : f32 to vector<2x128xf32>
    %287 = arith.subf %286, %278 : vector<2x128xf32>
    %288 = arith.mulf %287, %285 : vector<2x128xf32>
    %289 = arith.mulf %278, %233 : vector<2x128xf32>
    %290 = arith.addf %288, %289 : vector<2x128xf32>
    %c0_117 = arith.constant 0 : index
    %c0_118 = arith.constant 0 : index
    %291 = vector.load %arg6[%c0_117, %c0_118] : memref<128x384xf32, #tpu.memory_space<vmem>>, vector<128x384xf32>
    %cst_119 = arith.constant dense<0.000000e+00> : vector<2x384xf32>
    %292 = tpu.matmul %233, %291, %cst_119 {dimension_numbers = #tpu.dot_dimension_numbers<[1], [0], [0], [1], [0, 0, 1, 1], [], []>} : vector<2x128xf32>, vector<128x384xf32>, vector<2x384xf32> -> vector<2x384xf32>
    %c0_120 = arith.constant 0 : index
    %c0_121 = arith.constant 0 : index
    %293 = vector.load %arg8[%c0_120, %c0_121] : memref<1x384xf32, #tpu.memory_space<vmem>>, vector<1x384xf32>
    %294 = vector.broadcast %293 : vector<1x384xf32> to vector<2x384xf32>
    %295 = arith.addf %292, %294 : vector<2x384xf32>
    %c0_122 = arith.constant 0 : index
    %c0_123 = arith.constant 0 : index
    %296 = vector.load %arg7[%c0_122, %c0_123] : memref<128x384xf32, #tpu.memory_space<vmem>>, vector<128x384xf32>
    %cst_124 = arith.constant dense<0.000000e+00> : vector<2x384xf32>
    %297 = tpu.matmul %263, %296, %cst_124 {dimension_numbers = #tpu.dot_dimension_numbers<[1], [0], [0], [1], [0, 0, 1, 1], [], []>} : vector<2x128xf32>, vector<128x384xf32>, vector<2x384xf32> -> vector<2x384xf32>
    %c0_125 = arith.constant 0 : index
    %c0_126 = arith.constant 0 : index
    %298 = vector.load %arg9[%c0_125, %c0_126] : memref<1x128xf32, #tpu.memory_space<vmem>>, vector<1x128xf32>
    %299 = vector.extract_strided_slice %295 {offsets = [0, 0], sizes = [2, 256], strides = [1, 1]} : vector<2x384xf32> to vector<2x256xf32>
    %300 = vector.extract_strided_slice %297 {offsets = [0, 0], sizes = [2, 256], strides = [1, 1]} : vector<2x384xf32> to vector<2x256xf32>
    %301 = arith.addf %299, %300 : vector<2x256xf32>
    %302 = arith.negf %301 : vector<2x256xf32>
    %303 = math.exp %302 : vector<2x256xf32>
    %cst_127 = arith.constant 1.000000e+00 : f32
    %304 = vector.broadcast %cst_127 : f32 to vector<2x256xf32>
    %305 = arith.addf %304, %303 : vector<2x256xf32>
    %306 = arith.divf %304, %305 : vector<2x256xf32>
    %307 = vector.extract_strided_slice %306 {offsets = [0, 0], sizes = [2, 128], strides = [1, 1]} : vector<2x256xf32> to vector<2x128xf32>
    %308 = vector.extract_strided_slice %306 {offsets = [0, 128], sizes = [2, 128], strides = [1, 1]} : vector<2x256xf32> to vector<2x128xf32>
    %309 = vector.extract_strided_slice %295 {offsets = [0, 256], sizes = [2, 128], strides = [1, 1]} : vector<2x384xf32> to vector<2x128xf32>
    %310 = vector.extract_strided_slice %297 {offsets = [0, 256], sizes = [2, 128], strides = [1, 1]} : vector<2x384xf32> to vector<2x128xf32>
    %311 = vector.broadcast %298 : vector<1x128xf32> to vector<2x128xf32>
    %312 = arith.addf %310, %311 : vector<2x128xf32>
    %313 = arith.mulf %307, %312 : vector<2x128xf32>
    %314 = arith.addf %309, %313 : vector<2x128xf32>
    %315 = math.tanh %314 : vector<2x128xf32>
    %cst_128 = arith.constant 1.000000e+00 : f32
    %316 = vector.broadcast %cst_128 : f32 to vector<2x128xf32>
    %317 = arith.subf %316, %308 : vector<2x128xf32>
    %318 = arith.mulf %317, %315 : vector<2x128xf32>
    %319 = arith.mulf %308, %263 : vector<2x128xf32>
    %320 = arith.addf %318, %319 : vector<2x128xf32>
    %c8_129 = arith.constant 8 : index
    %c0_130 = arith.constant 0 : index
    %321 = vector.load %arg15[%c8_129, %c0_130] : memref<16x128xf32, #tpu.memory_space<vmem>>, vector<2x128xf32>
    tpu.vector_store %arg15[%c8_129, %c0_130], %320 {strides = array<i32>} : memref<16x128xf32, #tpu.memory_space<vmem>>, vector<2x128xf32>,
    %c12 = arith.constant 12 : index
    %c0_131 = arith.constant 0 : index
    %322 = vector.load %arg14[%c12, %c0_131] : memref<16x384xf32, #tpu.memory_space<vmem>>, vector<2x384xf32>
    %c0_132 = arith.constant 0 : index
    %c0_133 = arith.constant 0 : index
    %323 = vector.load %arg3[%c0_132, %c0_133] : memref<128x384xf32, #tpu.memory_space<vmem>>, vector<128x384xf32>
    %cst_134 = arith.constant dense<0.000000e+00> : vector<2x384xf32>
    %324 = tpu.matmul %290, %323, %cst_134 {dimension_numbers = #tpu.dot_dimension_numbers<[1], [0], [0], [1], [0, 0, 1, 1], [], []>} : vector<2x128xf32>, vector<128x384xf32>, vector<2x384xf32> -> vector<2x384xf32>
    %c0_135 = arith.constant 0 : index
    %c0_136 = arith.constant 0 : index
    %325 = vector.load %arg5[%c0_135, %c0_136] : memref<1x128xf32, #tpu.memory_space<vmem>>, vector<1x128xf32>
    %326 = vector.extract_strided_slice %322 {offsets = [0, 0], sizes = [2, 256], strides = [1, 1]} : vector<2x384xf32> to vector<2x256xf32>
    %327 = vector.extract_strided_slice %324 {offsets = [0, 0], sizes = [2, 256], strides = [1, 1]} : vector<2x384xf32> to vector<2x256xf32>
    %328 = arith.addf %326, %327 : vector<2x256xf32>
    %329 = arith.negf %328 : vector<2x256xf32>
    %330 = math.exp %329 : vector<2x256xf32>
    %cst_137 = arith.constant 1.000000e+00 : f32
    %331 = vector.broadcast %cst_137 : f32 to vector<2x256xf32>
    %332 = arith.addf %331, %330 : vector<2x256xf32>
    %333 = arith.divf %331, %332 : vector<2x256xf32>
    %334 = vector.extract_strided_slice %333 {offsets = [0, 0], sizes = [2, 128], strides = [1, 1]} : vector<2x256xf32> to vector<2x128xf32>
    %335 = vector.extract_strided_slice %333 {offsets = [0, 128], sizes = [2, 128], strides = [1, 1]} : vector<2x256xf32> to vector<2x128xf32>
    %336 = vector.extract_strided_slice %322 {offsets = [0, 256], sizes = [2, 128], strides = [1, 1]} : vector<2x384xf32> to vector<2x128xf32>
    %337 = vector.extract_strided_slice %324 {offsets = [0, 256], sizes = [2, 128], strides = [1, 1]} : vector<2x384xf32> to vector<2x128xf32>
    %338 = vector.broadcast %325 : vector<1x128xf32> to vector<2x128xf32>
    %339 = arith.addf %337, %338 : vector<2x128xf32>
    %340 = arith.mulf %334, %339 : vector<2x128xf32>
    %341 = arith.addf %336, %340 : vector<2x128xf32>
    %342 = math.tanh %341 : vector<2x128xf32>
    %cst_138 = arith.constant 1.000000e+00 : f32
    %343 = vector.broadcast %cst_138 : f32 to vector<2x128xf32>
    %344 = arith.subf %343, %335 : vector<2x128xf32>
    %345 = arith.mulf %344, %342 : vector<2x128xf32>
    %346 = arith.mulf %335, %290 : vector<2x128xf32>
    %347 = arith.addf %345, %346 : vector<2x128xf32>
    %c0_139 = arith.constant 0 : index
    %c0_140 = arith.constant 0 : index
    %348 = vector.load %arg6[%c0_139, %c0_140] : memref<128x384xf32, #tpu.memory_space<vmem>>, vector<128x384xf32>
    %cst_141 = arith.constant dense<0.000000e+00> : vector<2x384xf32>
    %349 = tpu.matmul %290, %348, %cst_141 {dimension_numbers = #tpu.dot_dimension_numbers<[1], [0], [0], [1], [0, 0, 1, 1], [], []>} : vector<2x128xf32>, vector<128x384xf32>, vector<2x384xf32> -> vector<2x384xf32>
    %c0_142 = arith.constant 0 : index
    %c0_143 = arith.constant 0 : index
    %350 = vector.load %arg8[%c0_142, %c0_143] : memref<1x384xf32, #tpu.memory_space<vmem>>, vector<1x384xf32>
    %351 = vector.broadcast %350 : vector<1x384xf32> to vector<2x384xf32>
    %352 = arith.addf %349, %351 : vector<2x384xf32>
    %c0_144 = arith.constant 0 : index
    %c0_145 = arith.constant 0 : index
    %353 = vector.load %arg7[%c0_144, %c0_145] : memref<128x384xf32, #tpu.memory_space<vmem>>, vector<128x384xf32>
    %cst_146 = arith.constant dense<0.000000e+00> : vector<2x384xf32>
    %354 = tpu.matmul %320, %353, %cst_146 {dimension_numbers = #tpu.dot_dimension_numbers<[1], [0], [0], [1], [0, 0, 1, 1], [], []>} : vector<2x128xf32>, vector<128x384xf32>, vector<2x384xf32> -> vector<2x384xf32>
    %c0_147 = arith.constant 0 : index
    %c0_148 = arith.constant 0 : index
    %355 = vector.load %arg9[%c0_147, %c0_148] : memref<1x128xf32, #tpu.memory_space<vmem>>, vector<1x128xf32>
    %356 = vector.extract_strided_slice %352 {offsets = [0, 0], sizes = [2, 256], strides = [1, 1]} : vector<2x384xf32> to vector<2x256xf32>
    %357 = vector.extract_strided_slice %354 {offsets = [0, 0], sizes = [2, 256], strides = [1, 1]} : vector<2x384xf32> to vector<2x256xf32>
    %358 = arith.addf %356, %357 : vector<2x256xf32>
    %359 = arith.negf %358 : vector<2x256xf32>
    %360 = math.exp %359 : vector<2x256xf32>
    %cst_149 = arith.constant 1.000000e+00 : f32
    %361 = vector.broadcast %cst_149 : f32 to vector<2x256xf32>
    %362 = arith.addf %361, %360 : vector<2x256xf32>
    %363 = arith.divf %361, %362 : vector<2x256xf32>
    %364 = vector.extract_strided_slice %363 {offsets = [0, 0], sizes = [2, 128], strides = [1, 1]} : vector<2x256xf32> to vector<2x128xf32>
    %365 = vector.extract_strided_slice %363 {offsets = [0, 128], sizes = [2, 128], strides = [1, 1]} : vector<2x256xf32> to vector<2x128xf32>
    %366 = vector.extract_strided_slice %352 {offsets = [0, 256], sizes = [2, 128], strides = [1, 1]} : vector<2x384xf32> to vector<2x128xf32>
    %367 = vector.extract_strided_slice %354 {offsets = [0, 256], sizes = [2, 128], strides = [1, 1]} : vector<2x384xf32> to vector<2x128xf32>
    %368 = vector.broadcast %355 : vector<1x128xf32> to vector<2x128xf32>
    %369 = arith.addf %367, %368 : vector<2x128xf32>
    %370 = arith.mulf %364, %369 : vector<2x128xf32>
    %371 = arith.addf %366, %370 : vector<2x128xf32>
    %372 = math.tanh %371 : vector<2x128xf32>
    %cst_150 = arith.constant 1.000000e+00 : f32
    %373 = vector.broadcast %cst_150 : f32 to vector<2x128xf32>
    %374 = arith.subf %373, %365 : vector<2x128xf32>
    %375 = arith.mulf %374, %372 : vector<2x128xf32>
    %376 = arith.mulf %365, %320 : vector<2x128xf32>
    %377 = arith.addf %375, %376 : vector<2x128xf32>
    %c10_151 = arith.constant 10 : index
    %c0_152 = arith.constant 0 : index
    %378 = vector.load %arg15[%c10_151, %c0_152] : memref<16x128xf32, #tpu.memory_space<vmem>>, vector<2x128xf32>
    tpu.vector_store %arg15[%c10_151, %c0_152], %377 {strides = array<i32>} : memref<16x128xf32, #tpu.memory_space<vmem>>, vector<2x128xf32>,
    %c14 = arith.constant 14 : index
    %c0_153 = arith.constant 0 : index
    %379 = vector.load %arg14[%c14, %c0_153] : memref<16x384xf32, #tpu.memory_space<vmem>>, vector<2x384xf32>
    %c0_154 = arith.constant 0 : index
    %c0_155 = arith.constant 0 : index
    %380 = vector.load %arg3[%c0_154, %c0_155] : memref<128x384xf32, #tpu.memory_space<vmem>>, vector<128x384xf32>
    %cst_156 = arith.constant dense<0.000000e+00> : vector<2x384xf32>
    %381 = tpu.matmul %347, %380, %cst_156 {dimension_numbers = #tpu.dot_dimension_numbers<[1], [0], [0], [1], [0, 0, 1, 1], [], []>} : vector<2x128xf32>, vector<128x384xf32>, vector<2x384xf32> -> vector<2x384xf32>
    %c0_157 = arith.constant 0 : index
    %c0_158 = arith.constant 0 : index
    %382 = vector.load %arg5[%c0_157, %c0_158] : memref<1x128xf32, #tpu.memory_space<vmem>>, vector<1x128xf32>
    %383 = vector.extract_strided_slice %379 {offsets = [0, 0], sizes = [2, 256], strides = [1, 1]} : vector<2x384xf32> to vector<2x256xf32>
    %384 = vector.extract_strided_slice %381 {offsets = [0, 0], sizes = [2, 256], strides = [1, 1]} : vector<2x384xf32> to vector<2x256xf32>
    %385 = arith.addf %383, %384 : vector<2x256xf32>
    %386 = arith.negf %385 : vector<2x256xf32>
    %387 = math.exp %386 : vector<2x256xf32>
    %cst_159 = arith.constant 1.000000e+00 : f32
    %388 = vector.broadcast %cst_159 : f32 to vector<2x256xf32>
    %389 = arith.addf %388, %387 : vector<2x256xf32>
    %390 = arith.divf %388, %389 : vector<2x256xf32>
    %391 = vector.extract_strided_slice %390 {offsets = [0, 0], sizes = [2, 128], strides = [1, 1]} : vector<2x256xf32> to vector<2x128xf32>
    %392 = vector.extract_strided_slice %390 {offsets = [0, 128], sizes = [2, 128], strides = [1, 1]} : vector<2x256xf32> to vector<2x128xf32>
    %393 = vector.extract_strided_slice %379 {offsets = [0, 256], sizes = [2, 128], strides = [1, 1]} : vector<2x384xf32> to vector<2x128xf32>
    %394 = vector.extract_strided_slice %381 {offsets = [0, 256], sizes = [2, 128], strides = [1, 1]} : vector<2x384xf32> to vector<2x128xf32>
    %395 = vector.broadcast %382 : vector<1x128xf32> to vector<2x128xf32>
    %396 = arith.addf %394, %395 : vector<2x128xf32>
    %397 = arith.mulf %391, %396 : vector<2x128xf32>
    %398 = arith.addf %393, %397 : vector<2x128xf32>
    %399 = math.tanh %398 : vector<2x128xf32>
    %cst_160 = arith.constant 1.000000e+00 : f32
    %400 = vector.broadcast %cst_160 : f32 to vector<2x128xf32>
    %401 = arith.subf %400, %392 : vector<2x128xf32>
    %402 = arith.mulf %401, %399 : vector<2x128xf32>
    %403 = arith.mulf %392, %347 : vector<2x128xf32>
    %404 = arith.addf %402, %403 : vector<2x128xf32>
    %c0_161 = arith.constant 0 : index
    %c0_162 = arith.constant 0 : index
    %405 = vector.load %arg6[%c0_161, %c0_162] : memref<128x384xf32, #tpu.memory_space<vmem>>, vector<128x384xf32>
    %cst_163 = arith.constant dense<0.000000e+00> : vector<2x384xf32>
    %406 = tpu.matmul %347, %405, %cst_163 {dimension_numbers = #tpu.dot_dimension_numbers<[1], [0], [0], [1], [0, 0, 1, 1], [], []>} : vector<2x128xf32>, vector<128x384xf32>, vector<2x384xf32> -> vector<2x384xf32>
    %c0_164 = arith.constant 0 : index
    %c0_165 = arith.constant 0 : index
    %407 = vector.load %arg8[%c0_164, %c0_165] : memref<1x384xf32, #tpu.memory_space<vmem>>, vector<1x384xf32>
    %408 = vector.broadcast %407 : vector<1x384xf32> to vector<2x384xf32>
    %409 = arith.addf %406, %408 : vector<2x384xf32>
    %c0_166 = arith.constant 0 : index
    %c0_167 = arith.constant 0 : index
    %410 = vector.load %arg7[%c0_166, %c0_167] : memref<128x384xf32, #tpu.memory_space<vmem>>, vector<128x384xf32>
    %cst_168 = arith.constant dense<0.000000e+00> : vector<2x384xf32>
    %411 = tpu.matmul %377, %410, %cst_168 {dimension_numbers = #tpu.dot_dimension_numbers<[1], [0], [0], [1], [0, 0, 1, 1], [], []>} : vector<2x128xf32>, vector<128x384xf32>, vector<2x384xf32> -> vector<2x384xf32>
    %c0_169 = arith.constant 0 : index
    %c0_170 = arith.constant 0 : index
    %412 = vector.load %arg9[%c0_169, %c0_170] : memref<1x128xf32, #tpu.memory_space<vmem>>, vector<1x128xf32>
    %413 = vector.extract_strided_slice %409 {offsets = [0, 0], sizes = [2, 256], strides = [1, 1]} : vector<2x384xf32> to vector<2x256xf32>
    %414 = vector.extract_strided_slice %411 {offsets = [0, 0], sizes = [2, 256], strides = [1, 1]} : vector<2x384xf32> to vector<2x256xf32>
    %415 = arith.addf %413, %414 : vector<2x256xf32>
    %416 = arith.negf %415 : vector<2x256xf32>
    %417 = math.exp %416 : vector<2x256xf32>
    %cst_171 = arith.constant 1.000000e+00 : f32
    %418 = vector.broadcast %cst_171 : f32 to vector<2x256xf32>
    %419 = arith.addf %418, %417 : vector<2x256xf32>
    %420 = arith.divf %418, %419 : vector<2x256xf32>
    %421 = vector.extract_strided_slice %420 {offsets = [0, 0], sizes = [2, 128], strides = [1, 1]} : vector<2x256xf32> to vector<2x128xf32>
    %422 = vector.extract_strided_slice %420 {offsets = [0, 128], sizes = [2, 128], strides = [1, 1]} : vector<2x256xf32> to vector<2x128xf32>
    %423 = vector.extract_strided_slice %409 {offsets = [0, 256], sizes = [2, 128], strides = [1, 1]} : vector<2x384xf32> to vector<2x128xf32>
    %424 = vector.extract_strided_slice %411 {offsets = [0, 256], sizes = [2, 128], strides = [1, 1]} : vector<2x384xf32> to vector<2x128xf32>
    %425 = vector.broadcast %412 : vector<1x128xf32> to vector<2x128xf32>
    %426 = arith.addf %424, %425 : vector<2x128xf32>
    %427 = arith.mulf %421, %426 : vector<2x128xf32>
    %428 = arith.addf %423, %427 : vector<2x128xf32>
    %429 = math.tanh %428 : vector<2x128xf32>
    %cst_172 = arith.constant 1.000000e+00 : f32
    %430 = vector.broadcast %cst_172 : f32 to vector<2x128xf32>
    %431 = arith.subf %430, %422 : vector<2x128xf32>
    %432 = arith.mulf %431, %429 : vector<2x128xf32>
    %433 = arith.mulf %422, %377 : vector<2x128xf32>
    %434 = arith.addf %432, %433 : vector<2x128xf32>
    %c12_173 = arith.constant 12 : index
    %c0_174 = arith.constant 0 : index
    %435 = vector.load %arg15[%c12_173, %c0_174] : memref<16x128xf32, #tpu.memory_space<vmem>>, vector<2x128xf32>
    tpu.vector_store %arg15[%c12_173, %c0_174], %434 {strides = array<i32>} : memref<16x128xf32, #tpu.memory_space<vmem>>, vector<2x128xf32>,
    %c0_175 = arith.constant 0 : index
    %c0_176 = arith.constant 0 : index
    %436 = vector.load %arg6[%c0_175, %c0_176] : memref<128x384xf32, #tpu.memory_space<vmem>>, vector<128x384xf32>
    %cst_177 = arith.constant dense<0.000000e+00> : vector<2x384xf32>
    %437 = tpu.matmul %404, %436, %cst_177 {dimension_numbers = #tpu.dot_dimension_numbers<[1], [0], [0], [1], [0, 0, 1, 1], [], []>} : vector<2x128xf32>, vector<128x384xf32>, vector<2x384xf32> -> vector<2x384xf32>
    %c0_178 = arith.constant 0 : index
    %c0_179 = arith.constant 0 : index
    %438 = vector.load %arg8[%c0_178, %c0_179] : memref<1x384xf32, #tpu.memory_space<vmem>>, vector<1x384xf32>
    %439 = vector.broadcast %438 : vector<1x384xf32> to vector<2x384xf32>
    %440 = arith.addf %437, %439 : vector<2x384xf32>
    %c0_180 = arith.constant 0 : index
    %c0_181 = arith.constant 0 : index
    %441 = vector.load %arg7[%c0_180, %c0_181] : memref<128x384xf32, #tpu.memory_space<vmem>>, vector<128x384xf32>
    %cst_182 = arith.constant dense<0.000000e+00> : vector<2x384xf32>
    %442 = tpu.matmul %434, %441, %cst_182 {dimension_numbers = #tpu.dot_dimension_numbers<[1], [0], [0], [1], [0, 0, 1, 1], [], []>} : vector<2x128xf32>, vector<128x384xf32>, vector<2x384xf32> -> vector<2x384xf32>
    %c0_183 = arith.constant 0 : index
    %c0_184 = arith.constant 0 : index
    %443 = vector.load %arg9[%c0_183, %c0_184] : memref<1x128xf32, #tpu.memory_space<vmem>>, vector<1x128xf32>
    %444 = vector.extract_strided_slice %440 {offsets = [0, 0], sizes = [2, 256], strides = [1, 1]} : vector<2x384xf32> to vector<2x256xf32>
    %445 = vector.extract_strided_slice %442 {offsets = [0, 0], sizes = [2, 256], strides = [1, 1]} : vector<2x384xf32> to vector<2x256xf32>
    %446 = arith.addf %444, %445 : vector<2x256xf32>
    %447 = arith.negf %446 : vector<2x256xf32>
    %448 = math.exp %447 : vector<2x256xf32>
    %cst_185 = arith.constant 1.000000e+00 : f32
    %449 = vector.broadcast %cst_185 : f32 to vector<2x256xf32>
    %450 = arith.addf %449, %448 : vector<2x256xf32>
    %451 = arith.divf %449, %450 : vector<2x256xf32>
    %452 = vector.extract_strided_slice %451 {offsets = [0, 0], sizes = [2, 128], strides = [1, 1]} : vector<2x256xf32> to vector<2x128xf32>
    %453 = vector.extract_strided_slice %451 {offsets = [0, 128], sizes = [2, 128], strides = [1, 1]} : vector<2x256xf32> to vector<2x128xf32>
    %454 = vector.extract_strided_slice %440 {offsets = [0, 256], sizes = [2, 128], strides = [1, 1]} : vector<2x384xf32> to vector<2x128xf32>
    %455 = vector.extract_strided_slice %442 {offsets = [0, 256], sizes = [2, 128], strides = [1, 1]} : vector<2x384xf32> to vector<2x128xf32>
    %456 = vector.broadcast %443 : vector<1x128xf32> to vector<2x128xf32>
    %457 = arith.addf %455, %456 : vector<2x128xf32>
    %458 = arith.mulf %452, %457 : vector<2x128xf32>
    %459 = arith.addf %454, %458 : vector<2x128xf32>
    %460 = math.tanh %459 : vector<2x128xf32>
    %cst_186 = arith.constant 1.000000e+00 : f32
    %461 = vector.broadcast %cst_186 : f32 to vector<2x128xf32>
    %462 = arith.subf %461, %453 : vector<2x128xf32>
    %463 = arith.mulf %462, %460 : vector<2x128xf32>
    %464 = arith.mulf %453, %434 : vector<2x128xf32>
    %465 = arith.addf %463, %464 : vector<2x128xf32>
    %c14_187 = arith.constant 14 : index
    %c0_188 = arith.constant 0 : index
    %466 = vector.load %arg15[%c14_187, %c0_188] : memref<16x128xf32, #tpu.memory_space<vmem>>, vector<2x128xf32>
    tpu.vector_store %arg15[%c14_187, %c0_188], %465 {strides = array<i32>} : memref<16x128xf32, #tpu.memory_space<vmem>>, vector<2x128xf32>,
    %c0_189 = arith.constant 0 : index
    %c0_190 = arith.constant 0 : index
    %c0_191 = arith.constant 0 : index
    %467 = vector.load %arg13[%c0_189, %c0_190, %c0_191] : memref<2x2x128xf32, #tpu.memory_space<vmem>>, vector<1x2x128xf32>
    %468 = vector.shape_cast %467 : vector<1x2x128xf32> to vector<2x128xf32>
    %469 = vector.shape_cast %404 : vector<2x128xf32> to vector<1x2x128xf32>
    tpu.vector_store %arg13[%c0_189, %c0_190, %c0_191], %469 {strides = array<i32>} : memref<2x2x128xf32, #tpu.memory_space<vmem>>, vector<1x2x128xf32>,
    %c1_192 = arith.constant 1 : index
    %c0_193 = arith.constant 0 : index
    %c0_194 = arith.constant 0 : index
    %470 = vector.load %arg13[%c1_192, %c0_193, %c0_194] : memref<2x2x128xf32, #tpu.memory_space<vmem>>, vector<1x2x128xf32>
    %471 = vector.shape_cast %470 : vector<1x2x128xf32> to vector<2x128xf32>
    %472 = vector.shape_cast %465 : vector<2x128xf32> to vector<1x2x128xf32>
    tpu.vector_store %arg13[%c1_192, %c0_193, %c0_194], %472 {strides = array<i32>} : memref<2x2x128xf32, #tpu.memory_space<vmem>>, vector<1x2x128xf32>,
    %c0_195 = arith.constant 0 : index
    %c0_196 = arith.constant 0 : index
    %473 = vector.load %arg15[%c0_195, %c0_196] : memref<16x128xf32, #tpu.memory_space<vmem>>, vector<16x128xf32>
    %c0_197 = arith.constant 0 : index
    %c0_198 = arith.constant 0 : index
    %474 = vector.load %arg10[%c0_197, %c0_198] : memref<128x128xf32, #tpu.memory_space<vmem>>, vector<128x128xf32>
    %cst_199 = arith.constant dense<0.000000e+00> : vector<16x128xf32>
    %475 = tpu.matmul %473, %474, %cst_199 {dimension_numbers = #tpu.dot_dimension_numbers<[1], [0], [0], [1], [0, 0, 1, 1], [], []>} : vector<16x128xf32>, vector<128x128xf32>, vector<16x128xf32> -> vector<16x128xf32>
    %c0_200 = arith.constant 0 : index
    %c0_201 = arith.constant 0 : index
    %476 = vector.load %arg11[%c0_200, %c0_201] : memref<1x128xf32, #tpu.memory_space<vmem>>, vector<1x128xf32>
    %477 = vector.broadcast %476 : vector<1x128xf32> to vector<16x128xf32>
    %478 = arith.addf %475, %477 : vector<16x128xf32>
    %c0_202 = arith.constant 0 : index
    %c0_203 = arith.constant 0 : index
    %479 = vector.load %arg12[%c0_202, %c0_203] : memref<16x128xf32, #tpu.memory_space<vmem>>, vector<16x128xf32>
    tpu.vector_store %arg12[%c0_202, %c0_203], %478 {strides = array<i32>} : memref<16x128xf32, #tpu.memory_space<vmem>>, vector<16x128xf32>,
    return
  }
}

</mosaic_0001>

<llo_original>
// kernel: decoder_gru_forward.1
$region0: #{decoder_gru_forward.1}
  #allocation0 [shape = 'u32[]', space=smem, size = 0x4, offset = 0x4, fixed_abs, tag = 'smem constant byte address 0x4 - core index']
  #allocation1 [shape = 'u32[72,128]{1,0:T(1,128)}', space=vmem, size = 0x9000, scoped, tag = 'internal scratch']
  #allocation2 [shape = 'f32[16,384]{1,0:T(8,128)}', space=vmem, size = 0x6000, scoped, tag = 'scratch operand']
  #allocation3 [shape = 'f32[16,128]{1,0:T(8,128)}', space=vmem, size = 0x2000, scoped, tag = 'scratch operand']
  %s0 = inlined_call_operand.vmem [shape: f32[16,16], index: 0, kind: input, shape index: {}]
  %s1 = inlined_call_operand.vmem [shape: f32[2,2,128], index: 1, kind: input, shape index: {}]
  %s2 = inlined_call_operand.hbm [shape: f32[16,384], index: 2, kind: input, shape index: {}]
  %s3 = inlined_call_operand.hbm [shape: f32[128,384], index: 3, kind: input, shape index: {}]
  %s4 = inlined_call_operand.vmem [shape: f32[1,384], index: 4, kind: input, shape index: {}]
  %s5 = inlined_call_operand.vmem [shape: f32[1,128], index: 5, kind: input, shape index: {}]
  %s6 = inlined_call_operand.hbm [shape: f32[128,384], index: 6, kind: input, shape index: {}]
  %s7 = inlined_call_operand.hbm [shape: f32[128,384], index: 7, kind: input, shape index: {}]
  %s8 = inlined_call_operand.vmem [shape: f32[1,384], index: 8, kind: input, shape index: {}]
  %s9 = inlined_call_operand.vmem [shape: f32[1,128], index: 9, kind: input, shape index: {}]
  %s10 = inlined_call_operand.hbm [shape: f32[128,128], index: 10, kind: input, shape index: {}]
  %s11 = inlined_call_operand.vmem [shape: f32[1,128], index: 11, kind: input, shape index: {}]
  %s12 = inlined_call_operand.vmem [shape: f32[16,128], index: 12, kind: output, shape index: {0}]
  %s13 = inlined_call_operand.hbm [shape: f32[2,2,128], index: 13, kind: output, shape index: {1}]
  %14 = xla_tuple %s12, %s13
  %s15 = sld [smem:[#allocation0]]
  $region86: #{decoder_gru_forward.1} parent=0
    _
  %s17 = ssub.s32 1, %s15
  %s18 = scalar_select 0, %s17, %s15
  $region1: #{decoder_gru_forward.1} parent=0
    #allocation4 [shape = 'u8[24576]{0}', space=vmem, size = 0x6000, scoped, tag = 'input window, operand 2, single buffered']
    #allocation5 [shape = 's32[1]{0}', space=sflag, size = 0x4, scoped, tag = 'scoped memory for decoder_gru_forward.1']
    #allocation6 [shape = 's32[1]{0}', space=sflag, size = 0x4, scoped, tag = 'scoped memory for decoder_gru_forward.1']
    #allocation7 [shape = 'u8[196608]{0}', space=vmem, size = 0x30000, scoped, tag = 'input window, operand 3, single buffered']
    #allocation8 [shape = 's32[1]{0}', space=sflag, size = 0x4, scoped, tag = 'scoped memory for decoder_gru_forward.1']
    #allocation9 [shape = 'u8[196608]{0}', space=vmem, size = 0x30000, scoped, tag = 'input window, operand 6, single buffered']
    #allocation10 [shape = 'u8[196608]{0}', space=vmem, size = 0x30000, scoped, tag = 'input window, operand 7, single buffered']
    #allocation11 [shape = 's32[1]{0}', space=sflag, size = 0x4, scoped, tag = 'scoped memory for decoder_gru_forward.1']
    #allocation12 [shape = 'u8[65536]{0}', space=vmem, size = 0x10000, scoped, tag = 'input window, operand 10, single buffered']
    #allocation13 [shape = 'u8[2048]{0}', space=vmem, size = 0x800, scoped, tag = 'output window, operand 1, single buffered']
    %19 = vsyncpa [#allocation5], 0
    %20 = vsyncpa [#allocation8], 0
    %21 = vsyncpa [#allocation11], 0
    %22 = vsyncpa [#allocation6], 0
    // Predicated region
    $region2: #{decoder_gru_forward.1} parent=1 // pred_check
      _
    $region3: #{decoder_gru_forward.1} parent=1 // pred_check_branch
      %24 = sbr.rel (0) target = $region5
    $region4: #{decoder_gru_forward.1} parent=1 // pred_region
      _
    $region5: #{decoder_gru_forward.1} parent=1 // pred_fallthru
      _
    // Predicated region
    $region6: #{decoder_gru_forward.1} parent=1 // pred_check
      _
    $region7: #{decoder_gru_forward.1} parent=1 // pred_check_branch
      %26 = sbr.rel (0) target = $region9
    $region8: #{decoder_gru_forward.1} parent=1 // pred_region
      _
    $region9: #{decoder_gru_forward.1} parent=1 // pred_fallthru
      _
    // Predicated region
    $region10: #{decoder_gru_forward.1} parent=1 // pred_check
      _
    $region11: #{decoder_gru_forward.1} parent=1 // pred_check_branch
      %28 = sbr.rel (0) target = $region13
    $region12: #{decoder_gru_forward.1} parent=1 // pred_region
      %30 = vsyncadd [#allocation5], 0
      %s31 = sshll.u32 %s2, 4
      %s32 = int_to_ptr.hbm [resolvable:$true] %s31
      %s33 = sshll.u32 [#allocation4], 4
      %s34 = int_to_ptr.vmem [resolvable:$true] %s33
      %39 = dma.hbm_to_vmem [thread:$0]  %s32, 768, %s34, [#allocation5], 384, 384, 24
    $region13: #{decoder_gru_forward.1} parent=1 // pred_fallthru
      _
    // Predicated region
    $region14: #{decoder_gru_forward.1} parent=1 // pred_check
      _
    $region15: #{decoder_gru_forward.1} parent=1 // pred_check_branch
      %41 = sbr.rel (0) target = $region17
    $region16: #{decoder_gru_forward.1} parent=1 // pred_region
      %43 = vsyncadd [#allocation8], 0
      %s44 = sshll.u32 %s3, 4
      %s45 = int_to_ptr.hbm [resolvable:$true] %s44
      %s46 = sshll.u32 [#allocation7], 4
      %s47 = int_to_ptr.vmem [resolvable:$true] %s46
      %52 = dma.hbm_to_vmem [thread:$0]  %s45, 6144, %s47, [#allocation8], 384, 384, 24
    $region17: #{decoder_gru_forward.1} parent=1 // pred_fallthru
      _
    // Predicated region
    $region18: #{decoder_gru_forward.1} parent=1 // pred_check
      _
    $region19: #{decoder_gru_forward.1} parent=1 // pred_check_branch
      %54 = sbr.rel (0) target = $region21
    $region20: #{decoder_gru_forward.1} parent=1 // pred_region
      _
    $region21: #{decoder_gru_forward.1} parent=1 // pred_fallthru
      _
    // Predicated region
    $region22: #{decoder_gru_forward.1} parent=1 // pred_check
      _
    $region23: #{decoder_gru_forward.1} parent=1 // pred_check_branch
      %56 = sbr.rel (0) target = $region25
    $region24: #{decoder_gru_forward.1} parent=1 // pred_region
      _
    $region25: #{decoder_gru_forward.1} parent=1 // pred_fallthru
      _
    // Predicated region
    $region26: #{decoder_gru_forward.1} parent=1 // pred_check
      _
    $region27: #{decoder_gru_forward.1} parent=1 // pred_check_branch
      %58 = sbr.rel (0) target = $region29
    $region28: #{decoder_gru_forward.1} parent=1 // pred_region
      %60 = vsyncadd [#allocation8], 0
      %s61 = sshll.u32 %s6, 4
      %s62 = int_to_ptr.hbm [resolvable:$true] %s61
      %s63 = sshll.u32 [#allocation9], 4
      %s64 = int_to_ptr.vmem [resolvable:$true] %s63
      %69 = dma.hbm_to_vmem [thread:$0]  %s62, 6144, %s64, [#allocation8], 384, 384, 24
    $region29: #{decoder_gru_forward.1} parent=1 // pred_fallthru
      _
    // Predicated region
    $region30: #{decoder_gru_forward.1} parent=1 // pred_check
      _
    $region31: #{decoder_gru_forward.1} parent=1 // pred_check_branch
      %71 = sbr.rel (0) target = $region33
    $region32: #{decoder_gru_forward.1} parent=1 // pred_region
      %73 = vsyncadd [#allocation11], 0
      %s74 = sshll.u32 %s7, 4
      %s75 = int_to_ptr.hbm [resolvable:$true] %s74
      %s76 = sshll.u32 [#allocation10], 4
      %s77 = int_to_ptr.vmem [resolvable:$true] %s76
      %82 = dma.hbm_to_vmem [thread:$0]  %s75, 6144, %s77, [#allocation11], 384, 384, 24
    $region33: #{decoder_gru_forward.1} parent=1 // pred_fallthru
      _
    // Predicated region
    $region34: #{decoder_gru_forward.1} parent=1 // pred_check
      _
    $region35: #{decoder_gru_forward.1} parent=1 // pred_check_branch
      %84 = sbr.rel (0) target = $region37
    $region36: #{decoder_gru_forward.1} parent=1 // pred_region
      _
    $region37: #{decoder_gru_forward.1} parent=1 // pred_fallthru
      _
    // Predicated region
    $region38: #{decoder_gru_forward.1} parent=1 // pred_check
      _
    $region39: #{decoder_gru_forward.1} parent=1 // pred_check_branch
      %86 = sbr.rel (0) target = $region41
    $region40: #{decoder_gru_forward.1} parent=1 // pred_region
      _
    $region41: #{decoder_gru_forward.1} parent=1 // pred_fallthru
      _
    // Predicated region
    $region42: #{decoder_gru_forward.1} parent=1 // pred_check
      _
    $region43: #{decoder_gru_forward.1} parent=1 // pred_check_branch
      %88 = sbr.rel (0) target = $region45
    $region44: #{decoder_gru_forward.1} parent=1 // pred_region
      %90 = vsyncadd [#allocation11], 0
      %s91 = sshll.u32 %s10, 4
      %s92 = int_to_ptr.hbm [resolvable:$true] %s91
      %s93 = sshll.u32 [#allocation12], 4
      %s94 = int_to_ptr.vmem [resolvable:$true] %s93
      %99 = dma.hbm_to_vmem [thread:$0]  %s92, 2048, %s94, [#allocation11], 128, 128, 8
    $region45: #{decoder_gru_forward.1} parent=1 // pred_fallthru
      _
    // Predicated region
    $region46: #{decoder_gru_forward.1} parent=1 // pred_check
      _
    $region47: #{decoder_gru_forward.1} parent=1 // pred_check_branch
      %101 = sbr.rel (0) target = $region49
    $region48: #{decoder_gru_forward.1} parent=1 // pred_region
      _
    $region49: #{decoder_gru_forward.1} parent=1 // pred_fallthru
      _
    // Predicated region
    $region50: #{decoder_gru_forward.1} parent=1 // pred_check
      _
    $region51: #{decoder_gru_forward.1} parent=1 // pred_check_branch
      %103 = sbr.rel (0) target = $region53
    $region52: #{decoder_gru_forward.1} parent=1 // pred_region
      %105 = dma.done [#allocation5], 768
    $region53: #{decoder_gru_forward.1} parent=1 // pred_fallthru
      _
    // Predicated region
    $region54: #{decoder_gru_forward.1} parent=1 // pred_check
      _
    $region55: #{decoder_gru_forward.1} parent=1 // pred_check_branch
      %107 = sbr.rel (0) target = $region57
    $region56: #{decoder_gru_forward.1} parent=1 // pred_region
      %109 = dma.done [#allocation8], 6144
    $region57: #{decoder_gru_forward.1} parent=1 // pred_fallthru
      _
    // Predicated region
    $region58: #{decoder_gru_forward.1} parent=1 // pred_check
      _
    $region59: #{decoder_gru_forward.1} parent=1 // pred_check_branch
      %111 = sbr.rel (0) target = $region61
    $region60: #{decoder_gru_forward.1} parent=1 // pred_region
      %113 = dma.done [#allocation8], 6144
    $region61: #{decoder_gru_forward.1} parent=1 // pred_fallthru
      _
    // Predicated region
    $region62: #{decoder_gru_forward.1} parent=1 // pred_check
      _
    $region63: #{decoder_gru_forward.1} parent=1 // pred_check_branch
      %115 = sbr.rel (0) target = $region65
    $region64: #{decoder_gru_forward.1} parent=1 // pred_region
      %117 = dma.done [#allocation11], 6144
    $region65: #{decoder_gru_forward.1} parent=1 // pred_fallthru
      _
    // Predicated region
    $region66: #{decoder_gru_forward.1} parent=1 // pred_check
      _
    $region67: #{decoder_gru_forward.1} parent=1 // pred_check_branch
      %119 = sbr.rel (0) target = $region69
    $region68: #{decoder_gru_forward.1} parent=1 // pred_region
      %121 = dma.done [#allocation11], 2048
    $region69: #{decoder_gru_forward.1} parent=1 // pred_fallthru
      _
    %v122 = vld [vmem:[%s0] sm:$0xff]
    %v123 = vld [vmem:[%s0 + $0x8] sm:$0xff]
    %v124 = vld [vmem:[#allocation4] sm:$0xff]
    %v125 = vld [vmem:[#allocation4 + $0x8] sm:$0xff]
    %v126 = vld [vmem:[#allocation4 + $0x10] sm:$0xff]
    %v127 = vld [vmem:[#allocation4 + $0x18] sm:$0xff]
    %v128 = vld [vmem:[#allocation4 + $0x20] sm:$0xff]
    %v129 = vld [vmem:[#allocation4 + $0x28] sm:$0xff]
    %v130 = vld [vmem:[%s4] sm:$0x7]
    %v132 = vperm.slane %v130, 0
    %v133 = vperm.slane %v130, 1
    %v134 = vperm.slane %v130, 2
    %vm138 = vcmask 130048
    %v140 = vsel %vm138, %v122, 0
    %v143 = vsel %vm138, %v123, 0
    %145 = vmatpush.msra.mxu0 0.0
    %146 = vmatpush.msra.mxu0 0.0
    %147 = vmatpush.msra.mxu0 0.0
    %148 = vmatpush.msra.mxu0 0.0
    %149 = vmatpush.msra.mxu0 0.0
    %150 = vmatpush.msra.mxu0 0.0
    %151 = vmatpush.msra.mxu0 0.0
    %152 = vmatpush.msra.mxu0 0.0
    %153 = vmatpush.msra.mxu0 0.0
    %154 = vmatpush.msra.mxu0 0.0
    %155 = vmatpush.msra.mxu0 0.0
    %156 = vmatpush.msra.mxu0 0.0
    %157 = vmatpush.msra.mxu0 0.0
    %158 = vmatpush.msra.mxu0 0.0
    %159 = vmatpush.msra.mxu0 %v127
    %160 = vmatpush.msra.mxu0 %v124
    %161 = vmatmul.f32.gmra.mxu0 %v140
    %v162 = vpop.f32.mrf.mxu0
    %v163 = vadd.f32 %v132, %v162
    %164 = vmatmul.f32.gmra.mxu0 %v143
    %v165 = vpop.f32.mrf.mxu0
    %v166 = vadd.f32 %v132, %v165
    %167 = vdwg.mxu0
    %168 = vmatpush.msra.mxu0 0.0
    %169 = vmatpush.msra.mxu0 0.0
    %170 = vmatpush.msra.mxu0 0.0
    %171 = vmatpush.msra.mxu0 0.0
    %172 = vmatpush.msra.mxu0 0.0
    %173 = vmatpush.msra.mxu0 0.0
    %174 = vmatpush.msra.mxu0 0.0
    %175 = vmatpush.msra.mxu0 0.0
    %176 = vmatpush.msra.mxu0 0.0
    %177 = vmatpush.msra.mxu0 0.0
    %178 = vmatpush.msra.mxu0 0.0
    %179 = vmatpush.msra.mxu0 0.0
    %180 = vmatpush.msra.mxu0 0.0
    %181 = vmatpush.msra.mxu0 0.0
    %182 = vmatpush.msra.mxu0 %v128
    %183 = vmatpush.msra.mxu0 %v125
    %184 = vmatmul.f32.gmra.mxu0 %v140
    %v185 = vpop.f32.mrf.mxu0
    %v186 = vadd.f32 %v133, %v185
    %187 = vmatmul.f32.gmra.mxu0 %v143
    %v188 = vpop.f32.mrf.mxu0
    %v189 = vadd.f32 %v133, %v188
    %190 = vdwg.mxu0
    %191 = vmatpush.msra.mxu0 0.0
    %192 = vmatpush.msra.mxu0 0.0
    %193 = vmatpush.msra.mxu0 0.0
    %194 = vmatpush.msra.mxu0 0.0
    %195 = vmatpush.msra.mxu0 0.0
    %196 = vmatpush.msra.mxu0 0.0
    %197 = vmatpush.msra.mxu0 0.0
    %198 = vmatpush.msra.mxu0 0.0
    %199 = vmatpush.msra.mxu0 0.0
    %200 = vmatpush.msra.mxu0 0.0
    %201 = vmatpush.msra.mxu0 0.0
    %202 = vmatpush.msra.mxu0 0.0
    %203 = vmatpush.msra.mxu0 0.0
    %204 = vmatpush.msra.mxu0 0.0
    %205 = vmatpush.msra.mxu0 %v129
    %206 = vmatpush.msra.mxu0 %v126
    %207 = vmatmul.f32.gmra.mxu0 %v140
    %v208 = vpop.f32.mrf.mxu0
    %v209 = vadd.f32 %v134, %v208
    %210 = vmatmul.f32.gmra.mxu0 %v143
    %v211 = vpop.f32.mrf.mxu0
    %v212 = vadd.f32 %v134, %v211
    %213 = vdwg.mxu0
    %214 = vst [vmem:[#allocation2] sm:$0xff] %v163
    %215 = vst [vmem:[#allocation2 + $0x8] sm:$0xff] %v186
    %216 = vst [vmem:[#allocation2 + $0x10] sm:$0xff] %v209
    %217 = vst [vmem:[#allocation2 + $0x18] sm:$0xff] %v166
    %218 = vst [vmem:[#allocation2 + $0x20] sm:$0xff] %v189
    %219 = vst [vmem:[#allocation2 + $0x28] sm:$0xff] %v212
    %v220 = vld [vmem:[%s1] sm:$0x3]
    %s221 = scalar_lea.vmem %s1, 2
    %v222 = vld [vmem:[%s221] sm:$0x3]
    %v223 = vld [vmem:[#allocation2] sm:$0x3]
    %v224 = vld [vmem:[#allocation2 + $0x8] sm:$0x3]
    %v225 = vld [vmem:[#allocation2 + $0x10] sm:$0x3]
    %v226 = vld [vmem:[#allocation7] sm:$0xff]
    %v227 = vld [vmem:[#allocation7 + $0x8] sm:$0xff]
    %v228 = vld [vmem:[#allocation7 + $0x10] sm:$0xff]
    %v229 = vld [vmem:[#allocation7 + $0x18] sm:$0xff]
    %v230 = vld [vmem:[#allocation7 + $0x20] sm:$0xff]
    %v231 = vld [vmem:[#allocation7 + $0x28] sm:$0xff]
    %v232 = vld [vmem:[#allocation7 + $0x30] sm:$0xff]
    %v233 = vld [vmem:[#allocation7 + $0x38] sm:$0xff]
    %v234 = vld [vmem:[#allocation7 + $0x40] sm:$0xff]
    %v235 = vld [vmem:[#allocation7 + $0x48] sm:$0xff]
    %v236 = vld [vmem:[#allocation7 + $0x50] sm:$0xff]
    %v237 = vld [vmem:[#allocation7 + $0x58] sm:$0xff]
    %v238 = vld [vmem:[#allocation7 + $0x60] sm:$0xff]
    %v239 = vld [vmem:[#allocation7 + $0x68] sm:$0xff]
    %v240 = vld [vmem:[#allocation7 + $0x70] sm:$0xff]
    %v241 = vld [vmem:[#allocation7 + $0x78] sm:$0xff]
    %v242 = vld [vmem:[#allocation7 + $0x80] sm:$0xff]
    %v243 = vld [vmem:[#allocation7 + $0x88] sm:$0xff]
    %v244 = vld [vmem:[#allocation7 + $0x90] sm:$0xff]
    %v245 = vld [vmem:[#allocation7 + $0x98] sm:$0xff]
    %v246 = vld [vmem:[#allocation7 + $0xa0] sm:$0xff]
    %v247 = vld [vmem:[#allocation7 + $0xa8] sm:$0xff]
    %v248 = vld [vmem:[#allocation7 + $0xb0] sm:$0xff]
    %v249 = vld [vmem:[#allocation7 + $0xb8] sm:$0xff]
    %v250 = vld [vmem:[#allocation7 + $0xc0] sm:$0xff]
    %v251 = vld [vmem:[#allocation7 + $0xc8] sm:$0xff]
    %v252 = vld [vmem:[#allocation7 + $0xd0] sm:$0xff]
    %v253 = vld [vmem:[#allocation7 + $0xd8] sm:$0xff]
    %v254 = vld [vmem:[#allocation7 + $0xe0] sm:$0xff]
    %v255 = vld [vmem:[#allocation7 + $0xe8] sm:$0xff]
    %v256 = vld [vmem:[#allocation7 + $0xf0] sm:$0xff]
    %v257 = vld [vmem:[#allocation7 + $0xf8] sm:$0xff]
    %v258 = vld [vmem:[#allocation7 + $0x100] sm:$0xff]
    %v259 = vld [vmem:[#allocation7 + $0x108] sm:$0xff]
    %v260 = vld [vmem:[#allocation7 + $0x110] sm:$0xff]
    %v261 = vld [vmem:[#allocation7 + $0x118] sm:$0xff]
    %v262 = vld [vmem:[#allocation7 + $0x120] sm:$0xff]
    %v263 = vld [vmem:[#allocation7 + $0x128] sm:$0xff]
    %v264 = vld [vmem:[#allocation7 + $0x130] sm:$0xff]
    %v265 = vld [vmem:[#allocation7 + $0x138] sm:$0xff]
    %v266 = vld [vmem:[#allocation7 + $0x140] sm:$0xff]
    %v267 = vld [vmem:[#allocation7 + $0x148] sm:$0xff]
    %v268 = vld [vmem:[#allocation7 + $0x150] sm:$0xff]
    %v269 = vld [vmem:[#allocation7 + $0x158] sm:$0xff]
    %v270 = vld [vmem:[#allocation7 + $0x160] sm:$0xff]
    %v271 = vld [vmem:[#allocation7 + $0x168] sm:$0xff]
    %v272 = vld [vmem:[#allocation7 + $0x170] sm:$0xff]
    %v273 = vld [vmem:[#allocation7 + $0x178] sm:$0xff]
    %274 = vmatpush.msra.mxu0 %v271
    %275 = vmatpush.msra.mxu0 %v268
    %276 = vmatpush.msra.mxu0 %v265
    %277 = vmatpush.msra.mxu0 %v262
    %278 = vmatpush.msra.mxu0 %v259
    %279 = vmatpush.msra.mxu0 %v256
    %280 = vmatpush.msra.mxu0 %v253
    %281 = vmatpush.msra.mxu0 %v250
    %282 = vmatpush.msra.mxu0 %v247
    %283 = vmatpush.msra.mxu0 %v244
    %284 = vmatpush.msra.mxu0 %v241
    %285 = vmatpush.msra.mxu0 %v238
    %286 = vmatpush.msra.mxu0 %v235
    %287 = vmatpush.msra.mxu0 %v232
    %288 = vmatpush.msra.mxu0 %v229
    %289 = vmatpush.msra.mxu0 %v226
    %290 = vmatmul.f32.gmra.mxu0 %v220
    %v291 = vpop.f32.mrf.mxu0
    %v292 = vadd.f32 0.0, %v291
    %293 = vdwg.mxu0
    %294 = vmatpush.msra.mxu0 %v272
    %295 = vmatpush.msra.mxu0 %v269
    %296 = vmatpush.msra.mxu0 %v266
    %297 = vmatpush.msra.mxu0 %v263
    %298 = vmatpush.msra.mxu0 %v260
    %299 = vmatpush.msra.mxu0 %v257
    %300 = vmatpush.msra.mxu0 %v254
    %301 = vmatpush.msra.mxu0 %v251
    %302 = vmatpush.msra.mxu0 %v248
    %303 = vmatpush.msra.mxu0 %v245
    %304 = vmatpush.msra.mxu0 %v242
    %305 = vmatpush.msra.mxu0 %v239
    %306 = vmatpush.msra.mxu0 %v236
    %307 = vmatpush.msra.mxu0 %v233
    %308 = vmatpush.msra.mxu0 %v230
    %309 = vmatpush.msra.mxu0 %v227
    %310 = vmatmul.f32.gmra.mxu0 %v220
    %v311 = vpop.f32.mrf.mxu0
    %v312 = vadd.f32 0.0, %v311
    %313 = vdwg.mxu0
    %314 = vmatpush.msra.mxu0 %v273
    %315 = vmatpush.msra.mxu0 %v270
    %316 = vmatpush.msra.mxu0 %v267
    %317 = vmatpush.msra.mxu0 %v264
    %318 = vmatpush.msra.mxu0 %v261
    %319 = vmatpush.msra.mxu0 %v258
    %320 = vmatpush.msra.mxu0 %v255
    %321 = vmatpush.msra.mxu0 %v252
    %322 = vmatpush.msra.mxu0 %v249
    %323 = vmatpush.msra.mxu0 %v246
    %324 = vmatpush.msra.mxu0 %v243
    %325 = vmatpush.msra.mxu0 %v240
    %326 = vmatpush.msra.mxu0 %v237
    %327 = vmatpush.msra.mxu0 %v234
    %328 = vmatpush.msra.mxu0 %v231
    %329 = vmatpush.msra.mxu0 %v228
    %330 = vmatmul.f32.gmra.mxu0 %v220
    %v331 = vpop.f32.mrf.mxu0
    %v332 = vadd.f32 0.0, %v331
    %333 = vdwg.mxu0
    %v334 = vld [vmem:[%s5] sm:$0x1]
    %v335 = vadd.f32 %v223, %v292
    %v336 = vadd.f32 %v224, %v312
    %v337 = vxor.u32 %v335, 2147483648
    %v338 = vxor.u32 %v336, 2147483648
    %v339 = vmul.f32 %v337, 1.442695
    %v340 = vpow.pop %v339
    %v341 = vmul.f32 %v338, 1.442695
    %v342 = vpow.pop %v341
    %v343 = vadd.f32 %v340, 1.0
    %v344 = vadd.f32 %v342, 1.0
    %v345 = vrcp.pop %v343
    %v346 = vmul.f32 %v343, %v345
    %v347 = vsub.f32 1.0, %v346
    %v348 = vmul.f32 %v345, %v347
    %v349 = vadd.f32 %v345, %v348
    %vm350 = vweird.f32 %v343
    %vm351 = vweird.f32 %v345
    %vm352 = vmor %vm350, %vm351
    %v353 = vsel %vm352, %v345, %v349
    %v354 = vand.u32 2147483647, %v343
    %vm355 = vcmp.eq.f32.partialorder %v354, 8.507059e+37
    %v356 = vand.u32 %v343, 2147483648
    %v357 = vor.u32 1.1754944e-38, %v356
    %v358 = vsel %vm355, %v357, %v353
    %v359 = vmul.f32 1.0, %v358
    %v360 = vrcp.pop %v344
    %v361 = vmul.f32 %v344, %v360
    %v362 = vsub.f32 1.0, %v361
    %v363 = vmul.f32 %v360, %v362
    %v364 = vadd.f32 %v360, %v363
    %vm365 = vweird.f32 %v344
    %vm366 = vweird.f32 %v360
    %vm367 = vmor %vm365, %vm366
    %v368 = vsel %vm367, %v360, %v364
    %v369 = vand.u32 2147483647, %v344
    %vm370 = vcmp.eq.f32.partialorder %v369, 8.507059e+37
    %v371 = vand.u32 %v344, 2147483648
    %v372 = vor.u32 1.1754944e-38, %v371
    %v373 = vsel %vm370, %v372, %v368
    %v374 = vmul.f32 1.0, %v373
    %v376 = vperm.slane %v334, 0
    %v378 = vadd.f32 %v332, %v376
    %v379 = vmul.f32 %v359, %v378
    %v380 = vadd.f32 %v225, %v379
    %v381 = vtanh.pop %v380
    %v382 = vsub.f32 1.0, %v374
    %v383 = vmul.f32 %v382, %v381
    %v384 = vmul.f32 %v374, %v220
    %v385 = vadd.f32 %v383, %v384
    %v386 = vld [vmem:[#allocation2] sm:$0xc]
    %v387 = vld [vmem:[#allocation2 + $0x8] sm:$0xc]
    %v388 = vld [vmem:[#allocation2 + $0x10] sm:$0xc]
    %389 = vmatpush.msra.mxu0 %v271
    %390 = vmatpush.msra.mxu0 %v268
    %391 = vmatpush.msra.mxu0 %v265
    %392 = vmatpush.msra.mxu0 %v262
    %393 = vmatpush.msra.mxu0 %v259
    %394 = vmatpush.msra.mxu0 %v256
    %395 = vmatpush.msra.mxu0 %v253
    %396 = vmatpush.msra.mxu0 %v250
    %397 = vmatpush.msra.mxu0 %v247
    %398 = vmatpush.msra.mxu0 %v244
    %399 = vmatpush.msra.mxu0 %v241
    %400 = vmatpush.msra.mxu0 %v238
    %401 = vmatpush.msra.mxu0 %v235
    %402 = vmatpush.msra.mxu0 %v232
    %403 = vmatpush.msra.mxu0 %v229
    %404 = vmatpush.msra.mxu0 %v226
    %405 = vmatmul.f32.gmra.mxu0 %v385
    %v406 = vpop.f32.mrf.mxu0
    %v407 = vadd.f32 0.0, %v406
    %408 = vdwg.mxu0
    %409 = vmatpush.msra.mxu0 %v272
    %410 = vmatpush.msra.mxu0 %v269
    %411 = vmatpush.msra.mxu0 %v266
    %412 = vmatpush.msra.mxu0 %v263
    %413 = vmatpush.msra.mxu0 %v260
    %414 = vmatpush.msra.mxu0 %v257
    %415 = vmatpush.msra.mxu0 %v254
    %416 = vmatpush.msra.mxu0 %v251
    %417 = vmatpush.msra.mxu0 %v248
    %418 = vmatpush.msra.mxu0 %v245
    %419 = vmatpush.msra.mxu0 %v242
    %420 = vmatpush.msra.mxu0 %v239
    %421 = vmatpush.msra.mxu0 %v236
    %422 = vmatpush.msra.mxu0 %v233
    %423 = vmatpush.msra.mxu0 %v230
    %424 = vmatpush.msra.mxu0 %v227
    %425 = vmatmul.f32.gmra.mxu0 %v385
    %v426 = vpop.f32.mrf.mxu0
    %v427 = vadd.f32 0.0, %v426
    %428 = vdwg.mxu0
    %429 = vmatpush.msra.mxu0 %v273
    %430 = vmatpush.msra.mxu0 %v270
    %431 = vmatpush.msra.mxu0 %v267
    %432 = vmatpush.msra.mxu0 %v264
    %433 = vmatpush.msra.mxu0 %v261
    %434 = vmatpush.msra.mxu0 %v258
    %435 = vmatpush.msra.mxu0 %v255
    %436 = vmatpush.msra.mxu0 %v252
    %437 = vmatpush.msra.mxu0 %v249
    %438 = vmatpush.msra.mxu0 %v246
    %439 = vmatpush.msra.mxu0 %v243
    %440 = vmatpush.msra.mxu0 %v240
    %441 = vmatpush.msra.mxu0 %v237
    %442 = vmatpush.msra.mxu0 %v234
    %443 = vmatpush.msra.mxu0 %v231
    %444 = vmatpush.msra.mxu0 %v228
    %445 = vmatmul.f32.gmra.mxu0 %v385
    %v446 = vpop.f32.mrf.mxu0
    %v447 = vadd.f32 0.0, %v446
    %448 = vdwg.mxu0
    %v451 = vrot.slane %v407, 6
    %v452 = vrot.slane %v427, 6
    %v455 = vadd.f32 %v386, %v451
    %v456 = vadd.f32 %v387, %v452
    %v457 = vxor.u32 %v455, 2147483648
    %v458 = vxor.u32 %v456, 2147483648
    %v459 = vmul.f32 %v457, 1.442695
    %v460 = vpow.pop %v459
    %v461 = vmul.f32 %v458, 1.442695
    %v462 = vpow.pop %v461
    %v463 = vadd.f32 %v460, 1.0
    %v464 = vadd.f32 %v462, 1.0
    %v465 = vrcp.pop %v463
    %v466 = vmul.f32 %v463, %v465
    %v467 = vsub.f32 1.0, %v466
    %v468 = vmul.f32 %v465, %v467
    %v469 = vadd.f32 %v465, %v468
    %vm470 = vweird.f32 %v463
    %vm471 = vweird.f32 %v465
    %vm472 = vmor %vm470, %vm471
    %v473 = vsel %vm472, %v465, %v469
    %v474 = vand.u32 2147483647, %v463
    %vm475 = vcmp.eq.f32.partialorder %v474, 8.507059e+37
    %v476 = vand.u32 %v463, 2147483648
    %v477 = vor.u32 1.1754944e-38, %v476
    %v478 = vsel %vm475, %v477, %v473
    %v479 = vmul.f32 1.0, %v478
    %v480 = vrcp.pop %v464
    %v481 = vmul.f32 %v464, %v480
    %v482 = vsub.f32 1.0, %v481
    %v483 = vmul.f32 %v480, %v482
    %v484 = vadd.f32 %v480, %v483
    %vm485 = vweird.f32 %v464
    %vm486 = vweird.f32 %v480
    %vm487 = vmor %vm485, %vm486
    %v488 = vsel %vm487, %v480, %v484
    %v489 = vand.u32 2147483647, %v464
    %vm490 = vcmp.eq.f32.partialorder %v489, 8.507059e+37
    %v491 = vand.u32 %v464, 2147483648
    %v492 = vor.u32 1.1754944e-38, %v491
    %v493 = vsel %vm490, %v492, %v488
    %v494 = vmul.f32 1.0, %v493
    %v495 = vadd.f32 %v447, %v376
    %v497 = vrot.slane %v495, 6
    %v499 = vmul.f32 %v479, %v497
    %v500 = vadd.f32 %v388, %v499
    %v501 = vtanh.pop %v500
    %v502 = vsub.f32 1.0, %v494
    %v503 = vmul.f32 %v502, %v501
    %v505 = vrot.slane %v385, 6
    %v507 = vmul.f32 %v494, %v505
    %v508 = vadd.f32 %v503, %v507
    %v509 = vld [vmem:[#allocation9] sm:$0xff]
    %v510 = vld [vmem:[#allocation9 + $0x8] sm:$0xff]
    %v511 = vld [vmem:[#allocation9 + $0x10] sm:$0xff]
    %v512 = vld [vmem:[#allocation9 + $0x18] sm:$0xff]
    %v513 = vld [vmem:[#allocation9 + $0x20] sm:$0xff]
    %v514 = vld [vmem:[#allocation9 + $0x28] sm:$0xff]
    %v515 = vld [vmem:[#allocation9 + $0x30] sm:$0xff]
    %v516 = vld [vmem:[#allocation9 + $0x38] sm:$0xff]
    %v517 = vld [vmem:[#allocation9 + $0x40] sm:$0xff]
    %v518 = vld [vmem:[#allocation9 + $0x48] sm:$0xff]
    %v519 = vld [vmem:[#allocation9 + $0x50] sm:$0xff]
    %v520 = vld [vmem:[#allocation9 + $0x58] sm:$0xff]
    %v521 = vld [vmem:[#allocation9 + $0x60] sm:$0xff]
    %v522 = vld [vmem:[#allocation9 + $0x68] sm:$0xff]
    %v523 = vld [vmem:[#allocation9 + $0x70] sm:$0xff]
    %v524 = vld [vmem:[#allocation9 + $0x78] sm:$0xff]
    %v525 = vld [vmem:[#allocation9 + $0x80] sm:$0xff]
    %v526 = vld [vmem:[#allocation9 + $0x88] sm:$0xff]
    %v527 = vld [vmem:[#allocation9 + $0x90] sm:$0xff]
    %v528 = vld [vmem:[#allocation9 + $0x98] sm:$0xff]
    %v529 = vld [vmem:[#allocation9 + $0xa0] sm:$0xff]
    %v530 = vld [vmem:[#allocation9 + $0xa8] sm:$0xff]
    %v531 = vld [vmem:[#allocation9 + $0xb0] sm:$0xff]
    %v532 = vld [vmem:[#allocation9 + $0xb8] sm:$0xff]
    %v533 = vld [vmem:[#allocation9 + $0xc0] sm:$0xff]
    %v534 = vld [vmem:[#allocation9 + $0xc8] sm:$0xff]
    %v535 = vld [vmem:[#allocation9 + $0xd0] sm:$0xff]
    %v536 = vld [vmem:[#allocation9 + $0xd8] sm:$0xff]
    %v537 = vld [vmem:[#allocation9 + $0xe0] sm:$0xff]
    %v538 = vld [vmem:[#allocation9 + $0xe8] sm:$0xff]
    %v539 = vld [vmem:[#allocation9 + $0xf0] sm:$0xff]
    %v540 = vld [vmem:[#allocation9 + $0xf8] sm:$0xff]
    %v541 = vld [vmem:[#allocation9 + $0x100] sm:$0xff]
    %v542 = vld [vmem:[#allocation9 + $0x108] sm:$0xff]
    %v543 = vld [vmem:[#allocation9 + $0x110] sm:$0xff]
    %v544 = vld [vmem:[#allocation9 + $0x118] sm:$0xff]
    %v545 = vld [vmem:[#allocation9 + $0x120] sm:$0xff]
    %v546 = vld [vmem:[#allocation9 + $0x128] sm:$0xff]
    %v547 = vld [vmem:[#allocation9 + $0x130] sm:$0xff]
    %v548 = vld [vmem:[#allocation9 + $0x138] sm:$0xff]
    %v549 = vld [vmem:[#allocation9 + $0x140] sm:$0xff]
    %v550 = vld [vmem:[#allocation9 + $0x148] sm:$0xff]
    %v551 = vld [vmem:[#allocation9 + $0x150] sm:$0xff]
    %v552 = vld [vmem:[#allocation9 + $0x158] sm:$0xff]
    %v553 = vld [vmem:[#allocation9 + $0x160] sm:$0xff]
    %v554 = vld [vmem:[#allocation9 + $0x168] sm:$0xff]
    %v555 = vld [vmem:[#allocation9 + $0x170] sm:$0xff]
    %v556 = vld [vmem:[#allocation9 + $0x178] sm:$0xff]
    %v557 = vld [vmem:[%s8] sm:$0x7]
    %v559 = vperm.slane %v557, 0
    %v560 = vperm.slane %v557, 1
    %v561 = vperm.slane %v557, 2
    %565 = vmatpush.msra.mxu0 %v554
    %566 = vmatpush.msra.mxu0 %v551
    %567 = vmatpush.msra.mxu0 %v548
    %568 = vmatpush.msra.mxu0 %v545
    %569 = vmatpush.msra.mxu0 %v542
    %570 = vmatpush.msra.mxu0 %v539
    %571 = vmatpush.msra.mxu0 %v536
    %572 = vmatpush.msra.mxu0 %v533
    %573 = vmatpush.msra.mxu0 %v530
    %574 = vmatpush.msra.mxu0 %v527
    %575 = vmatpush.msra.mxu0 %v524
    %576 = vmatpush.msra.mxu0 %v521
    %577 = vmatpush.msra.mxu0 %v518
    %578 = vmatpush.msra.mxu0 %v515
    %579 = vmatpush.msra.mxu0 %v512
    %580 = vmatpush.msra.mxu0 %v509
    %581 = vmatmul.f32.gmra.mxu0 %v385
    %v582 = vpop.f32.mrf.mxu0
    %v583 = vadd.f32 %v559, %v582
    %584 = vdwg.mxu0
    %585 = vmatpush.msra.mxu0 %v555
    %586 = vmatpush.msra.mxu0 %v552
    %587 = vmatpush.msra.mxu0 %v549
    %588 = vmatpush.msra.mxu0 %v546
    %589 = vmatpush.msra.mxu0 %v543
    %590 = vmatpush.msra.mxu0 %v540
    %591 = vmatpush.msra.mxu0 %v537
    %592 = vmatpush.msra.mxu0 %v534
    %593 = vmatpush.msra.mxu0 %v531
    %594 = vmatpush.msra.mxu0 %v528
    %595 = vmatpush.msra.mxu0 %v525
    %596 = vmatpush.msra.mxu0 %v522
    %597 = vmatpush.msra.mxu0 %v519
    %598 = vmatpush.msra.mxu0 %v516
    %599 = vmatpush.msra.mxu0 %v513
    %600 = vmatpush.msra.mxu0 %v510
    %601 = vmatmul.f32.gmra.mxu0 %v385
    %v602 = vpop.f32.mrf.mxu0
    %v603 = vadd.f32 %v560, %v602
    %604 = vdwg.mxu0
    %605 = vmatpush.msra.mxu0 %v556
    %606 = vmatpush.msra.mxu0 %v553
    %607 = vmatpush.msra.mxu0 %v550
    %608 = vmatpush.msra.mxu0 %v547
    %609 = vmatpush.msra.mxu0 %v544
    %610 = vmatpush.msra.mxu0 %v541
    %611 = vmatpush.msra.mxu0 %v538
    %612 = vmatpush.msra.mxu0 %v535
    %613 = vmatpush.msra.mxu0 %v532
    %614 = vmatpush.msra.mxu0 %v529
    %615 = vmatpush.msra.mxu0 %v526
    %616 = vmatpush.msra.mxu0 %v523
    %617 = vmatpush.msra.mxu0 %v520
    %618 = vmatpush.msra.mxu0 %v517
    %619 = vmatpush.msra.mxu0 %v514
    %620 = vmatpush.msra.mxu0 %v511
    %621 = vmatmul.f32.gmra.mxu0 %v385
    %v622 = vpop.f32.mrf.mxu0
    %v623 = vadd.f32 %v561, %v622
    %624 = vdwg.mxu0
    %v625 = vld [vmem:[#allocation10] sm:$0xff]
    %v626 = vld [vmem:[#allocation10 + $0x8] sm:$0xff]
    %v627 = vld [vmem:[#allocation10 + $0x10] sm:$0xff]
    %v628 = vld [vmem:[#allocation10 + $0x18] sm:$0xff]
    %v629 = vld [vmem:[#allocation10 + $0x20] sm:$0xff]
    %v630 = vld [vmem:[#allocation10 + $0x28] sm:$0xff]
    %v631 = vld [vmem:[#allocation10 + $0x30] sm:$0xff]
    %v632 = vld [vmem:[#allocation10 + $0x38] sm:$0xff]
    %v633 = vld [vmem:[#allocation10 + $0x40] sm:$0xff]
    %v634 = vld [vmem:[#allocation10 + $0x48] sm:$0xff]
    %v635 = vld [vmem:[#allocation10 + $0x50] sm:$0xff]
    %v636 = vld [vmem:[#allocation10 + $0x58] sm:$0xff]
    %v637 = vld [vmem:[#allocation10 + $0x60] sm:$0xff]
    %v638 = vld [vmem:[#allocation10 + $0x68] sm:$0xff]
    %v639 = vld [vmem:[#allocation10 + $0x70] sm:$0xff]
    %v640 = vld [vmem:[#allocation10 + $0x78] sm:$0xff]
    %v641 = vld [vmem:[#allocation10 + $0x80] sm:$0xff]
    %v642 = vld [vmem:[#allocation10 + $0x88] sm:$0xff]
    %v643 = vld [vmem:[#allocation10 + $0x90] sm:$0xff]
    %v644 = vld [vmem:[#allocation10 + $0x98] sm:$0xff]
    %v645 = vld [vmem:[#allocation10 + $0xa0] sm:$0xff]
    %v646 = vld [vmem:[#allocation10 + $0xa8] sm:$0xff]
    %v647 = vld [vmem:[#allocation10 + $0xb0] sm:$0xff]
    %v648 = vld [vmem:[#allocation10 + $0xb8] sm:$0xff]
    %v649 = vld [vmem:[#allocation10 + $0xc0] sm:$0xff]
    %v650 = vld [vmem:[#allocation10 + $0xc8] sm:$0xff]
    %v651 = vld [vmem:[#allocation10 + $0xd0] sm:$0xff]
    %v652 = vld [vmem:[#allocation10 + $0xd8] sm:$0xff]
    %v653 = vld [vmem:[#allocation10 + $0xe0] sm:$0xff]
    %v654 = vld [vmem:[#allocation10 + $0xe8] sm:$0xff]
    %v655 = vld [vmem:[#allocation10 + $0xf0] sm:$0xff]
    %v656 = vld [vmem:[#allocation10 + $0xf8] sm:$0xff]
    %v657 = vld [vmem:[#allocation10 + $0x100] sm:$0xff]
    %v658 = vld [vmem:[#allocation10 + $0x108] sm:$0xff]
    %v659 = vld [vmem:[#allocation10 + $0x110] sm:$0xff]
    %v660 = vld [vmem:[#allocation10 + $0x118] sm:$0xff]
    %v661 = vld [vmem:[#allocation10 + $0x120] sm:$0xff]
    %v662 = vld [vmem:[#allocation10 + $0x128] sm:$0xff]
    %v663 = vld [vmem:[#allocation10 + $0x130] sm:$0xff]
    %v664 = vld [vmem:[#allocation10 + $0x138] sm:$0xff]
    %v665 = vld [vmem:[#allocation10 + $0x140] sm:$0xff]
    %v666 = vld [vmem:[#allocation10 + $0x148] sm:$0xff]
    %v667 = vld [vmem:[#allocation10 + $0x150] sm:$0xff]
    %v668 = vld [vmem:[#allocation10 + $0x158] sm:$0xff]
    %v669 = vld [vmem:[#allocation10 + $0x160] sm:$0xff]
    %v670 = vld [vmem:[#allocation10 + $0x168] sm:$0xff]
    %v671 = vld [vmem:[#allocation10 + $0x170] sm:$0xff]
    %v672 = vld [vmem:[#allocation10 + $0x178] sm:$0xff]
    %673 = vmatpush.msra.mxu0 %v670
    %674 = vmatpush.msra.mxu0 %v667
    %675 = vmatpush.msra.mxu0 %v664
    %676 = vmatpush.msra.mxu0 %v661
    %677 = vmatpush.msra.mxu0 %v658
    %678 = vmatpush.msra.mxu0 %v655
    %679 = vmatpush.msra.mxu0 %v652
    %680 = vmatpush.msra.mxu0 %v649
    %681 = vmatpush.msra.mxu0 %v646
    %682 = vmatpush.msra.mxu0 %v643
    %683 = vmatpush.msra.mxu0 %v640
    %684 = vmatpush.msra.mxu0 %v637
    %685 = vmatpush.msra.mxu0 %v634
    %686 = vmatpush.msra.mxu0 %v631
    %687 = vmatpush.msra.mxu0 %v628
    %688 = vmatpush.msra.mxu0 %v625
    %689 = vmatmul.f32.gmra.mxu0 %v222
    %v690 = vpop.f32.mrf.mxu0
    %v691 = vadd.f32 0.0, %v690
    %692 = vdwg.mxu0
    %693 = vmatpush.msra.mxu0 %v671
    %694 = vmatpush.msra.mxu0 %v668
    %695 = vmatpush.msra.mxu0 %v665
    %696 = vmatpush.msra.mxu0 %v662
    %697 = vmatpush.msra.mxu0 %v659
    %698 = vmatpush.msra.mxu0 %v656
    %699 = vmatpush.msra.mxu0 %v653
    %700 = vmatpush.msra.mxu0 %v650
    %701 = vmatpush.msra.mxu0 %v647
    %702 = vmatpush.msra.mxu0 %v644
    %703 = vmatpush.msra.mxu0 %v641
    %704 = vmatpush.msra.mxu0 %v638
    %705 = vmatpush.msra.mxu0 %v635
    %706 = vmatpush.msra.mxu0 %v632
    %707 = vmatpush.msra.mxu0 %v629
    %708 = vmatpush.msra.mxu0 %v626
    %709 = vmatmul.f32.gmra.mxu0 %v222
    %v710 = vpop.f32.mrf.mxu0
    %v711 = vadd.f32 0.0, %v710
    %712 = vdwg.mxu0
    %713 = vmatpush.msra.mxu0 %v672
    %714 = vmatpush.msra.mxu0 %v669
    %715 = vmatpush.msra.mxu0 %v666
    %716 = vmatpush.msra.mxu0 %v663
    %717 = vmatpush.msra.mxu0 %v660
    %718 = vmatpush.msra.mxu0 %v657
    %719 = vmatpush.msra.mxu0 %v654
    %720 = vmatpush.msra.mxu0 %v651
    %721 = vmatpush.msra.mxu0 %v648
    %722 = vmatpush.msra.mxu0 %v645
    %723 = vmatpush.msra.mxu0 %v642
    %724 = vmatpush.msra.mxu0 %v639
    %725 = vmatpush.msra.mxu0 %v636
    %726 = vmatpush.msra.mxu0 %v633
    %727 = vmatpush.msra.mxu0 %v630
    %728 = vmatpush.msra.mxu0 %v627
    %729 = vmatmul.f32.gmra.mxu0 %v222
    %v730 = vpop.f32.mrf.mxu0
    %v731 = vadd.f32 0.0, %v730
    %732 = vdwg.mxu0
    %v733 = vld [vmem:[%s9] sm:$0x1]
    %v734 = vadd.f32 %v583, %v691
    %v735 = vadd.f32 %v603, %v711
    %v736 = vxor.u32 %v734, 2147483648
    %v737 = vxor.u32 %v735, 2147483648
    %v738 = vmul.f32 %v736, 1.442695
    %v739 = vpow.pop %v738
    %v740 = vmul.f32 %v737, 1.442695
    %v741 = vpow.pop %v740
    %v742 = vadd.f32 %v739, 1.0
    %v743 = vadd.f32 %v741, 1.0
    %v744 = vrcp.pop %v742
    %v745 = vmul.f32 %v742, %v744
    %v746 = vsub.f32 1.0, %v745
    %v747 = vmul.f32 %v744, %v746
    %v748 = vadd.f32 %v744, %v747
    %vm749 = vweird.f32 %v742
    %vm750 = vweird.f32 %v744
    %vm751 = vmor %vm749, %vm750
    %v752 = vsel %vm751, %v744, %v748
    %v753 = vand.u32 2147483647, %v742
    %vm754 = vcmp.eq.f32.partialorder %v753, 8.507059e+37
    %v755 = vand.u32 %v742, 2147483648
    %v756 = vor.u32 1.1754944e-38, %v755
    %v757 = vsel %vm754, %v756, %v752
    %v758 = vmul.f32 1.0, %v757
    %v759 = vrcp.pop %v743
    %v760 = vmul.f32 %v743, %v759
    %v761 = vsub.f32 1.0, %v760
    %v762 = vmul.f32 %v759, %v761
    %v763 = vadd.f32 %v759, %v762
    %vm764 = vweird.f32 %v743
    %vm765 = vweird.f32 %v759
    %vm766 = vmor %vm764, %vm765
    %v767 = vsel %vm766, %v759, %v763
    %v768 = vand.u32 2147483647, %v743
    %vm769 = vcmp.eq.f32.partialorder %v768, 8.507059e+37
    %v770 = vand.u32 %v743, 2147483648
    %v771 = vor.u32 1.1754944e-38, %v770
    %v772 = vsel %vm769, %v771, %v767
    %v773 = vmul.f32 1.0, %v772
    %v775 = vperm.slane %v733, 0
    %v777 = vadd.f32 %v731, %v775
    %v778 = vmul.f32 %v758, %v777
    %v779 = vadd.f32 %v623, %v778
    %v780 = vtanh.pop %v779
    %v781 = vsub.f32 1.0, %v773
    %v782 = vmul.f32 %v781, %v780
    %v783 = vmul.f32 %v773, %v222
    %v784 = vadd.f32 %v782, %v783
    %785 = vst [vmem:[#allocation3] sm:$0x3] %v784
    %v786 = vld [vmem:[#allocation2] sm:$0x30]
    %v787 = vld [vmem:[#allocation2 + $0x8] sm:$0x30]
    %v788 = vld [vmem:[#allocation2 + $0x10] sm:$0x30]
    %v789 = vld [vmem:[#allocation7] sm:$0xff]
    %v790 = vld [vmem:[#allocation7 + $0x8] sm:$0xff]
    %v791 = vld [vmem:[#allocation7 + $0x10] sm:$0xff]
    %v792 = vld [vmem:[#allocation7 + $0x18] sm:$0xff]
    %v793 = vld [vmem:[#allocation7 + $0x20] sm:$0xff]
    %v794 = vld [vmem:[#allocation7 + $0x28] sm:$0xff]
    %v795 = vld [vmem:[#allocation7 + $0x30] sm:$0xff]
    %v796 = vld [vmem:[#allocation7 + $0x38] sm:$0xff]
    %v797 = vld [vmem:[#allocation7 + $0x40] sm:$0xff]
    %v798 = vld [vmem:[#allocation7 + $0x48] sm:$0xff]
    %v799 = vld [vmem:[#allocation7 + $0x50] sm:$0xff]
    %v800 = vld [vmem:[#allocation7 + $0x58] sm:$0xff]
    %v801 = vld [vmem:[#allocation7 + $0x60] sm:$0xff]
    %v802 = vld [vmem:[#allocation7 + $0x68] sm:$0xff]
    %v803 = vld [vmem:[#allocation7 + $0x70] sm:$0xff]
    %v804 = vld [vmem:[#allocation7 + $0x78] sm:$0xff]
    %v805 = vld [vmem:[#allocation7 + $0x80] sm:$0xff]
    %v806 = vld [vmem:[#allocation7 + $0x88] sm:$0xff]
    %v807 = vld [vmem:[#allocation7 + $0x90] sm:$0xff]
    %v808 = vld [vmem:[#allocation7 + $0x98] sm:$0xff]
    %v809 = vld [vmem:[#allocation7 + $0xa0] sm:$0xff]
    %v810 = vld [vmem:[#allocation7 + $0xa8] sm:$0xff]
    %v811 = vld [vmem:[#allocation7 + $0xb0] sm:$0xff]
    %v812 = vld [vmem:[#allocation7 + $0xb8] sm:$0xff]
    %v813 = vld [vmem:[#allocation7 + $0xc0] sm:$0xff]
    %v814 = vld [vmem:[#allocation7 + $0xc8] sm:$0xff]
    %v815 = vld [vmem:[#allocation7 + $0xd0] sm:$0xff]
    %v816 = vld [vmem:[#allocation7 + $0xd8] sm:$0xff]
    %v817 = vld [vmem:[#allocation7 + $0xe0] sm:$0xff]
    %v818 = vld [vmem:[#allocation7 + $0xe8] sm:$0xff]
    %v819 = vld [vmem:[#allocation7 + $0xf0] sm:$0xff]
    %v820 = vld [vmem:[#allocation7 + $0xf8] sm:$0xff]
    %v821 = vld [vmem:[#allocation7 + $0x100] sm:$0xff]
    %v822 = vld [vmem:[#allocation7 + $0x108] sm:$0xff]
    %v823 = vld [vmem:[#allocation7 + $0x110] sm:$0xff]
    %v824 = vld [vmem:[#allocation7 + $0x118] sm:$0xff]
    %v825 = vld [vmem:[#allocation7 + $0x120] sm:$0xff]
    %v826 = vld [vmem:[#allocation7 + $0x128] sm:$0xff]
    %v827 = vld [vmem:[#allocation7 + $0x130] sm:$0xff]
    %v828 = vld [vmem:[#allocation7 + $0x138] sm:$0xff]
    %v829 = vld [vmem:[#allocation7 + $0x140] sm:$0xff]
    %v830 = vld [vmem:[#allocation7 + $0x148] sm:$0xff]
    %v831 = vld [vmem:[#allocation7 + $0x150] sm:$0xff]
    %v832 = vld [vmem:[#allocation7 + $0x158] sm:$0xff]
    %v833 = vld [vmem:[#allocation7 + $0x160] sm:$0xff]
    %v834 = vld [vmem:[#allocation7 + $0x168] sm:$0xff]
    %v835 = vld [vmem:[#allocation7 + $0x170] sm:$0xff]
    %v836 = vld [vmem:[#allocation7 + $0x178] sm:$0xff]
    %v838 = vrot.slane %v508, 2
    %840 = vmatpush.msra.mxu0 %v834
    %841 = vmatpush.msra.mxu0 %v831
    %842 = vmatpush.msra.mxu0 %v828
    %843 = vmatpush.msra.mxu0 %v825
    %844 = vmatpush.msra.mxu0 %v822
    %845 = vmatpush.msra.mxu0 %v819
    %846 = vmatpush.msra.mxu0 %v816
    %847 = vmatpush.msra.mxu0 %v813
    %848 = vmatpush.msra.mxu0 %v810
    %849 = vmatpush.msra.mxu0 %v807
    %850 = vmatpush.msra.mxu0 %v804
    %851 = vmatpush.msra.mxu0 %v801
    %852 = vmatpush.msra.mxu0 %v798
    %853 = vmatpush.msra.mxu0 %v795
    %854 = vmatpush.msra.mxu0 %v792
    %855 = vmatpush.msra.mxu0 %v789
    %856 = vmatmul.f32.gmra.mxu0 %v838
    %v857 = vpop.f32.mrf.mxu0
    %v858 = vadd.f32 0.0, %v857
    %859 = vdwg.mxu0
    %860 = vmatpush.msra.mxu0 %v835
    %861 = vmatpush.msra.mxu0 %v832
    %862 = vmatpush.msra.mxu0 %v829
    %863 = vmatpush.msra.mxu0 %v826
    %864 = vmatpush.msra.mxu0 %v823
    %865 = vmatpush.msra.mxu0 %v820
    %866 = vmatpush.msra.mxu0 %v817
    %867 = vmatpush.msra.mxu0 %v814
    %868 = vmatpush.msra.mxu0 %v811
    %869 = vmatpush.msra.mxu0 %v808
    %870 = vmatpush.msra.mxu0 %v805
    %871 = vmatpush.msra.mxu0 %v802
    %872 = vmatpush.msra.mxu0 %v799
    %873 = vmatpush.msra.mxu0 %v796
    %874 = vmatpush.msra.mxu0 %v793
    %875 = vmatpush.msra.mxu0 %v790
    %876 = vmatmul.f32.gmra.mxu0 %v838
    %v877 = vpop.f32.mrf.mxu0
    %v878 = vadd.f32 0.0, %v877
    %879 = vdwg.mxu0
    %880 = vmatpush.msra.mxu0 %v836
    %881 = vmatpush.msra.mxu0 %v833
    %882 = vmatpush.msra.mxu0 %v830
    %883 = vmatpush.msra.mxu0 %v827
    %884 = vmatpush.msra.mxu0 %v824
    %885 = vmatpush.msra.mxu0 %v821
    %886 = vmatpush.msra.mxu0 %v818
    %887 = vmatpush.msra.mxu0 %v815
    %888 = vmatpush.msra.mxu0 %v812
    %889 = vmatpush.msra.mxu0 %v809
    %890 = vmatpush.msra.mxu0 %v806
    %891 = vmatpush.msra.mxu0 %v803
    %892 = vmatpush.msra.mxu0 %v800
    %893 = vmatpush.msra.mxu0 %v797
    %894 = vmatpush.msra.mxu0 %v794
    %895 = vmatpush.msra.mxu0 %v791
    %896 = vmatmul.f32.gmra.mxu0 %v838
    %v897 = vpop.f32.mrf.mxu0
    %v898 = vadd.f32 0.0, %v897
    %899 = vdwg.mxu0
    %v900 = vld [vmem:[%s5] sm:$0x1]
    %v903 = vrot.slane %v858, 4
    %v904 = vrot.slane %v878, 4
    %v907 = vadd.f32 %v786, %v903
    %v908 = vadd.f32 %v787, %v904
    %v909 = vxor.u32 %v907, 2147483648
    %v910 = vxor.u32 %v908, 2147483648
    %v911 = vmul.f32 %v909, 1.442695
    %v912 = vpow.pop %v911
    %v913 = vmul.f32 %v910, 1.442695
    %v914 = vpow.pop %v913
    %v915 = vadd.f32 %v912, 1.0
    %v916 = vadd.f32 %v914, 1.0
    %v917 = vrcp.pop %v915
    %v918 = vmul.f32 %v915, %v917
    %v919 = vsub.f32 1.0, %v918
    %v920 = vmul.f32 %v917, %v919
    %v921 = vadd.f32 %v917, %v920
    %vm922 = vweird.f32 %v915
    %vm923 = vweird.f32 %v917
    %vm924 = vmor %vm922, %vm923
    %v925 = vsel %vm924, %v917, %v921
    %v926 = vand.u32 2147483647, %v915
    %vm927 = vcmp.eq.f32.partialorder %v926, 8.507059e+37
    %v928 = vand.u32 %v915, 2147483648
    %v929 = vor.u32 1.1754944e-38, %v928
    %v930 = vsel %vm927, %v929, %v925
    %v931 = vmul.f32 1.0, %v930
    %v932 = vrcp.pop %v916
    %v933 = vmul.f32 %v916, %v932
    %v934 = vsub.f32 1.0, %v933
    %v935 = vmul.f32 %v932, %v934
    %v936 = vadd.f32 %v932, %v935
    %vm937 = vweird.f32 %v916
    %vm938 = vweird.f32 %v932
    %vm939 = vmor %vm937, %vm938
    %v940 = vsel %vm939, %v932, %v936
    %v941 = vand.u32 2147483647, %v916
    %vm942 = vcmp.eq.f32.partialorder %v941, 8.507059e+37
    %v943 = vand.u32 %v916, 2147483648
    %v944 = vor.u32 1.1754944e-38, %v943
    %v945 = vsel %vm942, %v944, %v940
    %v946 = vmul.f32 1.0, %v945
    %v948 = vperm.slane %v900, 0
    %v950 = vadd.f32 %v898, %v948
    %v952 = vrot.slane %v950, 4
    %v954 = vmul.f32 %v931, %v952
    %v955 = vadd.f32 %v788, %v954
    %v956 = vtanh.pop %v955
    %v957 = vsub.f32 1.0, %v946
    %v958 = vmul.f32 %v957, %v956
    %v959 = vrot.slane %v508, 6
    %v961 = vmul.f32 %v946, %v959
    %v962 = vadd.f32 %v958, %v961
    %v963 = vld [vmem:[#allocation9] sm:$0xff]
    %v964 = vld [vmem:[#allocation9 + $0x8] sm:$0xff]
    %v965 = vld [vmem:[#allocation9 + $0x10] sm:$0xff]
    %v966 = vld [vmem:[#allocation9 + $0x18] sm:$0xff]
    %v967 = vld [vmem:[#allocation9 + $0x20] sm:$0xff]
    %v968 = vld [vmem:[#allocation9 + $0x28] sm:$0xff]
    %v969 = vld [vmem:[#allocation9 + $0x30] sm:$0xff]
    %v970 = vld [vmem:[#allocation9 + $0x38] sm:$0xff]
    %v971 = vld [vmem:[#allocation9 + $0x40] sm:$0xff]
    %v972 = vld [vmem:[#allocation9 + $0x48] sm:$0xff]
    %v973 = vld [vmem:[#allocation9 + $0x50] sm:$0xff]
    %v974 = vld [vmem:[#allocation9 + $0x58] sm:$0xff]
    %v975 = vld [vmem:[#allocation9 + $0x60] sm:$0xff]
    %v976 = vld [vmem:[#allocation9 + $0x68] sm:$0xff]
    %v977 = vld [vmem:[#allocation9 + $0x70] sm:$0xff]
    %v978 = vld [vmem:[#allocation9 + $0x78] sm:$0xff]
    %v979 = vld [vmem:[#allocation9 + $0x80] sm:$0xff]
    %v980 = vld [vmem:[#allocation9 + $0x88] sm:$0xff]
    %v981 = vld [vmem:[#allocation9 + $0x90] sm:$0xff]
    %v982 = vld [vmem:[#allocation9 + $0x98] sm:$0xff]
    %v983 = vld [vmem:[#allocation9 + $0xa0] sm:$0xff]
    %v984 = vld [vmem:[#allocation9 + $0xa8] sm:$0xff]
    %v985 = vld [vmem:[#allocation9 + $0xb0] sm:$0xff]
    %v986 = vld [vmem:[#allocation9 + $0xb8] sm:$0xff]
    %v987 = vld [vmem:[#allocation9 + $0xc0] sm:$0xff]
    %v988 = vld [vmem:[#allocation9 + $0xc8] sm:$0xff]
    %v989 = vld [vmem:[#allocation9 + $0xd0] sm:$0xff]
    %v990 = vld [vmem:[#allocation9 + $0xd8] sm:$0xff]
    %v991 = vld [vmem:[#allocation9 + $0xe0] sm:$0xff]
    %v992 = vld [vmem:[#allocation9 + $0xe8] sm:$0xff]
    %v993 = vld [vmem:[#allocation9 + $0xf0] sm:$0xff]
    %v994 = vld [vmem:[#allocation9 + $0xf8] sm:$0xff]
    %v995 = vld [vmem:[#allocation9 + $0x100] sm:$0xff]
    %v996 = vld [vmem:[#allocation9 + $0x108] sm:$0xff]
    %v997 = vld [vmem:[#allocation9 + $0x110] sm:$0xff]
    %v998 = vld [vmem:[#allocation9 + $0x118] sm:$0xff]
    %v999 = vld [vmem:[#allocation9 + $0x120] sm:$0xff]
    %v1000 = vld [vmem:[#allocation9 + $0x128] sm:$0xff]
    %v1001 = vld [vmem:[#allocation9 + $0x130] sm:$0xff]
    %v1002 = vld [vmem:[#allocation9 + $0x138] sm:$0xff]
    %v1003 = vld [vmem:[#allocation9 + $0x140] sm:$0xff]
    %v1004 = vld [vmem:[#allocation9 + $0x148] sm:$0xff]
    %v1005 = vld [vmem:[#allocation9 + $0x150] sm:$0xff]
    %v1006 = vld [vmem:[#allocation9 + $0x158] sm:$0xff]
    %v1007 = vld [vmem:[#allocation9 + $0x160] sm:$0xff]
    %v1008 = vld [vmem:[#allocation9 + $0x168] sm:$0xff]
    %v1009 = vld [vmem:[#allocation9 + $0x170] sm:$0xff]
    %v1010 = vld [vmem:[#allocation9 + $0x178] sm:$0xff]
    %v1011 = vld [vmem:[%s8] sm:$0x7]
    %v1013 = vperm.slane %v1011, 0
    %v1014 = vperm.slane %v1011, 1
    %v1015 = vperm.slane %v1011, 2
    %1019 = vmatpush.msra.mxu0 %v1008
    %1020 = vmatpush.msra.mxu0 %v1005
    %1021 = vmatpush.msra.mxu0 %v1002
    %1022 = vmatpush.msra.mxu0 %v999
    %1023 = vmatpush.msra.mxu0 %v996
    %1024 = vmatpush.msra.mxu0 %v993
    %1025 = vmatpush.msra.mxu0 %v990
    %1026 = vmatpush.msra.mxu0 %v987
    %1027 = vmatpush.msra.mxu0 %v984
    %1028 = vmatpush.msra.mxu0 %v981
    %1029 = vmatpush.msra.mxu0 %v978
    %1030 = vmatpush.msra.mxu0 %v975
    %1031 = vmatpush.msra.mxu0 %v972
    %1032 = vmatpush.msra.mxu0 %v969
    %1033 = vmatpush.msra.mxu0 %v966
    %1034 = vmatpush.msra.mxu0 %v963
    %1035 = vmatmul.f32.gmra.mxu0 %v838
    %v1036 = vpop.f32.mrf.mxu0
    %v1037 = vadd.f32 %v1013, %v1036
    %1038 = vdwg.mxu0
    %1039 = vmatpush.msra.mxu0 %v1009
    %1040 = vmatpush.msra.mxu0 %v1006
    %1041 = vmatpush.msra.mxu0 %v1003
    %1042 = vmatpush.msra.mxu0 %v1000
    %1043 = vmatpush.msra.mxu0 %v997
    %1044 = vmatpush.msra.mxu0 %v994
    %1045 = vmatpush.msra.mxu0 %v991
    %1046 = vmatpush.msra.mxu0 %v988
    %1047 = vmatpush.msra.mxu0 %v985
    %1048 = vmatpush.msra.mxu0 %v982
    %1049 = vmatpush.msra.mxu0 %v979
    %1050 = vmatpush.msra.mxu0 %v976
    %1051 = vmatpush.msra.mxu0 %v973
    %1052 = vmatpush.msra.mxu0 %v970
    %1053 = vmatpush.msra.mxu0 %v967
    %1054 = vmatpush.msra.mxu0 %v964
    %1055 = vmatmul.f32.gmra.mxu0 %v838
    %v1056 = vpop.f32.mrf.mxu0
    %v1057 = vadd.f32 %v1014, %v1056
    %1058 = vdwg.mxu0
    %1059 = vmatpush.msra.mxu0 %v1010
    %1060 = vmatpush.msra.mxu0 %v1007
    %1061 = vmatpush.msra.mxu0 %v1004
    %1062 = vmatpush.msra.mxu0 %v1001
    %1063 = vmatpush.msra.mxu0 %v998
    %1064 = vmatpush.msra.mxu0 %v995
    %1065 = vmatpush.msra.mxu0 %v992
    %1066 = vmatpush.msra.mxu0 %v989
    %1067 = vmatpush.msra.mxu0 %v986
    %1068 = vmatpush.msra.mxu0 %v983
    %1069 = vmatpush.msra.mxu0 %v980
    %1070 = vmatpush.msra.mxu0 %v977
    %1071 = vmatpush.msra.mxu0 %v974
    %1072 = vmatpush.msra.mxu0 %v971
    %1073 = vmatpush.msra.mxu0 %v968
    %1074 = vmatpush.msra.mxu0 %v965
    %1075 = vmatmul.f32.gmra.mxu0 %v838
    %v1076 = vpop.f32.mrf.mxu0
    %v1077 = vadd.f32 %v1015, %v1076
    %1078 = vdwg.mxu0
    %v1079 = vld [vmem:[#allocation10] sm:$0xff]
    %v1080 = vld [vmem:[#allocation10 + $0x8] sm:$0xff]
    %v1081 = vld [vmem:[#allocation10 + $0x10] sm:$0xff]
    %v1082 = vld [vmem:[#allocation10 + $0x18] sm:$0xff]
    %v1083 = vld [vmem:[#allocation10 + $0x20] sm:$0xff]
    %v1084 = vld [vmem:[#allocation10 + $0x28] sm:$0xff]
    %v1085 = vld [vmem:[#allocation10 + $0x30] sm:$0xff]
    %v1086 = vld [vmem:[#allocation10 + $0x38] sm:$0xff]
    %v1087 = vld [vmem:[#allocation10 + $0x40] sm:$0xff]
    %v1088 = vld [vmem:[#allocation10 + $0x48] sm:$0xff]
    %v1089 = vld [vmem:[#allocation10 + $0x50] sm:$0xff]
    %v1090 = vld [vmem:[#allocation10 + $0x58] sm:$0xff]
    %v1091 = vld [vmem:[#allocation10 + $0x60] sm:$0xff]
    %v1092 = vld [vmem:[#allocation10 + $0x68] sm:$0xff]
    %v1093 = vld [vmem:[#allocation10 + $0x70] sm:$0xff]
    %v1094 = vld [vmem:[#allocation10 + $0x78] sm:$0xff]
    %v1095 = vld [vmem:[#allocation10 + $0x80] sm:$0xff]
    %v1096 = vld [vmem:[#allocation10 + $0x88] sm:$0xff]
    %v1097 = vld [vmem:[#allocation10 + $0x90] sm:$0xff]
    %v1098 = vld [vmem:[#allocation10 + $0x98] sm:$0xff]
    %v1099 = vld [vmem:[#allocation10 + $0xa0] sm:$0xff]
    %v1100 = vld [vmem:[#allocation10 + $0xa8] sm:$0xff]
    %v1101 = vld [vmem:[#allocation10 + $0xb0] sm:$0xff]
    %v1102 = vld [vmem:[#allocation10 + $0xb8] sm:$0xff]
    %v1103 = vld [vmem:[#allocation10 + $0xc0] sm:$0xff]
    %v1104 = vld [vmem:[#allocation10 + $0xc8] sm:$0xff]
    %v1105 = vld [vmem:[#allocation10 + $0xd0] sm:$0xff]
    %v1106 = vld [vmem:[#allocation10 + $0xd8] sm:$0xff]
    %v1107 = vld [vmem:[#allocation10 + $0xe0] sm:$0xff]
    %v1108 = vld [vmem:[#allocation10 + $0xe8] sm:$0xff]
    %v1109 = vld [vmem:[#allocation10 + $0xf0] sm:$0xff]
    %v1110 = vld [vmem:[#allocation10 + $0xf8] sm:$0xff]
    %v1111 = vld [vmem:[#allocation10 + $0x100] sm:$0xff]
    %v1112 = vld [vmem:[#allocation10 + $0x108] sm:$0xff]
    %v1113 = vld [vmem:[#allocation10 + $0x110] sm:$0xff]
    %v1114 = vld [vmem:[#allocation10 + $0x118] sm:$0xff]
    %v1115 = vld [vmem:[#allocation10 + $0x120] sm:$0xff]
    %v1116 = vld [vmem:[#allocation10 + $0x128] sm:$0xff]
    %v1117 = vld [vmem:[#allocation10 + $0x130] sm:$0xff]
    %v1118 = vld [vmem:[#allocation10 + $0x138] sm:$0xff]
    %v1119 = vld [vmem:[#allocation10 + $0x140] sm:$0xff]
    %v1120 = vld [vmem:[#allocation10 + $0x148] sm:$0xff]
    %v1121 = vld [vmem:[#allocation10 + $0x150] sm:$0xff]
    %v1122 = vld [vmem:[#allocation10 + $0x158] sm:$0xff]
    %v1123 = vld [vmem:[#allocation10 + $0x160] sm:$0xff]
    %v1124 = vld [vmem:[#allocation10 + $0x168] sm:$0xff]
    %v1125 = vld [vmem:[#allocation10 + $0x170] sm:$0xff]
    %v1126 = vld [vmem:[#allocation10 + $0x178] sm:$0xff]
    %1127 = vmatpush.msra.mxu0 %v1124
    %1128 = vmatpush.msra.mxu0 %v1121
    %1129 = vmatpush.msra.mxu0 %v1118
    %1130 = vmatpush.msra.mxu0 %v1115
    %1131 = vmatpush.msra.mxu0 %v1112
    %1132 = vmatpush.msra.mxu0 %v1109
    %1133 = vmatpush.msra.mxu0 %v1106
    %1134 = vmatpush.msra.mxu0 %v1103
    %1135 = vmatpush.msra.mxu0 %v1100
    %1136 = vmatpush.msra.mxu0 %v1097
    %1137 = vmatpush.msra.mxu0 %v1094
    %1138 = vmatpush.msra.mxu0 %v1091
    %1139 = vmatpush.msra.mxu0 %v1088
    %1140 = vmatpush.msra.mxu0 %v1085
    %1141 = vmatpush.msra.mxu0 %v1082
    %1142 = vmatpush.msra.mxu0 %v1079
    %1143 = vmatmul.f32.gmra.mxu0 %v784
    %v1144 = vpop.f32.mrf.mxu0
    %v1145 = vadd.f32 0.0, %v1144
    %1146 = vdwg.mxu0
    %1147 = vmatpush.msra.mxu0 %v1125
    %1148 = vmatpush.msra.mxu0 %v1122
    %1149 = vmatpush.msra.mxu0 %v1119
    %1150 = vmatpush.msra.mxu0 %v1116
    %1151 = vmatpush.msra.mxu0 %v1113
    %1152 = vmatpush.msra.mxu0 %v1110
    %1153 = vmatpush.msra.mxu0 %v1107
    %1154 = vmatpush.msra.mxu0 %v1104
    %1155 = vmatpush.msra.mxu0 %v1101
    %1156 = vmatpush.msra.mxu0 %v1098
    %1157 = vmatpush.msra.mxu0 %v1095
    %1158 = vmatpush.msra.mxu0 %v1092
    %1159 = vmatpush.msra.mxu0 %v1089
    %1160 = vmatpush.msra.mxu0 %v1086
    %1161 = vmatpush.msra.mxu0 %v1083
    %1162 = vmatpush.msra.mxu0 %v1080
    %1163 = vmatmul.f32.gmra.mxu0 %v784
    %v1164 = vpop.f32.mrf.mxu0
    %v1165 = vadd.f32 0.0, %v1164
    %1166 = vdwg.mxu0
    %1167 = vmatpush.msra.mxu0 %v1126
    %1168 = vmatpush.msra.mxu0 %v1123
    %1169 = vmatpush.msra.mxu0 %v1120
    %1170 = vmatpush.msra.mxu0 %v1117
    %1171 = vmatpush.msra.mxu0 %v1114
    %1172 = vmatpush.msra.mxu0 %v1111
    %1173 = vmatpush.msra.mxu0 %v1108
    %1174 = vmatpush.msra.mxu0 %v1105
    %1175 = vmatpush.msra.mxu0 %v1102
    %1176 = vmatpush.msra.mxu0 %v1099
    %1177 = vmatpush.msra.mxu0 %v1096
    %1178 = vmatpush.msra.mxu0 %v1093
    %1179 = vmatpush.msra.mxu0 %v1090
    %1180 = vmatpush.msra.mxu0 %v1087
    %1181 = vmatpush.msra.mxu0 %v1084
    %1182 = vmatpush.msra.mxu0 %v1081
    %1183 = vmatmul.f32.gmra.mxu0 %v784
    %v1184 = vpop.f32.mrf.mxu0
    %v1185 = vadd.f32 0.0, %v1184
    %1186 = vdwg.mxu0
    %v1187 = vld [vmem:[%s9] sm:$0x1]
    %v1188 = vadd.f32 %v1037, %v1145
    %v1189 = vadd.f32 %v1057, %v1165
    %v1190 = vxor.u32 %v1188, 2147483648
    %v1191 = vxor.u32 %v1189, 2147483648
    %v1192 = vmul.f32 %v1190, 1.442695
    %v1193 = vpow.pop %v1192
    %v1194 = vmul.f32 %v1191, 1.442695
    %v1195 = vpow.pop %v1194
    %v1196 = vadd.f32 %v1193, 1.0
    %v1197 = vadd.f32 %v1195, 1.0
    %v1198 = vrcp.pop %v1196
    %v1199 = vmul.f32 %v1196, %v1198
    %v1200 = vsub.f32 1.0, %v1199
    %v1201 = vmul.f32 %v1198, %v1200
    %v1202 = vadd.f32 %v1198, %v1201
    %vm1203 = vweird.f32 %v1196
    %vm1204 = vweird.f32 %v1198
    %vm1205 = vmor %vm1203, %vm1204
    %v1206 = vsel %vm1205, %v1198, %v1202
    %v1207 = vand.u32 2147483647, %v1196
    %vm1208 = vcmp.eq.f32.partialorder %v1207, 8.507059e+37
    %v1209 = vand.u32 %v1196, 2147483648
    %v1210 = vor.u32 1.1754944e-38, %v1209
    %v1211 = vsel %vm1208, %v1210, %v1206
    %v1212 = vmul.f32 1.0, %v1211
    %v1213 = vrcp.pop %v1197
    %v1214 = vmul.f32 %v1197, %v1213
    %v1215 = vsub.f32 1.0, %v1214
    %v1216 = vmul.f32 %v1213, %v1215
    %v1217 = vadd.f32 %v1213, %v1216
    %vm1218 = vweird.f32 %v1197
    %vm1219 = vweird.f32 %v1213
    %vm1220 = vmor %vm1218, %vm1219
    %v1221 = vsel %vm1220, %v1213, %v1217
    %v1222 = vand.u32 2147483647, %v1197
    %vm1223 = vcmp.eq.f32.partialorder %v1222, 8.507059e+37
    %v1224 = vand.u32 %v1197, 2147483648
    %v1225 = vor.u32 1.1754944e-38, %v1224
    %v1226 = vsel %vm1223, %v1225, %v1221
    %v1227 = vmul.f32 1.0, %v1226
    %v1229 = vperm.slane %v1187, 0
    %v1231 = vadd.f32 %v1185, %v1229
    %v1232 = vmul.f32 %v1212, %v1231
    %v1233 = vadd.f32 %v1077, %v1232
    %v1234 = vtanh.pop %v1233
    %v1235 = vsub.f32 1.0, %v1227
    %v1236 = vmul.f32 %v1235, %v1234
    %v1237 = vmul.f32 %v1227, %v784
    %v1238 = vadd.f32 %v1236, %v1237
    %1239 = vst [vmem:[#allocation3 + $0x2] sm:$0x3] %v1238
    %v1240 = vld [vmem:[#allocation2] sm:$0xc0]
    %v1241 = vld [vmem:[#allocation2 + $0x8] sm:$0xc0]
    %v1242 = vld [vmem:[#allocation2 + $0x10] sm:$0xc0]
    %v1243 = vld [vmem:[#allocation7] sm:$0xff]
    %v1244 = vld [vmem:[#allocation7 + $0x8] sm:$0xff]
    %v1245 = vld [vmem:[#allocation7 + $0x10] sm:$0xff]
    %v1246 = vld [vmem:[#allocation7 + $0x18] sm:$0xff]
    %v1247 = vld [vmem:[#allocation7 + $0x20] sm:$0xff]
    %v1248 = vld [vmem:[#allocation7 + $0x28] sm:$0xff]
    %v1249 = vld [vmem:[#allocation7 + $0x30] sm:$0xff]
    %v1250 = vld [vmem:[#allocation7 + $0x38] sm:$0xff]
    %v1251 = vld [vmem:[#allocation7 + $0x40] sm:$0xff]
    %v1252 = vld [vmem:[#allocation7 + $0x48] sm:$0xff]
    %v1253 = vld [vmem:[#allocation7 + $0x50] sm:$0xff]
    %v1254 = vld [vmem:[#allocation7 + $0x58] sm:$0xff]
    %v1255 = vld [vmem:[#allocation7 + $0x60] sm:$0xff]
    %v1256 = vld [vmem:[#allocation7 + $0x68] sm:$0xff]
    %v1257 = vld [vmem:[#allocation7 + $0x70] sm:$0xff]
    %v1258 = vld [vmem:[#allocation7 + $0x78] sm:$0xff]
    %v1259 = vld [vmem:[#allocation7 + $0x80] sm:$0xff]
    %v1260 = vld [vmem:[#allocation7 + $0x88] sm:$0xff]
    %v1261 = vld [vmem:[#allocation7 + $0x90] sm:$0xff]
    %v1262 = vld [vmem:[#allocation7 + $0x98] sm:$0xff]
    %v1263 = vld [vmem:[#allocation7 + $0xa0] sm:$0xff]
    %v1264 = vld [vmem:[#allocation7 + $0xa8] sm:$0xff]
    %v1265 = vld [vmem:[#allocation7 + $0xb0] sm:$0xff]
    %v1266 = vld [vmem:[#allocation7 + $0xb8] sm:$0xff]
    %v1267 = vld [vmem:[#allocation7 + $0xc0] sm:$0xff]
    %v1268 = vld [vmem:[#allocation7 + $0xc8] sm:$0xff]
    %v1269 = vld [vmem:[#allocation7 + $0xd0] sm:$0xff]
    %v1270 = vld [vmem:[#allocation7 + $0xd8] sm:$0xff]
    %v1271 = vld [vmem:[#allocation7 + $0xe0] sm:$0xff]
    %v1272 = vld [vmem:[#allocation7 + $0xe8] sm:$0xff]
    %v1273 = vld [vmem:[#allocation7 + $0xf0] sm:$0xff]
    %v1274 = vld [vmem:[#allocation7 + $0xf8] sm:$0xff]
    %v1275 = vld [vmem:[#allocation7 + $0x100] sm:$0xff]
    %v1276 = vld [vmem:[#allocation7 + $0x108] sm:$0xff]
    %v1277 = vld [vmem:[#allocation7 + $0x110] sm:$0xff]
    %v1278 = vld [vmem:[#allocation7 + $0x118] sm:$0xff]
    %v1279 = vld [vmem:[#allocation7 + $0x120] sm:$0xff]
    %v1280 = vld [vmem:[#allocation7 + $0x128] sm:$0xff]
    %v1281 = vld [vmem:[#allocation7 + $0x130] sm:$0xff]
    %v1282 = vld [vmem:[#allocation7 + $0x138] sm:$0xff]
    %v1283 = vld [vmem:[#allocation7 + $0x140] sm:$0xff]
    %v1284 = vld [vmem:[#allocation7 + $0x148] sm:$0xff]
    %v1285 = vld [vmem:[#allocation7 + $0x150] sm:$0xff]
    %v1286 = vld [vmem:[#allocation7 + $0x158] sm:$0xff]
    %v1287 = vld [vmem:[#allocation7 + $0x160] sm:$0xff]
    %v1288 = vld [vmem:[#allocation7 + $0x168] sm:$0xff]
    %v1289 = vld [vmem:[#allocation7 + $0x170] sm:$0xff]
    %v1290 = vld [vmem:[#allocation7 + $0x178] sm:$0xff]
    %v1292 = vrot.slane %v962, 4
    %1294 = vmatpush.msra.mxu0 %v1288
    %1295 = vmatpush.msra.mxu0 %v1285
    %1296 = vmatpush.msra.mxu0 %v1282
    %1297 = vmatpush.msra.mxu0 %v1279
    %1298 = vmatpush.msra.mxu0 %v1276
    %1299 = vmatpush.msra.mxu0 %v1273
    %1300 = vmatpush.msra.mxu0 %v1270
    %1301 = vmatpush.msra.mxu0 %v1267
    %1302 = vmatpush.msra.mxu0 %v1264
    %1303 = vmatpush.msra.mxu0 %v1261
    %1304 = vmatpush.msra.mxu0 %v1258
    %1305 = vmatpush.msra.mxu0 %v1255
    %1306 = vmatpush.msra.mxu0 %v1252
    %1307 = vmatpush.msra.mxu0 %v1249
    %1308 = vmatpush.msra.mxu0 %v1246
    %1309 = vmatpush.msra.mxu0 %v1243
    %1310 = vmatmul.f32.gmra.mxu0 %v1292
    %v1311 = vpop.f32.mrf.mxu0
    %v1312 = vadd.f32 0.0, %v1311
    %1313 = vdwg.mxu0
    %1314 = vmatpush.msra.mxu0 %v1289
    %1315 = vmatpush.msra.mxu0 %v1286
    %1316 = vmatpush.msra.mxu0 %v1283
    %1317 = vmatpush.msra.mxu0 %v1280
    %1318 = vmatpush.msra.mxu0 %v1277
    %1319 = vmatpush.msra.mxu0 %v1274
    %1320 = vmatpush.msra.mxu0 %v1271
    %1321 = vmatpush.msra.mxu0 %v1268
    %1322 = vmatpush.msra.mxu0 %v1265
    %1323 = vmatpush.msra.mxu0 %v1262
    %1324 = vmatpush.msra.mxu0 %v1259
    %1325 = vmatpush.msra.mxu0 %v1256
    %1326 = vmatpush.msra.mxu0 %v1253
    %1327 = vmatpush.msra.mxu0 %v1250
    %1328 = vmatpush.msra.mxu0 %v1247
    %1329 = vmatpush.msra.mxu0 %v1244
    %1330 = vmatmul.f32.gmra.mxu0 %v1292
    %v1331 = vpop.f32.mrf.mxu0
    %v1332 = vadd.f32 0.0, %v1331
    %1333 = vdwg.mxu0
    %1334 = vmatpush.msra.mxu0 %v1290
    %1335 = vmatpush.msra.mxu0 %v1287
    %1336 = vmatpush.msra.mxu0 %v1284
    %1337 = vmatpush.msra.mxu0 %v1281
    %1338 = vmatpush.msra.mxu0 %v1278
    %1339 = vmatpush.msra.mxu0 %v1275
    %1340 = vmatpush.msra.mxu0 %v1272
    %1341 = vmatpush.msra.mxu0 %v1269
    %1342 = vmatpush.msra.mxu0 %v1266
    %1343 = vmatpush.msra.mxu0 %v1263
    %1344 = vmatpush.msra.mxu0 %v1260
    %1345 = vmatpush.msra.mxu0 %v1257
    %1346 = vmatpush.msra.mxu0 %v1254
    %1347 = vmatpush.msra.mxu0 %v1251
    %1348 = vmatpush.msra.mxu0 %v1248
    %1349 = vmatpush.msra.mxu0 %v1245
    %1350 = vmatmul.f32.gmra.mxu0 %v1292
    %v1351 = vpop.f32.mrf.mxu0
    %v1352 = vadd.f32 0.0, %v1351
    %1353 = vdwg.mxu0
    %v1354 = vld [vmem:[%s5] sm:$0x1]
    %v1357 = vrot.slane %v1312, 2
    %v1358 = vrot.slane %v1332, 2
    %v1361 = vadd.f32 %v1240, %v1357
    %v1362 = vadd.f32 %v1241, %v1358
    %v1363 = vxor.u32 %v1361, 2147483648
    %v1364 = vxor.u32 %v1362, 2147483648
    %v1365 = vmul.f32 %v1363, 1.442695
    %v1366 = vpow.pop %v1365
    %v1367 = vmul.f32 %v1364, 1.442695
    %v1368 = vpow.pop %v1367
    %v1369 = vadd.f32 %v1366, 1.0
    %v1370 = vadd.f32 %v1368, 1.0
    %v1371 = vrcp.pop %v1369
    %v1372 = vmul.f32 %v1369, %v1371
    %v1373 = vsub.f32 1.0, %v1372
    %v1374 = vmul.f32 %v1371, %v1373
    %v1375 = vadd.f32 %v1371, %v1374
    %vm1376 = vweird.f32 %v1369
    %vm1377 = vweird.f32 %v1371
    %vm1378 = vmor %vm1376, %vm1377
    %v1379 = vsel %vm1378, %v1371, %v1375
    %v1380 = vand.u32 2147483647, %v1369
    %vm1381 = vcmp.eq.f32.partialorder %v1380, 8.507059e+37
    %v1382 = vand.u32 %v1369, 2147483648
    %v1383 = vor.u32 1.1754944e-38, %v1382
    %v1384 = vsel %vm1381, %v1383, %v1379
    %v1385 = vmul.f32 1.0, %v1384
    %v1386 = vrcp.pop %v1370
    %v1387 = vmul.f32 %v1370, %v1386
    %v1388 = vsub.f32 1.0, %v1387
    %v1389 = vmul.f32 %v1386, %v1388
    %v1390 = vadd.f32 %v1386, %v1389
    %vm1391 = vweird.f32 %v1370
    %vm1392 = vweird.f32 %v1386
    %vm1393 = vmor %vm1391, %vm1392
    %v1394 = vsel %vm1393, %v1386, %v1390
    %v1395 = vand.u32 2147483647, %v1370
    %vm1396 = vcmp.eq.f32.partialorder %v1395, 8.507059e+37
    %v1397 = vand.u32 %v1370, 2147483648
    %v1398 = vor.u32 1.1754944e-38, %v1397
    %v1399 = vsel %vm1396, %v1398, %v1394
    %v1400 = vmul.f32 1.0, %v1399
    %v1402 = vperm.slane %v1354, 0
    %v1404 = vadd.f32 %v1352, %v1402
    %v1406 = vrot.slane %v1404, 2
    %v1408 = vmul.f32 %v1385, %v1406
    %v1409 = vadd.f32 %v1242, %v1408
    %v1410 = vtanh.pop %v1409
    %v1411 = vsub.f32 1.0, %v1400
    %v1412 = vmul.f32 %v1411, %v1410
    %v1413 = vrot.slane %v962, 6
    %v1415 = vmul.f32 %v1400, %v1413
    %v1416 = vadd.f32 %v1412, %v1415
    %v1417 = vld [vmem:[#allocation9] sm:$0xff]
    %v1418 = vld [vmem:[#allocation9 + $0x8] sm:$0xff]
    %v1419 = vld [vmem:[#allocation9 + $0x10] sm:$0xff]
    %v1420 = vld [vmem:[#allocation9 + $0x18] sm:$0xff]
    %v1421 = vld [vmem:[#allocation9 + $0x20] sm:$0xff]
    %v1422 = vld [vmem:[#allocation9 + $0x28] sm:$0xff]
    %v1423 = vld [vmem:[#allocation9 + $0x30] sm:$0xff]
    %v1424 = vld [vmem:[#allocation9 + $0x38] sm:$0xff]
    %v1425 = vld [vmem:[#allocation9 + $0x40] sm:$0xff]
    %v1426 = vld [vmem:[#allocation9 + $0x48] sm:$0xff]
    %v1427 = vld [vmem:[#allocation9 + $0x50] sm:$0xff]
    %v1428 = vld [vmem:[#allocation9 + $0x58] sm:$0xff]
    %v1429 = vld [vmem:[#allocation9 + $0x60] sm:$0xff]
    %v1430 = vld [vmem:[#allocation9 + $0x68] sm:$0xff]
    %v1431 = vld [vmem:[#allocation9 + $0x70] sm:$0xff]
    %v1432 = vld [vmem:[#allocation9 + $0x78] sm:$0xff]
    %v1433 = vld [vmem:[#allocation9 + $0x80] sm:$0xff]
    %v1434 = vld [vmem:[#allocation9 + $0x88] sm:$0xff]
    %v1435 = vld [vmem:[#allocation9 + $0x90] sm:$0xff]
    %v1436 = vld [vmem:[#allocation9 + $0x98] sm:$0xff]
    %v1437 = vld [vmem:[#allocation9 + $0xa0] sm:$0xff]
    %v1438 = vld [vmem:[#allocation9 + $0xa8] sm:$0xff]
    %v1439 = vld [vmem:[#allocation9 + $0xb0] sm:$0xff]
    %v1440 = vld [vmem:[#allocation9 + $0xb8] sm:$0xff]
    %v1441 = vld [vmem:[#allocation9 + $0xc0] sm:$0xff]
    %v1442 = vld [vmem:[#allocation9 + $0xc8] sm:$0xff]
    %v1443 = vld [vmem:[#allocation9 + $0xd0] sm:$0xff]
    %v1444 = vld [vmem:[#allocation9 + $0xd8] sm:$0xff]
    %v1445 = vld [vmem:[#allocation9 + $0xe0] sm:$0xff]
    %v1446 = vld [vmem:[#allocation9 + $0xe8] sm:$0xff]
    %v1447 = vld [vmem:[#allocation9 + $0xf0] sm:$0xff]
    %v1448 = vld [vmem:[#allocation9 + $0xf8] sm:$0xff]
    %v1449 = vld [vmem:[#allocation9 + $0x100] sm:$0xff]
    %v1450 = vld [vmem:[#allocation9 + $0x108] sm:$0xff]
    %v1451 = vld [vmem:[#allocation9 + $0x110] sm:$0xff]
    %v1452 = vld [vmem:[#allocation9 + $0x118] sm:$0xff]
    %v1453 = vld [vmem:[#allocation9 + $0x120] sm:$0xff]
    %v1454 = vld [vmem:[#allocation9 + $0x128] sm:$0xff]
    %v1455 = vld [vmem:[#allocation9 + $0x130] sm:$0xff]
    %v1456 = vld [vmem:[#allocation9 + $0x138] sm:$0xff]
    %v1457 = vld [vmem:[#allocation9 + $0x140] sm:$0xff]
    %v1458 = vld [vmem:[#allocation9 + $0x148] sm:$0xff]
    %v1459 = vld [vmem:[#allocation9 + $0x150] sm:$0xff]
    %v1460 = vld [vmem:[#allocation9 + $0x158] sm:$0xff]
    %v1461 = vld [vmem:[#allocation9 + $0x160] sm:$0xff]
    %v1462 = vld [vmem:[#allocation9 + $0x168] sm:$0xff]
    %v1463 = vld [vmem:[#allocation9 + $0x170] sm:$0xff]
    %v1464 = vld [vmem:[#allocation9 + $0x178] sm:$0xff]
    %v1465 = vld [vmem:[%s8] sm:$0x7]
    %v1467 = vperm.slane %v1465, 0
    %v1468 = vperm.slane %v1465, 1
    %v1469 = vperm.slane %v1465, 2
    %1473 = vmatpush.msra.mxu0 %v1462
    %1474 = vmatpush.msra.mxu0 %v1459
    %1475 = vmatpush.msra.mxu0 %v1456
    %1476 = vmatpush.msra.mxu0 %v1453
    %1477 = vmatpush.msra.mxu0 %v1450
    %1478 = vmatpush.msra.mxu0 %v1447
    %1479 = vmatpush.msra.mxu0 %v1444
    %1480 = vmatpush.msra.mxu0 %v1441
    %1481 = vmatpush.msra.mxu0 %v1438
    %1482 = vmatpush.msra.mxu0 %v1435
    %1483 = vmatpush.msra.mxu0 %v1432
    %1484 = vmatpush.msra.mxu0 %v1429
    %1485 = vmatpush.msra.mxu0 %v1426
    %1486 = vmatpush.msra.mxu0 %v1423
    %1487 = vmatpush.msra.mxu0 %v1420
    %1488 = vmatpush.msra.mxu0 %v1417
    %1489 = vmatmul.f32.gmra.mxu0 %v1292
    %v1490 = vpop.f32.mrf.mxu0
    %v1491 = vadd.f32 %v1467, %v1490
    %1492 = vdwg.mxu0
    %1493 = vmatpush.msra.mxu0 %v1463
    %1494 = vmatpush.msra.mxu0 %v1460
    %1495 = vmatpush.msra.mxu0 %v1457
    %1496 = vmatpush.msra.mxu0 %v1454
    %1497 = vmatpush.msra.mxu0 %v1451
    %1498 = vmatpush.msra.mxu0 %v1448
    %1499 = vmatpush.msra.mxu0 %v1445
    %1500 = vmatpush.msra.mxu0 %v1442
    %1501 = vmatpush.msra.mxu0 %v1439
    %1502 = vmatpush.msra.mxu0 %v1436
    %1503 = vmatpush.msra.mxu0 %v1433
    %1504 = vmatpush.msra.mxu0 %v1430
    %1505 = vmatpush.msra.mxu0 %v1427
    %1506 = vmatpush.msra.mxu0 %v1424
    %1507 = vmatpush.msra.mxu0 %v1421
    %1508 = vmatpush.msra.mxu0 %v1418
    %1509 = vmatmul.f32.gmra.mxu0 %v1292
    %v1510 = vpop.f32.mrf.mxu0
    %v1511 = vadd.f32 %v1468, %v1510
    %1512 = vdwg.mxu0
    %1513 = vmatpush.msra.mxu0 %v1464
    %1514 = vmatpush.msra.mxu0 %v1461
    %1515 = vmatpush.msra.mxu0 %v1458
    %1516 = vmatpush.msra.mxu0 %v1455
    %1517 = vmatpush.msra.mxu0 %v1452
    %1518 = vmatpush.msra.mxu0 %v1449
    %1519 = vmatpush.msra.mxu0 %v1446
    %1520 = vmatpush.msra.mxu0 %v1443
    %1521 = vmatpush.msra.mxu0 %v1440
    %1522 = vmatpush.msra.mxu0 %v1437
    %1523 = vmatpush.msra.mxu0 %v1434
    %1524 = vmatpush.msra.mxu0 %v1431
    %1525 = vmatpush.msra.mxu0 %v1428
    %1526 = vmatpush.msra.mxu0 %v1425
    %1527 = vmatpush.msra.mxu0 %v1422
    %1528 = vmatpush.msra.mxu0 %v1419
    %1529 = vmatmul.f32.gmra.mxu0 %v1292
    %v1530 = vpop.f32.mrf.mxu0
    %v1531 = vadd.f32 %v1469, %v1530
    %1532 = vdwg.mxu0
    %v1533 = vld [vmem:[#allocation10] sm:$0xff]
    %v1534 = vld [vmem:[#allocation10 + $0x8] sm:$0xff]
    %v1535 = vld [vmem:[#allocation10 + $0x10] sm:$0xff]
    %v1536 = vld [vmem:[#allocation10 + $0x18] sm:$0xff]
    %v1537 = vld [vmem:[#allocation10 + $0x20] sm:$0xff]
    %v1538 = vld [vmem:[#allocation10 + $0x28] sm:$0xff]
    %v1539 = vld [vmem:[#allocation10 + $0x30] sm:$0xff]
    %v1540 = vld [vmem:[#allocation10 + $0x38] sm:$0xff]
    %v1541 = vld [vmem:[#allocation10 + $0x40] sm:$0xff]
    %v1542 = vld [vmem:[#allocation10 + $0x48] sm:$0xff]
    %v1543 = vld [vmem:[#allocation10 + $0x50] sm:$0xff]
    %v1544 = vld [vmem:[#allocation10 + $0x58] sm:$0xff]
    %v1545 = vld [vmem:[#allocation10 + $0x60] sm:$0xff]
    %v1546 = vld [vmem:[#allocation10 + $0x68] sm:$0xff]
    %v1547 = vld [vmem:[#allocation10 + $0x70] sm:$0xff]
    %v1548 = vld [vmem:[#allocation10 + $0x78] sm:$0xff]
    %v1549 = vld [vmem:[#allocation10 + $0x80] sm:$0xff]
    %v1550 = vld [vmem:[#allocation10 + $0x88] sm:$0xff]
    %v1551 = vld [vmem:[#allocation10 + $0x90] sm:$0xff]
    %v1552 = vld [vmem:[#allocation10 + $0x98] sm:$0xff]
    %v1553 = vld [vmem:[#allocation10 + $0xa0] sm:$0xff]
    %v1554 = vld [vmem:[#allocation10 + $0xa8] sm:$0xff]
    %v1555 = vld [vmem:[#allocation10 + $0xb0] sm:$0xff]
    %v1556 = vld [vmem:[#allocation10 + $0xb8] sm:$0xff]
    %v1557 = vld [vmem:[#allocation10 + $0xc0] sm:$0xff]
    %v1558 = vld [vmem:[#allocation10 + $0xc8] sm:$0xff]
    %v1559 = vld [vmem:[#allocation10 + $0xd0] sm:$0xff]
    %v1560 = vld [vmem:[#allocation10 + $0xd8] sm:$0xff]
    %v1561 = vld [vmem:[#allocation10 + $0xe0] sm:$0xff]
    %v1562 = vld [vmem:[#allocation10 + $0xe8] sm:$0xff]
    %v1563 = vld [vmem:[#allocation10 + $0xf0] sm:$0xff]
    %v1564 = vld [vmem:[#allocation10 + $0xf8] sm:$0xff]
    %v1565 = vld [vmem:[#allocation10 + $0x100] sm:$0xff]
    %v1566 = vld [vmem:[#allocation10 + $0x108] sm:$0xff]
    %v1567 = vld [vmem:[#allocation10 + $0x110] sm:$0xff]
    %v1568 = vld [vmem:[#allocation10 + $0x118] sm:$0xff]
    %v1569 = vld [vmem:[#allocation10 + $0x120] sm:$0xff]
    %v1570 = vld [vmem:[#allocation10 + $0x128] sm:$0xff]
    %v1571 = vld [vmem:[#allocation10 + $0x130] sm:$0xff]
    %v1572 = vld [vmem:[#allocation10 + $0x138] sm:$0xff]
    %v1573 = vld [vmem:[#allocation10 + $0x140] sm:$0xff]
    %v1574 = vld [vmem:[#allocation10 + $0x148] sm:$0xff]
    %v1575 = vld [vmem:[#allocation10 + $0x150] sm:$0xff]
    %v1576 = vld [vmem:[#allocation10 + $0x158] sm:$0xff]
    %v1577 = vld [vmem:[#allocation10 + $0x160] sm:$0xff]
    %v1578 = vld [vmem:[#allocation10 + $0x168] sm:$0xff]
    %v1579 = vld [vmem:[#allocation10 + $0x170] sm:$0xff]
    %v1580 = vld [vmem:[#allocation10 + $0x178] sm:$0xff]
    %1581 = vmatpush.msra.mxu0 %v1578
    %1582 = vmatpush.msra.mxu0 %v1575
    %1583 = vmatpush.msra.mxu0 %v1572
    %1584 = vmatpush.msra.mxu0 %v1569
    %1585 = vmatpush.msra.mxu0 %v1566
    %1586 = vmatpush.msra.mxu0 %v1563
    %1587 = vmatpush.msra.mxu0 %v1560
    %1588 = vmatpush.msra.mxu0 %v1557
    %1589 = vmatpush.msra.mxu0 %v1554
    %1590 = vmatpush.msra.mxu0 %v1551
    %1591 = vmatpush.msra.mxu0 %v1548
    %1592 = vmatpush.msra.mxu0 %v1545
    %1593 = vmatpush.msra.mxu0 %v1542
    %1594 = vmatpush.msra.mxu0 %v1539
    %1595 = vmatpush.msra.mxu0 %v1536
    %1596 = vmatpush.msra.mxu0 %v1533
    %1597 = vmatmul.f32.gmra.mxu0 %v1238
    %v1598 = vpop.f32.mrf.mxu0
    %v1599 = vadd.f32 0.0, %v1598
    %1600 = vdwg.mxu0
    %1601 = vmatpush.msra.mxu0 %v1579
    %1602 = vmatpush.msra.mxu0 %v1576
    %1603 = vmatpush.msra.mxu0 %v1573
    %1604 = vmatpush.msra.mxu0 %v1570
    %1605 = vmatpush.msra.mxu0 %v1567
    %1606 = vmatpush.msra.mxu0 %v1564
    %1607 = vmatpush.msra.mxu0 %v1561
    %1608 = vmatpush.msra.mxu0 %v1558
    %1609 = vmatpush.msra.mxu0 %v1555
    %1610 = vmatpush.msra.mxu0 %v1552
    %1611 = vmatpush.msra.mxu0 %v1549
    %1612 = vmatpush.msra.mxu0 %v1546
    %1613 = vmatpush.msra.mxu0 %v1543
    %1614 = vmatpush.msra.mxu0 %v1540
    %1615 = vmatpush.msra.mxu0 %v1537
    %1616 = vmatpush.msra.mxu0 %v1534
    %1617 = vmatmul.f32.gmra.mxu0 %v1238
    %v1618 = vpop.f32.mrf.mxu0
    %v1619 = vadd.f32 0.0, %v1618
    %1620 = vdwg.mxu0
    %1621 = vmatpush.msra.mxu0 %v1580
    %1622 = vmatpush.msra.mxu0 %v1577
    %1623 = vmatpush.msra.mxu0 %v1574
    %1624 = vmatpush.msra.mxu0 %v1571
    %1625 = vmatpush.msra.mxu0 %v1568
    %1626 = vmatpush.msra.mxu0 %v1565
    %1627 = vmatpush.msra.mxu0 %v1562
    %1628 = vmatpush.msra.mxu0 %v1559
    %1629 = vmatpush.msra.mxu0 %v1556
    %1630 = vmatpush.msra.mxu0 %v1553
    %1631 = vmatpush.msra.mxu0 %v1550
    %1632 = vmatpush.msra.mxu0 %v1547
    %1633 = vmatpush.msra.mxu0 %v1544
    %1634 = vmatpush.msra.mxu0 %v1541
    %1635 = vmatpush.msra.mxu0 %v1538
    %1636 = vmatpush.msra.mxu0 %v1535
    %1637 = vmatmul.f32.gmra.mxu0 %v1238
    %v1638 = vpop.f32.mrf.mxu0
    %v1639 = vadd.f32 0.0, %v1638
    %1640 = vdwg.mxu0
    %v1641 = vld [vmem:[%s9] sm:$0x1]
    %v1642 = vadd.f32 %v1491, %v1599
    %v1643 = vadd.f32 %v1511, %v1619
    %v1644 = vxor.u32 %v1642, 2147483648
    %v1645 = vxor.u32 %v1643, 2147483648
    %v1646 = vmul.f32 %v1644, 1.442695
    %v1647 = vpow.pop %v1646
    %v1648 = vmul.f32 %v1645, 1.442695
    %v1649 = vpow.pop %v1648
    %v1650 = vadd.f32 %v1647, 1.0
    %v1651 = vadd.f32 %v1649, 1.0
    %v1652 = vrcp.pop %v1650
    %v1653 = vmul.f32 %v1650, %v1652
    %v1654 = vsub.f32 1.0, %v1653
    %v1655 = vmul.f32 %v1652, %v1654
    %v1656 = vadd.f32 %v1652, %v1655
    %vm1657 = vweird.f32 %v1650
    %vm1658 = vweird.f32 %v1652
    %vm1659 = vmor %vm1657, %vm1658
    %v1660 = vsel %vm1659, %v1652, %v1656
    %v1661 = vand.u32 2147483647, %v1650
    %vm1662 = vcmp.eq.f32.partialorder %v1661, 8.507059e+37
    %v1663 = vand.u32 %v1650, 2147483648
    %v1664 = vor.u32 1.1754944e-38, %v1663
    %v1665 = vsel %vm1662, %v1664, %v1660
    %v1666 = vmul.f32 1.0, %v1665
    %v1667 = vrcp.pop %v1651
    %v1668 = vmul.f32 %v1651, %v1667
    %v1669 = vsub.f32 1.0, %v1668
    %v1670 = vmul.f32 %v1667, %v1669
    %v1671 = vadd.f32 %v1667, %v1670
    %vm1672 = vweird.f32 %v1651
    %vm1673 = vweird.f32 %v1667
    %vm1674 = vmor %vm1672, %vm1673
    %v1675 = vsel %vm1674, %v1667, %v1671
    %v1676 = vand.u32 2147483647, %v1651
    %vm1677 = vcmp.eq.f32.partialorder %v1676, 8.507059e+37
    %v1678 = vand.u32 %v1651, 2147483648
    %v1679 = vor.u32 1.1754944e-38, %v1678
    %v1680 = vsel %vm1677, %v1679, %v1675
    %v1681 = vmul.f32 1.0, %v1680
    %v1683 = vperm.slane %v1641, 0
    %v1685 = vadd.f32 %v1639, %v1683
    %v1686 = vmul.f32 %v1666, %v1685
    %v1687 = vadd.f32 %v1531, %v1686
    %v1688 = vtanh.pop %v1687
    %v1689 = vsub.f32 1.0, %v1681
    %v1690 = vmul.f32 %v1689, %v1688
    %v1691 = vmul.f32 %v1681, %v1238
    %v1692 = vadd.f32 %v1690, %v1691
    %1693 = vst [vmem:[#allocation3 + $0x4] sm:$0x3] %v1692
    %v1694 = vld [vmem:[#allocation2 + $0x18] sm:$0x3]
    %v1695 = vld [vmem:[#allocation2 + $0x20] sm:$0x3]
    %v1696 = vld [vmem:[#allocation2 + $0x28] sm:$0x3]
    %v1697 = vld [vmem:[#allocation7] sm:$0xff]
    %v1698 = vld [vmem:[#allocation7 + $0x8] sm:$0xff]
    %v1699 = vld [vmem:[#allocation7 + $0x10] sm:$0xff]
    %v1700 = vld [vmem:[#allocation7 + $0x18] sm:$0xff]
    %v1701 = vld [vmem:[#allocation7 + $0x20] sm:$0xff]
    %v1702 = vld [vmem:[#allocation7 + $0x28] sm:$0xff]
    %v1703 = vld [vmem:[#allocation7 + $0x30] sm:$0xff]
    %v1704 = vld [vmem:[#allocation7 + $0x38] sm:$0xff]
    %v1705 = vld [vmem:[#allocation7 + $0x40] sm:$0xff]
    %v1706 = vld [vmem:[#allocation7 + $0x48] sm:$0xff]
    %v1707 = vld [vmem:[#allocation7 + $0x50] sm:$0xff]
    %v1708 = vld [vmem:[#allocation7 + $0x58] sm:$0xff]
    %v1709 = vld [vmem:[#allocation7 + $0x60] sm:$0xff]
    %v1710 = vld [vmem:[#allocation7 + $0x68] sm:$0xff]
    %v1711 = vld [vmem:[#allocation7 + $0x70] sm:$0xff]
    %v1712 = vld [vmem:[#allocation7 + $0x78] sm:$0xff]
    %v1713 = vld [vmem:[#allocation7 + $0x80] sm:$0xff]
    %v1714 = vld [vmem:[#allocation7 + $0x88] sm:$0xff]
    %v1715 = vld [vmem:[#allocation7 + $0x90] sm:$0xff]
    %v1716 = vld [vmem:[#allocation7 + $0x98] sm:$0xff]
    %v1717 = vld [vmem:[#allocation7 + $0xa0] sm:$0xff]
    %v1718 = vld [vmem:[#allocation7 + $0xa8] sm:$0xff]
    %v1719 = vld [vmem:[#allocation7 + $0xb0] sm:$0xff]
    %v1720 = vld [vmem:[#allocation7 + $0xb8] sm:$0xff]
    %v1721 = vld [vmem:[#allocation7 + $0xc0] sm:$0xff]
    %v1722 = vld [vmem:[#allocation7 + $0xc8] sm:$0xff]
    %v1723 = vld [vmem:[#allocation7 + $0xd0] sm:$0xff]
    %v1724 = vld [vmem:[#allocation7 + $0xd8] sm:$0xff]
    %v1725 = vld [vmem:[#allocation7 + $0xe0] sm:$0xff]
    %v1726 = vld [vmem:[#allocation7 + $0xe8] sm:$0xff]
    %v1727 = vld [vmem:[#allocation7 + $0xf0] sm:$0xff]
    %v1728 = vld [vmem:[#allocation7 + $0xf8] sm:$0xff]
    %v1729 = vld [vmem:[#allocation7 + $0x100] sm:$0xff]
    %v1730 = vld [vmem:[#allocation7 + $0x108] sm:$0xff]
    %v1731 = vld [vmem:[#allocation7 + $0x110] sm:$0xff]
    %v1732 = vld [vmem:[#allocation7 + $0x118] sm:$0xff]
    %v1733 = vld [vmem:[#allocation7 + $0x120] sm:$0xff]
    %v1734 = vld [vmem:[#allocation7 + $0x128] sm:$0xff]
    %v1735 = vld [vmem:[#allocation7 + $0x130] sm:$0xff]
    %v1736 = vld [vmem:[#allocation7 + $0x138] sm:$0xff]
    %v1737 = vld [vmem:[#allocation7 + $0x140] sm:$0xff]
    %v1738 = vld [vmem:[#allocation7 + $0x148] sm:$0xff]
    %v1739 = vld [vmem:[#allocation7 + $0x150] sm:$0xff]
    %v1740 = vld [vmem:[#allocation7 + $0x158] sm:$0xff]
    %v1741 = vld [vmem:[#allocation7 + $0x160] sm:$0xff]
    %v1742 = vld [vmem:[#allocation7 + $0x168] sm:$0xff]
    %v1743 = vld [vmem:[#allocation7 + $0x170] sm:$0xff]
    %v1744 = vld [vmem:[#allocation7 + $0x178] sm:$0xff]
    %v1746 = vrot.slane %v1416, 6
    %1748 = vmatpush.msra.mxu0 %v1742
    %1749 = vmatpush.msra.mxu0 %v1739
    %1750 = vmatpush.msra.mxu0 %v1736
    %1751 = vmatpush.msra.mxu0 %v1733
    %1752 = vmatpush.msra.mxu0 %v1730
    %1753 = vmatpush.msra.mxu0 %v1727
    %1754 = vmatpush.msra.mxu0 %v1724
    %1755 = vmatpush.msra.mxu0 %v1721
    %1756 = vmatpush.msra.mxu0 %v1718
    %1757 = vmatpush.msra.mxu0 %v1715
    %1758 = vmatpush.msra.mxu0 %v1712
    %1759 = vmatpush.msra.mxu0 %v1709
    %1760 = vmatpush.msra.mxu0 %v1706
    %1761 = vmatpush.msra.mxu0 %v1703
    %1762 = vmatpush.msra.mxu0 %v1700
    %1763 = vmatpush.msra.mxu0 %v1697
    %1764 = vmatmul.f32.gmra.mxu0 %v1746
    %v1765 = vpop.f32.mrf.mxu0
    %v1766 = vadd.f32 0.0, %v1765
    %1767 = vdwg.mxu0
    %1768 = vmatpush.msra.mxu0 %v1743
    %1769 = vmatpush.msra.mxu0 %v1740
    %1770 = vmatpush.msra.mxu0 %v1737
    %1771 = vmatpush.msra.mxu0 %v1734
    %1772 = vmatpush.msra.mxu0 %v1731
    %1773 = vmatpush.msra.mxu0 %v1728
    %1774 = vmatpush.msra.mxu0 %v1725
    %1775 = vmatpush.msra.mxu0 %v1722
    %1776 = vmatpush.msra.mxu0 %v1719
    %1777 = vmatpush.msra.mxu0 %v1716
    %1778 = vmatpush.msra.mxu0 %v1713
    %1779 = vmatpush.msra.mxu0 %v1710
    %1780 = vmatpush.msra.mxu0 %v1707
    %1781 = vmatpush.msra.mxu0 %v1704
    %1782 = vmatpush.msra.mxu0 %v1701
    %1783 = vmatpush.msra.mxu0 %v1698
    %1784 = vmatmul.f32.gmra.mxu0 %v1746
    %v1785 = vpop.f32.mrf.mxu0
    %v1786 = vadd.f32 0.0, %v1785
    %1787 = vdwg.mxu0
    %1788 = vmatpush.msra.mxu0 %v1744
    %1789 = vmatpush.msra.mxu0 %v1741
    %1790 = vmatpush.msra.mxu0 %v1738
    %1791 = vmatpush.msra.mxu0 %v1735
    %1792 = vmatpush.msra.mxu0 %v1732
    %1793 = vmatpush.msra.mxu0 %v1729
    %1794 = vmatpush.msra.mxu0 %v1726
    %1795 = vmatpush.msra.mxu0 %v1723
    %1796 = vmatpush.msra.mxu0 %v1720
    %1797 = vmatpush.msra.mxu0 %v1717
    %1798 = vmatpush.msra.mxu0 %v1714
    %1799 = vmatpush.msra.mxu0 %v1711
    %1800 = vmatpush.msra.mxu0 %v1708
    %1801 = vmatpush.msra.mxu0 %v1705
    %1802 = vmatpush.msra.mxu0 %v1702
    %1803 = vmatpush.msra.mxu0 %v1699
    %1804 = vmatmul.f32.gmra.mxu0 %v1746
    %v1805 = vpop.f32.mrf.mxu0
    %v1806 = vadd.f32 0.0, %v1805
    %1807 = vdwg.mxu0
    %v1808 = vld [vmem:[%s5] sm:$0x1]
    %v1809 = vadd.f32 %v1694, %v1766
    %v1810 = vadd.f32 %v1695, %v1786
    %v1811 = vxor.u32 %v1809, 2147483648
    %v1812 = vxor.u32 %v1810, 2147483648
    %v1813 = vmul.f32 %v1811, 1.442695
    %v1814 = vpow.pop %v1813
    %v1815 = vmul.f32 %v1812, 1.442695
    %v1816 = vpow.pop %v1815
    %v1817 = vadd.f32 %v1814, 1.0
    %v1818 = vadd.f32 %v1816, 1.0
    %v1819 = vrcp.pop %v1817
    %v1820 = vmul.f32 %v1817, %v1819
    %v1821 = vsub.f32 1.0, %v1820
    %v1822 = vmul.f32 %v1819, %v1821
    %v1823 = vadd.f32 %v1819, %v1822
    %vm1824 = vweird.f32 %v1817
    %vm1825 = vweird.f32 %v1819
    %vm1826 = vmor %vm1824, %vm1825
    %v1827 = vsel %vm1826, %v1819, %v1823
    %v1828 = vand.u32 2147483647, %v1817
    %vm1829 = vcmp.eq.f32.partialorder %v1828, 8.507059e+37
    %v1830 = vand.u32 %v1817, 2147483648
    %v1831 = vor.u32 1.1754944e-38, %v1830
    %v1832 = vsel %vm1829, %v1831, %v1827
    %v1833 = vmul.f32 1.0, %v1832
    %v1834 = vrcp.pop %v1818
    %v1835 = vmul.f32 %v1818, %v1834
    %v1836 = vsub.f32 1.0, %v1835
    %v1837 = vmul.f32 %v1834, %v1836
    %v1838 = vadd.f32 %v1834, %v1837
    %vm1839 = vweird.f32 %v1818
    %vm1840 = vweird.f32 %v1834
    %vm1841 = vmor %vm1839, %vm1840
    %v1842 = vsel %vm1841, %v1834, %v1838
    %v1843 = vand.u32 2147483647, %v1818
    %vm1844 = vcmp.eq.f32.partialorder %v1843, 8.507059e+37
    %v1845 = vand.u32 %v1818, 2147483648
    %v1846 = vor.u32 1.1754944e-38, %v1845
    %v1847 = vsel %vm1844, %v1846, %v1842
    %v1848 = vmul.f32 1.0, %v1847
    %v1850 = vperm.slane %v1808, 0
    %v1852 = vadd.f32 %v1806, %v1850
    %v1853 = vmul.f32 %v1833, %v1852
    %v1854 = vadd.f32 %v1696, %v1853
    %v1855 = vtanh.pop %v1854
    %v1856 = vsub.f32 1.0, %v1848
    %v1857 = vmul.f32 %v1856, %v1855
    %v1858 = vmul.f32 %v1848, %v1746
    %v1859 = vadd.f32 %v1857, %v1858
    %v1860 = vld [vmem:[#allocation9] sm:$0xff]
    %v1861 = vld [vmem:[#allocation9 + $0x8] sm:$0xff]
    %v1862 = vld [vmem:[#allocation9 + $0x10] sm:$0xff]
    %v1863 = vld [vmem:[#allocation9 + $0x18] sm:$0xff]
    %v1864 = vld [vmem:[#allocation9 + $0x20] sm:$0xff]
    %v1865 = vld [vmem:[#allocation9 + $0x28] sm:$0xff]
    %v1866 = vld [vmem:[#allocation9 + $0x30] sm:$0xff]
    %v1867 = vld [vmem:[#allocation9 + $0x38] sm:$0xff]
    %v1868 = vld [vmem:[#allocation9 + $0x40] sm:$0xff]
    %v1869 = vld [vmem:[#allocation9 + $0x48] sm:$0xff]
    %v1870 = vld [vmem:[#allocation9 + $0x50] sm:$0xff]
    %v1871 = vld [vmem:[#allocation9 + $0x58] sm:$0xff]
    %v1872 = vld [vmem:[#allocation9 + $0x60] sm:$0xff]
    %v1873 = vld [vmem:[#allocation9 + $0x68] sm:$0xff]
    %v1874 = vld [vmem:[#allocation9 + $0x70] sm:$0xff]
    %v1875 = vld [vmem:[#allocation9 + $0x78] sm:$0xff]
    %v1876 = vld [vmem:[#allocation9 + $0x80] sm:$0xff]
    %v1877 = vld [vmem:[#allocation9 + $0x88] sm:$0xff]
    %v1878 = vld [vmem:[#allocation9 + $0x90] sm:$0xff]
    %v1879 = vld [vmem:[#allocation9 + $0x98] sm:$0xff]
    %v1880 = vld [vmem:[#allocation9 + $0xa0] sm:$0xff]
    %v1881 = vld [vmem:[#allocation9 + $0xa8] sm:$0xff]
    %v1882 = vld [vmem:[#allocation9 + $0xb0] sm:$0xff]
    %v1883 = vld [vmem:[#allocation9 + $0xb8] sm:$0xff]
    %v1884 = vld [vmem:[#allocation9 + $0xc0] sm:$0xff]
    %v1885 = vld [vmem:[#allocation9 + $0xc8] sm:$0xff]
    %v1886 = vld [vmem:[#allocation9 + $0xd0] sm:$0xff]
    %v1887 = vld [vmem:[#allocation9 + $0xd8] sm:$0xff]
    %v1888 = vld [vmem:[#allocation9 + $0xe0] sm:$0xff]
    %v1889 = vld [vmem:[#allocation9 + $0xe8] sm:$0xff]
    %v1890 = vld [vmem:[#allocation9 + $0xf0] sm:$0xff]
    %v1891 = vld [vmem:[#allocation9 + $0xf8] sm:$0xff]
    %v1892 = vld [vmem:[#allocation9 + $0x100] sm:$0xff]
    %v1893 = vld [vmem:[#allocation9 + $0x108] sm:$0xff]
    %v1894 = vld [vmem:[#allocation9 + $0x110] sm:$0xff]
    %v1895 = vld [vmem:[#allocation9 + $0x118] sm:$0xff]
    %v1896 = vld [vmem:[#allocation9 + $0x120] sm:$0xff]
    %v1897 = vld [vmem:[#allocation9 + $0x128] sm:$0xff]
    %v1898 = vld [vmem:[#allocation9 + $0x130] sm:$0xff]
    %v1899 = vld [vmem:[#allocation9 + $0x138] sm:$0xff]
    %v1900 = vld [vmem:[#allocation9 + $0x140] sm:$0xff]
    %v1901 = vld [vmem:[#allocation9 + $0x148] sm:$0xff]
    %v1902 = vld [vmem:[#allocation9 + $0x150] sm:$0xff]
    %v1903 = vld [vmem:[#allocation9 + $0x158] sm:$0xff]
    %v1904 = vld [vmem:[#allocation9 + $0x160] sm:$0xff]
    %v1905 = vld [vmem:[#allocation9 + $0x168] sm:$0xff]
    %v1906 = vld [vmem:[#allocation9 + $0x170] sm:$0xff]
    %v1907 = vld [vmem:[#allocation9 + $0x178] sm:$0xff]
    %v1908 = vld [vmem:[%s8] sm:$0x7]
    %v1910 = vperm.slane %v1908, 0
    %v1911 = vperm.slane %v1908, 1
    %v1912 = vperm.slane %v1908, 2
    %1916 = vmatpush.msra.mxu0 %v1905
    %1917 = vmatpush.msra.mxu0 %v1902
    %1918 = vmatpush.msra.mxu0 %v1899
    %1919 = vmatpush.msra.mxu0 %v1896
    %1920 = vmatpush.msra.mxu0 %v1893
    %1921 = vmatpush.msra.mxu0 %v1890
    %1922 = vmatpush.msra.mxu0 %v1887
    %1923 = vmatpush.msra.mxu0 %v1884
    %1924 = vmatpush.msra.mxu0 %v1881
    %1925 = vmatpush.msra.mxu0 %v1878
    %1926 = vmatpush.msra.mxu0 %v1875
    %1927 = vmatpush.msra.mxu0 %v1872
    %1928 = vmatpush.msra.mxu0 %v1869
    %1929 = vmatpush.msra.mxu0 %v1866
    %1930 = vmatpush.msra.mxu0 %v1863
    %1931 = vmatpush.msra.mxu0 %v1860
    %1932 = vmatmul.f32.gmra.mxu0 %v1746
    %v1933 = vpop.f32.mrf.mxu0
    %v1934 = vadd.f32 %v1910, %v1933
    %1935 = vdwg.mxu0
    %1936 = vmatpush.msra.mxu0 %v1906
    %1937 = vmatpush.msra.mxu0 %v1903
    %1938 = vmatpush.msra.mxu0 %v1900
    %1939 = vmatpush.msra.mxu0 %v1897
    %1940 = vmatpush.msra.mxu0 %v1894
    %1941 = vmatpush.msra.mxu0 %v1891
    %1942 = vmatpush.msra.mxu0 %v1888
    %1943 = vmatpush.msra.mxu0 %v1885
    %1944 = vmatpush.msra.mxu0 %v1882
    %1945 = vmatpush.msra.mxu0 %v1879
    %1946 = vmatpush.msra.mxu0 %v1876
    %1947 = vmatpush.msra.mxu0 %v1873
    %1948 = vmatpush.msra.mxu0 %v1870
    %1949 = vmatpush.msra.mxu0 %v1867
    %1950 = vmatpush.msra.mxu0 %v1864
    %1951 = vmatpush.msra.mxu0 %v1861
    %1952 = vmatmul.f32.gmra.mxu0 %v1746
    %v1953 = vpop.f32.mrf.mxu0
    %v1954 = vadd.f32 %v1911, %v1953
    %1955 = vdwg.mxu0
    %1956 = vmatpush.msra.mxu0 %v1907
    %1957 = vmatpush.msra.mxu0 %v1904
    %1958 = vmatpush.msra.mxu0 %v1901
    %1959 = vmatpush.msra.mxu0 %v1898
    %1960 = vmatpush.msra.mxu0 %v1895
    %1961 = vmatpush.msra.mxu0 %v1892
    %1962 = vmatpush.msra.mxu0 %v1889
    %1963 = vmatpush.msra.mxu0 %v1886
    %1964 = vmatpush.msra.mxu0 %v1883
    %1965 = vmatpush.msra.mxu0 %v1880
    %1966 = vmatpush.msra.mxu0 %v1877
    %1967 = vmatpush.msra.mxu0 %v1874
    %1968 = vmatpush.msra.mxu0 %v1871
    %1969 = vmatpush.msra.mxu0 %v1868
    %1970 = vmatpush.msra.mxu0 %v1865
    %1971 = vmatpush.msra.mxu0 %v1862
    %1972 = vmatmul.f32.gmra.mxu0 %v1746
    %v1973 = vpop.f32.mrf.mxu0
    %v1974 = vadd.f32 %v1912, %v1973
    %1975 = vdwg.mxu0
    %v1976 = vld [vmem:[#allocation10] sm:$0xff]
    %v1977 = vld [vmem:[#allocation10 + $0x8] sm:$0xff]
    %v1978 = vld [vmem:[#allocation10 + $0x10] sm:$0xff]
    %v1979 = vld [vmem:[#allocation10 + $0x18] sm:$0xff]
    %v1980 = vld [vmem:[#allocation10 + $0x20] sm:$0xff]
    %v1981 = vld [vmem:[#allocation10 + $0x28] sm:$0xff]
    %v1982 = vld [vmem:[#allocation10 + $0x30] sm:$0xff]
    %v1983 = vld [vmem:[#allocation10 + $0x38] sm:$0xff]
    %v1984 = vld [vmem:[#allocation10 + $0x40] sm:$0xff]
    %v1985 = vld [vmem:[#allocation10 + $0x48] sm:$0xff]
    %v1986 = vld [vmem:[#allocation10 + $0x50] sm:$0xff]
    %v1987 = vld [vmem:[#allocation10 + $0x58] sm:$0xff]
    %v1988 = vld [vmem:[#allocation10 + $0x60] sm:$0xff]
    %v1989 = vld [vmem:[#allocation10 + $0x68] sm:$0xff]
    %v1990 = vld [vmem:[#allocation10 + $0x70] sm:$0xff]
    %v1991 = vld [vmem:[#allocation10 + $0x78] sm:$0xff]
    %v1992 = vld [vmem:[#allocation10 + $0x80] sm:$0xff]
    %v1993 = vld [vmem:[#allocation10 + $0x88] sm:$0xff]
    %v1994 = vld [vmem:[#allocation10 + $0x90] sm:$0xff]
    %v1995 = vld [vmem:[#allocation10 + $0x98] sm:$0xff]
    %v1996 = vld [vmem:[#allocation10 + $0xa0] sm:$0xff]
    %v1997 = vld [vmem:[#allocation10 + $0xa8] sm:$0xff]
    %v1998 = vld [vmem:[#allocation10 + $0xb0] sm:$0xff]
    %v1999 = vld [vmem:[#allocation10 + $0xb8] sm:$0xff]
    %v2000 = vld [vmem:[#allocation10 + $0xc0] sm:$0xff]
    %v2001 = vld [vmem:[#allocation10 + $0xc8] sm:$0xff]
    %v2002 = vld [vmem:[#allocation10 + $0xd0] sm:$0xff]
    %v2003 = vld [vmem:[#allocation10 + $0xd8] sm:$0xff]
    %v2004 = vld [vmem:[#allocation10 + $0xe0] sm:$0xff]
    %v2005 = vld [vmem:[#allocation10 + $0xe8] sm:$0xff]
    %v2006 = vld [vmem:[#allocation10 + $0xf0] sm:$0xff]
    %v2007 = vld [vmem:[#allocation10 + $0xf8] sm:$0xff]
    %v2008 = vld [vmem:[#allocation10 + $0x100] sm:$0xff]
    %v2009 = vld [vmem:[#allocation10 + $0x108] sm:$0xff]
    %v2010 = vld [vmem:[#allocation10 + $0x110] sm:$0xff]
    %v2011 = vld [vmem:[#allocation10 + $0x118] sm:$0xff]
    %v2012 = vld [vmem:[#allocation10 + $0x120] sm:$0xff]
    %v2013 = vld [vmem:[#allocation10 + $0x128] sm:$0xff]
    %v2014 = vld [vmem:[#allocation10 + $0x130] sm:$0xff]
    %v2015 = vld [vmem:[#allocation10 + $0x138] sm:$0xff]
    %v2016 = vld [vmem:[#allocation10 + $0x140] sm:$0xff]
    %v2017 = vld [vmem:[#allocation10 + $0x148] sm:$0xff]
    %v2018 = vld [vmem:[#allocation10 + $0x150] sm:$0xff]
    %v2019 = vld [vmem:[#allocation10 + $0x158] sm:$0xff]
    %v2020 = vld [vmem:[#allocation10 + $0x160] sm:$0xff]
    %v2021 = vld [vmem:[#allocation10 + $0x168] sm:$0xff]
    %v2022 = vld [vmem:[#allocation10 + $0x170] sm:$0xff]
    %v2023 = vld [vmem:[#allocation10 + $0x178] sm:$0xff]
    %2024 = vmatpush.msra.mxu0 %v2021
    %2025 = vmatpush.msra.mxu0 %v2018
    %2026 = vmatpush.msra.mxu0 %v2015
    %2027 = vmatpush.msra.mxu0 %v2012
    %2028 = vmatpush.msra.mxu0 %v2009
    %2029 = vmatpush.msra.mxu0 %v2006
    %2030 = vmatpush.msra.mxu0 %v2003
    %2031 = vmatpush.msra.mxu0 %v2000
    %2032 = vmatpush.msra.mxu0 %v1997
    %2033 = vmatpush.msra.mxu0 %v1994
    %2034 = vmatpush.msra.mxu0 %v1991
    %2035 = vmatpush.msra.mxu0 %v1988
    %2036 = vmatpush.msra.mxu0 %v1985
    %2037 = vmatpush.msra.mxu0 %v1982
    %2038 = vmatpush.msra.mxu0 %v1979
    %2039 = vmatpush.msra.mxu0 %v1976
    %2040 = vmatmul.f32.gmra.mxu0 %v1692
    %v2041 = vpop.f32.mrf.mxu0
    %v2042 = vadd.f32 0.0, %v2041
    %2043 = vdwg.mxu0
    %2044 = vmatpush.msra.mxu0 %v2022
    %2045 = vmatpush.msra.mxu0 %v2019
    %2046 = vmatpush.msra.mxu0 %v2016
    %2047 = vmatpush.msra.mxu0 %v2013
    %2048 = vmatpush.msra.mxu0 %v2010
    %2049 = vmatpush.msra.mxu0 %v2007
    %2050 = vmatpush.msra.mxu0 %v2004
    %2051 = vmatpush.msra.mxu0 %v2001
    %2052 = vmatpush.msra.mxu0 %v1998
    %2053 = vmatpush.msra.mxu0 %v1995
    %2054 = vmatpush.msra.mxu0 %v1992
    %2055 = vmatpush.msra.mxu0 %v1989
    %2056 = vmatpush.msra.mxu0 %v1986
    %2057 = vmatpush.msra.mxu0 %v1983
    %2058 = vmatpush.msra.mxu0 %v1980
    %2059 = vmatpush.msra.mxu0 %v1977
    %2060 = vmatmul.f32.gmra.mxu0 %v1692
    %v2061 = vpop.f32.mrf.mxu0
    %v2062 = vadd.f32 0.0, %v2061
    %2063 = vdwg.mxu0
    %2064 = vmatpush.msra.mxu0 %v2023
    %2065 = vmatpush.msra.mxu0 %v2020
    %2066 = vmatpush.msra.mxu0 %v2017
    %2067 = vmatpush.msra.mxu0 %v2014
    %2068 = vmatpush.msra.mxu0 %v2011
    %2069 = vmatpush.msra.mxu0 %v2008
    %2070 = vmatpush.msra.mxu0 %v2005
    %2071 = vmatpush.msra.mxu0 %v2002
    %2072 = vmatpush.msra.mxu0 %v1999
    %2073 = vmatpush.msra.mxu0 %v1996
    %2074 = vmatpush.msra.mxu0 %v1993
    %2075 = vmatpush.msra.mxu0 %v1990
    %2076 = vmatpush.msra.mxu0 %v1987
    %2077 = vmatpush.msra.mxu0 %v1984
    %2078 = vmatpush.msra.mxu0 %v1981
    %2079 = vmatpush.msra.mxu0 %v1978
    %2080 = vmatmul.f32.gmra.mxu0 %v1692
    %v2081 = vpop.f32.mrf.mxu0
    %v2082 = vadd.f32 0.0, %v2081
    %2083 = vdwg.mxu0
    %v2084 = vld [vmem:[%s9] sm:$0x1]
    %v2085 = vadd.f32 %v1934, %v2042
    %v2086 = vadd.f32 %v1954, %v2062
    %v2087 = vxor.u32 %v2085, 2147483648
    %v2088 = vxor.u32 %v2086, 2147483648
    %v2089 = vmul.f32 %v2087, 1.442695
    %v2090 = vpow.pop %v2089
    %v2091 = vmul.f32 %v2088, 1.442695
    %v2092 = vpow.pop %v2091
    %v2093 = vadd.f32 %v2090, 1.0
    %v2094 = vadd.f32 %v2092, 1.0
    %v2095 = vrcp.pop %v2093
    %v2096 = vmul.f32 %v2093, %v2095
    %v2097 = vsub.f32 1.0, %v2096
    %v2098 = vmul.f32 %v2095, %v2097
    %v2099 = vadd.f32 %v2095, %v2098
    %vm2100 = vweird.f32 %v2093
    %vm2101 = vweird.f32 %v2095
    %vm2102 = vmor %vm2100, %vm2101
    %v2103 = vsel %vm2102, %v2095, %v2099
    %v2104 = vand.u32 2147483647, %v2093
    %vm2105 = vcmp.eq.f32.partialorder %v2104, 8.507059e+37
    %v2106 = vand.u32 %v2093, 2147483648
    %v2107 = vor.u32 1.1754944e-38, %v2106
    %v2108 = vsel %vm2105, %v2107, %v2103
    %v2109 = vmul.f32 1.0, %v2108
    %v2110 = vrcp.pop %v2094
    %v2111 = vmul.f32 %v2094, %v2110
    %v2112 = vsub.f32 1.0, %v2111
    %v2113 = vmul.f32 %v2110, %v2112
    %v2114 = vadd.f32 %v2110, %v2113
    %vm2115 = vweird.f32 %v2094
    %vm2116 = vweird.f32 %v2110
    %vm2117 = vmor %vm2115, %vm2116
    %v2118 = vsel %vm2117, %v2110, %v2114
    %v2119 = vand.u32 2147483647, %v2094
    %vm2120 = vcmp.eq.f32.partialorder %v2119, 8.507059e+37
    %v2121 = vand.u32 %v2094, 2147483648
    %v2122 = vor.u32 1.1754944e-38, %v2121
    %v2123 = vsel %vm2120, %v2122, %v2118
    %v2124 = vmul.f32 1.0, %v2123
    %v2126 = vperm.slane %v2084, 0
    %v2128 = vadd.f32 %v2082, %v2126
    %v2129 = vmul.f32 %v2109, %v2128
    %v2130 = vadd.f32 %v1974, %v2129
    %v2131 = vtanh.pop %v2130
    %v2132 = vsub.f32 1.0, %v2124
    %v2133 = vmul.f32 %v2132, %v2131
    %v2134 = vmul.f32 %v2124, %v1692
    %v2135 = vadd.f32 %v2133, %v2134
    %2136 = vst [vmem:[#allocation3 + $0x6] sm:$0x3] %v2135
    %v2137 = vld [vmem:[#allocation2 + $0x18] sm:$0xc]
    %v2138 = vld [vmem:[#allocation2 + $0x20] sm:$0xc]
    %v2139 = vld [vmem:[#allocation2 + $0x28] sm:$0xc]
    %v2140 = vld [vmem:[#allocation7] sm:$0xff]
    %v2141 = vld [vmem:[#allocation7 + $0x8] sm:$0xff]
    %v2142 = vld [vmem:[#allocation7 + $0x10] sm:$0xff]
    %v2143 = vld [vmem:[#allocation7 + $0x18] sm:$0xff]
    %v2144 = vld [vmem:[#allocation7 + $0x20] sm:$0xff]
    %v2145 = vld [vmem:[#allocation7 + $0x28] sm:$0xff]
    %v2146 = vld [vmem:[#allocation7 + $0x30] sm:$0xff]
    %v2147 = vld [vmem:[#allocation7 + $0x38] sm:$0xff]
    %v2148 = vld [vmem:[#allocation7 + $0x40] sm:$0xff]
    %v2149 = vld [vmem:[#allocation7 + $0x48] sm:$0xff]
    %v2150 = vld [vmem:[#allocation7 + $0x50] sm:$0xff]
    %v2151 = vld [vmem:[#allocation7 + $0x58] sm:$0xff]
    %v2152 = vld [vmem:[#allocation7 + $0x60] sm:$0xff]
    %v2153 = vld [vmem:[#allocation7 + $0x68] sm:$0xff]
    %v2154 = vld [vmem:[#allocation7 + $0x70] sm:$0xff]
    %v2155 = vld [vmem:[#allocation7 + $0x78] sm:$0xff]
    %v2156 = vld [vmem:[#allocation7 + $0x80] sm:$0xff]
    %v2157 = vld [vmem:[#allocation7 + $0x88] sm:$0xff]
    %v2158 = vld [vmem:[#allocation7 + $0x90] sm:$0xff]
    %v2159 = vld [vmem:[#allocation7 + $0x98] sm:$0xff]
    %v2160 = vld [vmem:[#allocation7 + $0xa0] sm:$0xff]
    %v2161 = vld [vmem:[#allocation7 + $0xa8] sm:$0xff]
    %v2162 = vld [vmem:[#allocation7 + $0xb0] sm:$0xff]
    %v2163 = vld [vmem:[#allocation7 + $0xb8] sm:$0xff]
    %v2164 = vld [vmem:[#allocation7 + $0xc0] sm:$0xff]
    %v2165 = vld [vmem:[#allocation7 + $0xc8] sm:$0xff]
    %v2166 = vld [vmem:[#allocation7 + $0xd0] sm:$0xff]
    %v2167 = vld [vmem:[#allocation7 + $0xd8] sm:$0xff]
    %v2168 = vld [vmem:[#allocation7 + $0xe0] sm:$0xff]
    %v2169 = vld [vmem:[#allocation7 + $0xe8] sm:$0xff]
    %v2170 = vld [vmem:[#allocation7 + $0xf0] sm:$0xff]
    %v2171 = vld [vmem:[#allocation7 + $0xf8] sm:$0xff]
    %v2172 = vld [vmem:[#allocation7 + $0x100] sm:$0xff]
    %v2173 = vld [vmem:[#allocation7 + $0x108] sm:$0xff]
    %v2174 = vld [vmem:[#allocation7 + $0x110] sm:$0xff]
    %v2175 = vld [vmem:[#allocation7 + $0x118] sm:$0xff]
    %v2176 = vld [vmem:[#allocation7 + $0x120] sm:$0xff]
    %v2177 = vld [vmem:[#allocation7 + $0x128] sm:$0xff]
    %v2178 = vld [vmem:[#allocation7 + $0x130] sm:$0xff]
    %v2179 = vld [vmem:[#allocation7 + $0x138] sm:$0xff]
    %v2180 = vld [vmem:[#allocation7 + $0x140] sm:$0xff]
    %v2181 = vld [vmem:[#allocation7 + $0x148] sm:$0xff]
    %v2182 = vld [vmem:[#allocation7 + $0x150] sm:$0xff]
    %v2183 = vld [vmem:[#allocation7 + $0x158] sm:$0xff]
    %v2184 = vld [vmem:[#allocation7 + $0x160] sm:$0xff]
    %v2185 = vld [vmem:[#allocation7 + $0x168] sm:$0xff]
    %v2186 = vld [vmem:[#allocation7 + $0x170] sm:$0xff]
    %v2187 = vld [vmem:[#allocation7 + $0x178] sm:$0xff]
    %2188 = vmatpush.msra.mxu0 %v2185
    %2189 = vmatpush.msra.mxu0 %v2182
    %2190 = vmatpush.msra.mxu0 %v2179
    %2191 = vmatpush.msra.mxu0 %v2176
    %2192 = vmatpush.msra.mxu0 %v2173
    %2193 = vmatpush.msra.mxu0 %v2170
    %2194 = vmatpush.msra.mxu0 %v2167
    %2195 = vmatpush.msra.mxu0 %v2164
    %2196 = vmatpush.msra.mxu0 %v2161
    %2197 = vmatpush.msra.mxu0 %v2158
    %2198 = vmatpush.msra.mxu0 %v2155
    %2199 = vmatpush.msra.mxu0 %v2152
    %2200 = vmatpush.msra.mxu0 %v2149
    %2201 = vmatpush.msra.mxu0 %v2146
    %2202 = vmatpush.msra.mxu0 %v2143
    %2203 = vmatpush.msra.mxu0 %v2140
    %2204 = vmatmul.f32.gmra.mxu0 %v1859
    %v2205 = vpop.f32.mrf.mxu0
    %v2206 = vadd.f32 0.0, %v2205
    %2207 = vdwg.mxu0
    %2208 = vmatpush.msra.mxu0 %v2186
    %2209 = vmatpush.msra.mxu0 %v2183
    %2210 = vmatpush.msra.mxu0 %v2180
    %2211 = vmatpush.msra.mxu0 %v2177
    %2212 = vmatpush.msra.mxu0 %v2174
    %2213 = vmatpush.msra.mxu0 %v2171
    %2214 = vmatpush.msra.mxu0 %v2168
    %2215 = vmatpush.msra.mxu0 %v2165
    %2216 = vmatpush.msra.mxu0 %v2162
    %2217 = vmatpush.msra.mxu0 %v2159
    %2218 = vmatpush.msra.mxu0 %v2156
    %2219 = vmatpush.msra.mxu0 %v2153
    %2220 = vmatpush.msra.mxu0 %v2150
    %2221 = vmatpush.msra.mxu0 %v2147
    %2222 = vmatpush.msra.mxu0 %v2144
    %2223 = vmatpush.msra.mxu0 %v2141
    %2224 = vmatmul.f32.gmra.mxu0 %v1859
    %v2225 = vpop.f32.mrf.mxu0
    %v2226 = vadd.f32 0.0, %v2225
    %2227 = vdwg.mxu0
    %2228 = vmatpush.msra.mxu0 %v2187
    %2229 = vmatpush.msra.mxu0 %v2184
    %2230 = vmatpush.msra.mxu0 %v2181
    %2231 = vmatpush.msra.mxu0 %v2178
    %2232 = vmatpush.msra.mxu0 %v2175
    %2233 = vmatpush.msra.mxu0 %v2172
    %2234 = vmatpush.msra.mxu0 %v2169
    %2235 = vmatpush.msra.mxu0 %v2166
    %2236 = vmatpush.msra.mxu0 %v2163
    %2237 = vmatpush.msra.mxu0 %v2160
    %2238 = vmatpush.msra.mxu0 %v2157
    %2239 = vmatpush.msra.mxu0 %v2154
    %2240 = vmatpush.msra.mxu0 %v2151
    %2241 = vmatpush.msra.mxu0 %v2148
    %2242 = vmatpush.msra.mxu0 %v2145
    %2243 = vmatpush.msra.mxu0 %v2142
    %2244 = vmatmul.f32.gmra.mxu0 %v1859
    %v2245 = vpop.f32.mrf.mxu0
    %v2246 = vadd.f32 0.0, %v2245
    %2247 = vdwg.mxu0
    %v2248 = vld [vmem:[%s5] sm:$0x1]
    %v2251 = vrot.slane %v2206, 6
    %v2252 = vrot.slane %v2226, 6
    %v2255 = vadd.f32 %v2137, %v2251
    %v2256 = vadd.f32 %v2138, %v2252
    %v2257 = vxor.u32 %v2255, 2147483648
    %v2258 = vxor.u32 %v2256, 2147483648
    %v2259 = vmul.f32 %v2257, 1.442695
    %v2260 = vpow.pop %v2259
    %v2261 = vmul.f32 %v2258, 1.442695
    %v2262 = vpow.pop %v2261
    %v2263 = vadd.f32 %v2260, 1.0
    %v2264 = vadd.f32 %v2262, 1.0
    %v2265 = vrcp.pop %v2263
    %v2266 = vmul.f32 %v2263, %v2265
    %v2267 = vsub.f32 1.0, %v2266
    %v2268 = vmul.f32 %v2265, %v2267
    %v2269 = vadd.f32 %v2265, %v2268
    %vm2270 = vweird.f32 %v2263
    %vm2271 = vweird.f32 %v2265
    %vm2272 = vmor %vm2270, %vm2271
    %v2273 = vsel %vm2272, %v2265, %v2269
    %v2274 = vand.u32 2147483647, %v2263
    %vm2275 = vcmp.eq.f32.partialorder %v2274, 8.507059e+37
    %v2276 = vand.u32 %v2263, 2147483648
    %v2277 = vor.u32 1.1754944e-38, %v2276
    %v2278 = vsel %vm2275, %v2277, %v2273
    %v2279 = vmul.f32 1.0, %v2278
    %v2280 = vrcp.pop %v2264
    %v2281 = vmul.f32 %v2264, %v2280
    %v2282 = vsub.f32 1.0, %v2281
    %v2283 = vmul.f32 %v2280, %v2282
    %v2284 = vadd.f32 %v2280, %v2283
    %vm2285 = vweird.f32 %v2264
    %vm2286 = vweird.f32 %v2280
    %vm2287 = vmor %vm2285, %vm2286
    %v2288 = vsel %vm2287, %v2280, %v2284
    %v2289 = vand.u32 2147483647, %v2264
    %vm2290 = vcmp.eq.f32.partialorder %v2289, 8.507059e+37
    %v2291 = vand.u32 %v2264, 2147483648
    %v2292 = vor.u32 1.1754944e-38, %v2291
    %v2293 = vsel %vm2290, %v2292, %v2288
    %v2294 = vmul.f32 1.0, %v2293
    %v2296 = vperm.slane %v2248, 0
    %v2298 = vadd.f32 %v2246, %v2296
    %v2300 = vrot.slane %v2298, 6
    %v2302 = vmul.f32 %v2279, %v2300
    %v2303 = vadd.f32 %v2139, %v2302
    %v2304 = vtanh.pop %v2303
    %v2305 = vsub.f32 1.0, %v2294
    %v2306 = vmul.f32 %v2305, %v2304
    %v2308 = vrot.slane %v1859, 6
    %v2310 = vmul.f32 %v2294, %v2308
    %v2311 = vadd.f32 %v2306, %v2310
    %v2312 = vld [vmem:[#allocation9] sm:$0xff]
    %v2313 = vld [vmem:[#allocation9 + $0x8] sm:$0xff]
    %v2314 = vld [vmem:[#allocation9 + $0x10] sm:$0xff]
    %v2315 = vld [vmem:[#allocation9 + $0x18] sm:$0xff]
    %v2316 = vld [vmem:[#allocation9 + $0x20] sm:$0xff]
    %v2317 = vld [vmem:[#allocation9 + $0x28] sm:$0xff]
    %v2318 = vld [vmem:[#allocation9 + $0x30] sm:$0xff]
    %v2319 = vld [vmem:[#allocation9 + $0x38] sm:$0xff]
    %v2320 = vld [vmem:[#allocation9 + $0x40] sm:$0xff]
    %v2321 = vld [vmem:[#allocation9 + $0x48] sm:$0xff]
    %v2322 = vld [vmem:[#allocation9 + $0x50] sm:$0xff]
    %v2323 = vld [vmem:[#allocation9 + $0x58] sm:$0xff]
    %v2324 = vld [vmem:[#allocation9 + $0x60] sm:$0xff]
    %v2325 = vld [vmem:[#allocation9 + $0x68] sm:$0xff]
    %v2326 = vld [vmem:[#allocation9 + $0x70] sm:$0xff]
    %v2327 = vld [vmem:[#allocation9 + $0x78] sm:$0xff]
    %v2328 = vld [vmem:[#allocation9 + $0x80] sm:$0xff]
    %v2329 = vld [vmem:[#allocation9 + $0x88] sm:$0xff]
    %v2330 = vld [vmem:[#allocation9 + $0x90] sm:$0xff]
    %v2331 = vld [vmem:[#allocation9 + $0x98] sm:$0xff]
    %v2332 = vld [vmem:[#allocation9 + $0xa0] sm:$0xff]
    %v2333 = vld [vmem:[#allocation9 + $0xa8] sm:$0xff]
    %v2334 = vld [vmem:[#allocation9 + $0xb0] sm:$0xff]
    %v2335 = vld [vmem:[#allocation9 + $0xb8] sm:$0xff]
    %v2336 = vld [vmem:[#allocation9 + $0xc0] sm:$0xff]
    %v2337 = vld [vmem:[#allocation9 + $0xc8] sm:$0xff]
    %v2338 = vld [vmem:[#allocation9 + $0xd0] sm:$0xff]
    %v2339 = vld [vmem:[#allocation9 + $0xd8] sm:$0xff]
    %v2340 = vld [vmem:[#allocation9 + $0xe0] sm:$0xff]
    %v2341 = vld [vmem:[#allocation9 + $0xe8] sm:$0xff]
    %v2342 = vld [vmem:[#allocation9 + $0xf0] sm:$0xff]
    %v2343 = vld [vmem:[#allocation9 + $0xf8] sm:$0xff]
    %v2344 = vld [vmem:[#allocation9 + $0x100] sm:$0xff]
    %v2345 = vld [vmem:[#allocation9 + $0x108] sm:$0xff]
    %v2346 = vld [vmem:[#allocation9 + $0x110] sm:$0xff]
    %v2347 = vld [vmem:[#allocation9 + $0x118] sm:$0xff]
    %v2348 = vld [vmem:[#allocation9 + $0x120] sm:$0xff]
    %v2349 = vld [vmem:[#allocation9 + $0x128] sm:$0xff]
    %v2350 = vld [vmem:[#allocation9 + $0x130] sm:$0xff]
    %v2351 = vld [vmem:[#allocation9 + $0x138] sm:$0xff]
    %v2352 = vld [vmem:[#allocation9 + $0x140] sm:$0xff]
    %v2353 = vld [vmem:[#allocation9 + $0x148] sm:$0xff]
    %v2354 = vld [vmem:[#allocation9 + $0x150] sm:$0xff]
    %v2355 = vld [vmem:[#allocation9 + $0x158] sm:$0xff]
    %v2356 = vld [vmem:[#allocation9 + $0x160] sm:$0xff]
    %v2357 = vld [vmem:[#allocation9 + $0x168] sm:$0xff]
    %v2358 = vld [vmem:[#allocation9 + $0x170] sm:$0xff]
    %v2359 = vld [vmem:[#allocation9 + $0x178] sm:$0xff]
    %v2360 = vld [vmem:[%s8] sm:$0x7]
    %v2362 = vperm.slane %v2360, 0
    %v2363 = vperm.slane %v2360, 1
    %v2364 = vperm.slane %v2360, 2
    %2368 = vmatpush.msra.mxu0 %v2357
    %2369 = vmatpush.msra.mxu0 %v2354
    %2370 = vmatpush.msra.mxu0 %v2351
    %2371 = vmatpush.msra.mxu0 %v2348
    %2372 = vmatpush.msra.mxu0 %v2345
    %2373 = vmatpush.msra.mxu0 %v2342
    %2374 = vmatpush.msra.mxu0 %v2339
    %2375 = vmatpush.msra.mxu0 %v2336
    %2376 = vmatpush.msra.mxu0 %v2333
    %2377 = vmatpush.msra.mxu0 %v2330
    %2378 = vmatpush.msra.mxu0 %v2327
    %2379 = vmatpush.msra.mxu0 %v2324
    %2380 = vmatpush.msra.mxu0 %v2321
    %2381 = vmatpush.msra.mxu0 %v2318
    %2382 = vmatpush.msra.mxu0 %v2315
    %2383 = vmatpush.msra.mxu0 %v2312
    %2384 = vmatmul.f32.gmra.mxu0 %v1859
    %v2385 = vpop.f32.mrf.mxu0
    %v2386 = vadd.f32 %v2362, %v2385
    %2387 = vdwg.mxu0
    %2388 = vmatpush.msra.mxu0 %v2358
    %2389 = vmatpush.msra.mxu0 %v2355
    %2390 = vmatpush.msra.mxu0 %v2352
    %2391 = vmatpush.msra.mxu0 %v2349
    %2392 = vmatpush.msra.mxu0 %v2346
    %2393 = vmatpush.msra.mxu0 %v2343
    %2394 = vmatpush.msra.mxu0 %v2340
    %2395 = vmatpush.msra.mxu0 %v2337
    %2396 = vmatpush.msra.mxu0 %v2334
    %2397 = vmatpush.msra.mxu0 %v2331
    %2398 = vmatpush.msra.mxu0 %v2328
    %2399 = vmatpush.msra.mxu0 %v2325
    %2400 = vmatpush.msra.mxu0 %v2322
    %2401 = vmatpush.msra.mxu0 %v2319
    %2402 = vmatpush.msra.mxu0 %v2316
    %2403 = vmatpush.msra.mxu0 %v2313
    %2404 = vmatmul.f32.gmra.mxu0 %v1859
    %v2405 = vpop.f32.mrf.mxu0
    %v2406 = vadd.f32 %v2363, %v2405
    %2407 = vdwg.mxu0
    %2408 = vmatpush.msra.mxu0 %v2359
    %2409 = vmatpush.msra.mxu0 %v2356
    %2410 = vmatpush.msra.mxu0 %v2353
    %2411 = vmatpush.msra.mxu0 %v2350
    %2412 = vmatpush.msra.mxu0 %v2347
    %2413 = vmatpush.msra.mxu0 %v2344
    %2414 = vmatpush.msra.mxu0 %v2341
    %2415 = vmatpush.msra.mxu0 %v2338
    %2416 = vmatpush.msra.mxu0 %v2335
    %2417 = vmatpush.msra.mxu0 %v2332
    %2418 = vmatpush.msra.mxu0 %v2329
    %2419 = vmatpush.msra.mxu0 %v2326
    %2420 = vmatpush.msra.mxu0 %v2323
    %2421 = vmatpush.msra.mxu0 %v2320
    %2422 = vmatpush.msra.mxu0 %v2317
    %2423 = vmatpush.msra.mxu0 %v2314
    %2424 = vmatmul.f32.gmra.mxu0 %v1859
    %v2425 = vpop.f32.mrf.mxu0
    %v2426 = vadd.f32 %v2364, %v2425
    %2427 = vdwg.mxu0
    %v2428 = vld [vmem:[#allocation10] sm:$0xff]
    %v2429 = vld [vmem:[#allocation10 + $0x8] sm:$0xff]
    %v2430 = vld [vmem:[#allocation10 + $0x10] sm:$0xff]
    %v2431 = vld [vmem:[#allocation10 + $0x18] sm:$0xff]
    %v2432 = vld [vmem:[#allocation10 + $0x20] sm:$0xff]
    %v2433 = vld [vmem:[#allocation10 + $0x28] sm:$0xff]
    %v2434 = vld [vmem:[#allocation10 + $0x30] sm:$0xff]
    %v2435 = vld [vmem:[#allocation10 + $0x38] sm:$0xff]
    %v2436 = vld [vmem:[#allocation10 + $0x40] sm:$0xff]
    %v2437 = vld [vmem:[#allocation10 + $0x48] sm:$0xff]
    %v2438 = vld [vmem:[#allocation10 + $0x50] sm:$0xff]
    %v2439 = vld [vmem:[#allocation10 + $0x58] sm:$0xff]
    %v2440 = vld [vmem:[#allocation10 + $0x60] sm:$0xff]
    %v2441 = vld [vmem:[#allocation10 + $0x68] sm:$0xff]
    %v2442 = vld [vmem:[#allocation10 + $0x70] sm:$0xff]
    %v2443 = vld [vmem:[#allocation10 + $0x78] sm:$0xff]
    %v2444 = vld [vmem:[#allocation10 + $0x80] sm:$0xff]
    %v2445 = vld [vmem:[#allocation10 + $0x88] sm:$0xff]
    %v2446 = vld [vmem:[#allocation10 + $0x90] sm:$0xff]
    %v2447 = vld [vmem:[#allocation10 + $0x98] sm:$0xff]
    %v2448 = vld [vmem:[#allocation10 + $0xa0] sm:$0xff]
    %v2449 = vld [vmem:[#allocation10 + $0xa8] sm:$0xff]
    %v2450 = vld [vmem:[#allocation10 + $0xb0] sm:$0xff]
    %v2451 = vld [vmem:[#allocation10 + $0xb8] sm:$0xff]
    %v2452 = vld [vmem:[#allocation10 + $0xc0] sm:$0xff]
    %v2453 = vld [vmem:[#allocation10 + $0xc8] sm:$0xff]
    %v2454 = vld [vmem:[#allocation10 + $0xd0] sm:$0xff]
    %v2455 = vld [vmem:[#allocation10 + $0xd8] sm:$0xff]
    %v2456 = vld [vmem:[#allocation10 + $0xe0] sm:$0xff]
    %v2457 = vld [vmem:[#allocation10 + $0xe8] sm:$0xff]
    %v2458 = vld [vmem:[#allocation10 + $0xf0] sm:$0xff]
    %v2459 = vld [vmem:[#allocation10 + $0xf8] sm:$0xff]
    %v2460 = vld [vmem:[#allocation10 + $0x100] sm:$0xff]
    %v2461 = vld [vmem:[#allocation10 + $0x108] sm:$0xff]
    %v2462 = vld [vmem:[#allocation10 + $0x110] sm:$0xff]
    %v2463 = vld [vmem:[#allocation10 + $0x118] sm:$0xff]
    %v2464 = vld [vmem:[#allocation10 + $0x120] sm:$0xff]
    %v2465 = vld [vmem:[#allocation10 + $0x128] sm:$0xff]
    %v2466 = vld [vmem:[#allocation10 + $0x130] sm:$0xff]
    %v2467 = vld [vmem:[#allocation10 + $0x138] sm:$0xff]
    %v2468 = vld [vmem:[#allocation10 + $0x140] sm:$0xff]
    %v2469 = vld [vmem:[#allocation10 + $0x148] sm:$0xff]
    %v2470 = vld [vmem:[#allocation10 + $0x150] sm:$0xff]
    %v2471 = vld [vmem:[#allocation10 + $0x158] sm:$0xff]
    %v2472 = vld [vmem:[#allocation10 + $0x160] sm:$0xff]
    %v2473 = vld [vmem:[#allocation10 + $0x168] sm:$0xff]
    %v2474 = vld [vmem:[#allocation10 + $0x170] sm:$0xff]
    %v2475 = vld [vmem:[#allocation10 + $0x178] sm:$0xff]
    %2476 = vmatpush.msra.mxu0 %v2473
    %2477 = vmatpush.msra.mxu0 %v2470
    %2478 = vmatpush.msra.mxu0 %v2467
    %2479 = vmatpush.msra.mxu0 %v2464
    %2480 = vmatpush.msra.mxu0 %v2461
    %2481 = vmatpush.msra.mxu0 %v2458
    %2482 = vmatpush.msra.mxu0 %v2455
    %2483 = vmatpush.msra.mxu0 %v2452
    %2484 = vmatpush.msra.mxu0 %v2449
    %2485 = vmatpush.msra.mxu0 %v2446
    %2486 = vmatpush.msra.mxu0 %v2443
    %2487 = vmatpush.msra.mxu0 %v2440
    %2488 = vmatpush.msra.mxu0 %v2437
    %2489 = vmatpush.msra.mxu0 %v2434
    %2490 = vmatpush.msra.mxu0 %v2431
    %2491 = vmatpush.msra.mxu0 %v2428
    %2492 = vmatmul.f32.gmra.mxu0 %v2135
    %v2493 = vpop.f32.mrf.mxu0
    %v2494 = vadd.f32 0.0, %v2493
    %2495 = vdwg.mxu0
    %2496 = vmatpush.msra.mxu0 %v2474
    %2497 = vmatpush.msra.mxu0 %v2471
    %2498 = vmatpush.msra.mxu0 %v2468
    %2499 = vmatpush.msra.mxu0 %v2465
    %2500 = vmatpush.msra.mxu0 %v2462
    %2501 = vmatpush.msra.mxu0 %v2459
    %2502 = vmatpush.msra.mxu0 %v2456
    %2503 = vmatpush.msra.mxu0 %v2453
    %2504 = vmatpush.msra.mxu0 %v2450
    %2505 = vmatpush.msra.mxu0 %v2447
    %2506 = vmatpush.msra.mxu0 %v2444
    %2507 = vmatpush.msra.mxu0 %v2441
    %2508 = vmatpush.msra.mxu0 %v2438
    %2509 = vmatpush.msra.mxu0 %v2435
    %2510 = vmatpush.msra.mxu0 %v2432
    %2511 = vmatpush.msra.mxu0 %v2429
    %2512 = vmatmul.f32.gmra.mxu0 %v2135
    %v2513 = vpop.f32.mrf.mxu0
    %v2514 = vadd.f32 0.0, %v2513
    %2515 = vdwg.mxu0
    %2516 = vmatpush.msra.mxu0 %v2475
    %2517 = vmatpush.msra.mxu0 %v2472
    %2518 = vmatpush.msra.mxu0 %v2469
    %2519 = vmatpush.msra.mxu0 %v2466
    %2520 = vmatpush.msra.mxu0 %v2463
    %2521 = vmatpush.msra.mxu0 %v2460
    %2522 = vmatpush.msra.mxu0 %v2457
    %2523 = vmatpush.msra.mxu0 %v2454
    %2524 = vmatpush.msra.mxu0 %v2451
    %2525 = vmatpush.msra.mxu0 %v2448
    %2526 = vmatpush.msra.mxu0 %v2445
    %2527 = vmatpush.msra.mxu0 %v2442
    %2528 = vmatpush.msra.mxu0 %v2439
    %2529 = vmatpush.msra.mxu0 %v2436
    %2530 = vmatpush.msra.mxu0 %v2433
    %2531 = vmatpush.msra.mxu0 %v2430
    %2532 = vmatmul.f32.gmra.mxu0 %v2135
    %v2533 = vpop.f32.mrf.mxu0
    %v2534 = vadd.f32 0.0, %v2533
    %2535 = vdwg.mxu0
    %v2536 = vld [vmem:[%s9] sm:$0x1]
    %v2537 = vadd.f32 %v2386, %v2494
    %v2538 = vadd.f32 %v2406, %v2514
    %v2539 = vxor.u32 %v2537, 2147483648
    %v2540 = vxor.u32 %v2538, 2147483648
    %v2541 = vmul.f32 %v2539, 1.442695
    %v2542 = vpow.pop %v2541
    %v2543 = vmul.f32 %v2540, 1.442695
    %v2544 = vpow.pop %v2543
    %v2545 = vadd.f32 %v2542, 1.0
    %v2546 = vadd.f32 %v2544, 1.0
    %v2547 = vrcp.pop %v2545
    %v2548 = vmul.f32 %v2545, %v2547
    %v2549 = vsub.f32 1.0, %v2548
    %v2550 = vmul.f32 %v2547, %v2549
    %v2551 = vadd.f32 %v2547, %v2550
    %vm2552 = vweird.f32 %v2545
    %vm2553 = vweird.f32 %v2547
    %vm2554 = vmor %vm2552, %vm2553
    %v2555 = vsel %vm2554, %v2547, %v2551
    %v2556 = vand.u32 2147483647, %v2545
    %vm2557 = vcmp.eq.f32.partialorder %v2556, 8.507059e+37
    %v2558 = vand.u32 %v2545, 2147483648
    %v2559 = vor.u32 1.1754944e-38, %v2558
    %v2560 = vsel %vm2557, %v2559, %v2555
    %v2561 = vmul.f32 1.0, %v2560
    %v2562 = vrcp.pop %v2546
    %v2563 = vmul.f32 %v2546, %v2562
    %v2564 = vsub.f32 1.0, %v2563
    %v2565 = vmul.f32 %v2562, %v2564
    %v2566 = vadd.f32 %v2562, %v2565
    %vm2567 = vweird.f32 %v2546
    %vm2568 = vweird.f32 %v2562
    %vm2569 = vmor %vm2567, %vm2568
    %v2570 = vsel %vm2569, %v2562, %v2566
    %v2571 = vand.u32 2147483647, %v2546
    %vm2572 = vcmp.eq.f32.partialorder %v2571, 8.507059e+37
    %v2573 = vand.u32 %v2546, 2147483648
    %v2574 = vor.u32 1.1754944e-38, %v2573
    %v2575 = vsel %vm2572, %v2574, %v2570
    %v2576 = vmul.f32 1.0, %v2575
    %v2578 = vperm.slane %v2536, 0
    %v2580 = vadd.f32 %v2534, %v2578
    %v2581 = vmul.f32 %v2561, %v2580
    %v2582 = vadd.f32 %v2426, %v2581
    %v2583 = vtanh.pop %v2582
    %v2584 = vsub.f32 1.0, %v2576
    %v2585 = vmul.f32 %v2584, %v2583
    %v2586 = vmul.f32 %v2576, %v2135
    %v2587 = vadd.f32 %v2585, %v2586
    %2588 = vst [vmem:[#allocation3 + $0x8] sm:$0x3] %v2587
    %v2589 = vld [vmem:[#allocation2 + $0x18] sm:$0x30]
    %v2590 = vld [vmem:[#allocation2 + $0x20] sm:$0x30]
    %v2591 = vld [vmem:[#allocation2 + $0x28] sm:$0x30]
    %v2592 = vld [vmem:[#allocation7] sm:$0xff]
    %v2593 = vld [vmem:[#allocation7 + $0x8] sm:$0xff]
    %v2594 = vld [vmem:[#allocation7 + $0x10] sm:$0xff]
    %v2595 = vld [vmem:[#allocation7 + $0x18] sm:$0xff]
    %v2596 = vld [vmem:[#allocation7 + $0x20] sm:$0xff]
    %v2597 = vld [vmem:[#allocation7 + $0x28] sm:$0xff]
    %v2598 = vld [vmem:[#allocation7 + $0x30] sm:$0xff]
    %v2599 = vld [vmem:[#allocation7 + $0x38] sm:$0xff]
    %v2600 = vld [vmem:[#allocation7 + $0x40] sm:$0xff]
    %v2601 = vld [vmem:[#allocation7 + $0x48] sm:$0xff]
    %v2602 = vld [vmem:[#allocation7 + $0x50] sm:$0xff]
    %v2603 = vld [vmem:[#allocation7 + $0x58] sm:$0xff]
    %v2604 = vld [vmem:[#allocation7 + $0x60] sm:$0xff]
    %v2605 = vld [vmem:[#allocation7 + $0x68] sm:$0xff]
    %v2606 = vld [vmem:[#allocation7 + $0x70] sm:$0xff]
    %v2607 = vld [vmem:[#allocation7 + $0x78] sm:$0xff]
    %v2608 = vld [vmem:[#allocation7 + $0x80] sm:$0xff]
    %v2609 = vld [vmem:[#allocation7 + $0x88] sm:$0xff]
    %v2610 = vld [vmem:[#allocation7 + $0x90] sm:$0xff]
    %v2611 = vld [vmem:[#allocation7 + $0x98] sm:$0xff]
    %v2612 = vld [vmem:[#allocation7 + $0xa0] sm:$0xff]
    %v2613 = vld [vmem:[#allocation7 + $0xa8] sm:$0xff]
    %v2614 = vld [vmem:[#allocation7 + $0xb0] sm:$0xff]
    %v2615 = vld [vmem:[#allocation7 + $0xb8] sm:$0xff]
    %v2616 = vld [vmem:[#allocation7 + $0xc0] sm:$0xff]
    %v2617 = vld [vmem:[#allocation7 + $0xc8] sm:$0xff]
    %v2618 = vld [vmem:[#allocation7 + $0xd0] sm:$0xff]
    %v2619 = vld [vmem:[#allocation7 + $0xd8] sm:$0xff]
    %v2620 = vld [vmem:[#allocation7 + $0xe0] sm:$0xff]
    %v2621 = vld [vmem:[#allocation7 + $0xe8] sm:$0xff]
    %v2622 = vld [vmem:[#allocation7 + $0xf0] sm:$0xff]
    %v2623 = vld [vmem:[#allocation7 + $0xf8] sm:$0xff]
    %v2624 = vld [vmem:[#allocation7 + $0x100] sm:$0xff]
    %v2625 = vld [vmem:[#allocation7 + $0x108] sm:$0xff]
    %v2626 = vld [vmem:[#allocation7 + $0x110] sm:$0xff]
    %v2627 = vld [vmem:[#allocation7 + $0x118] sm:$0xff]
    %v2628 = vld [vmem:[#allocation7 + $0x120] sm:$0xff]
    %v2629 = vld [vmem:[#allocation7 + $0x128] sm:$0xff]
    %v2630 = vld [vmem:[#allocation7 + $0x130] sm:$0xff]
    %v2631 = vld [vmem:[#allocation7 + $0x138] sm:$0xff]
    %v2632 = vld [vmem:[#allocation7 + $0x140] sm:$0xff]
    %v2633 = vld [vmem:[#allocation7 + $0x148] sm:$0xff]
    %v2634 = vld [vmem:[#allocation7 + $0x150] sm:$0xff]
    %v2635 = vld [vmem:[#allocation7 + $0x158] sm:$0xff]
    %v2636 = vld [vmem:[#allocation7 + $0x160] sm:$0xff]
    %v2637 = vld [vmem:[#allocation7 + $0x168] sm:$0xff]
    %v2638 = vld [vmem:[#allocation7 + $0x170] sm:$0xff]
    %v2639 = vld [vmem:[#allocation7 + $0x178] sm:$0xff]
    %v2641 = vrot.slane %v2311, 2
    %2643 = vmatpush.msra.mxu0 %v2637
    %2644 = vmatpush.msra.mxu0 %v2634
    %2645 = vmatpush.msra.mxu0 %v2631
    %2646 = vmatpush.msra.mxu0 %v2628
    %2647 = vmatpush.msra.mxu0 %v2625
    %2648 = vmatpush.msra.mxu0 %v2622
    %2649 = vmatpush.msra.mxu0 %v2619
    %2650 = vmatpush.msra.mxu0 %v2616
    %2651 = vmatpush.msra.mxu0 %v2613
    %2652 = vmatpush.msra.mxu0 %v2610
    %2653 = vmatpush.msra.mxu0 %v2607
    %2654 = vmatpush.msra.mxu0 %v2604
    %2655 = vmatpush.msra.mxu0 %v2601
    %2656 = vmatpush.msra.mxu0 %v2598
    %2657 = vmatpush.msra.mxu0 %v2595
    %2658 = vmatpush.msra.mxu0 %v2592
    %2659 = vmatmul.f32.gmra.mxu0 %v2641
    %v2660 = vpop.f32.mrf.mxu0
    %v2661 = vadd.f32 0.0, %v2660
    %2662 = vdwg.mxu0
    %2663 = vmatpush.msra.mxu0 %v2638
    %2664 = vmatpush.msra.mxu0 %v2635
    %2665 = vmatpush.msra.mxu0 %v2632
    %2666 = vmatpush.msra.mxu0 %v2629
    %2667 = vmatpush.msra.mxu0 %v2626
    %2668 = vmatpush.msra.mxu0 %v2623
    %2669 = vmatpush.msra.mxu0 %v2620
    %2670 = vmatpush.msra.mxu0 %v2617
    %2671 = vmatpush.msra.mxu0 %v2614
    %2672 = vmatpush.msra.mxu0 %v2611
    %2673 = vmatpush.msra.mxu0 %v2608
    %2674 = vmatpush.msra.mxu0 %v2605
    %2675 = vmatpush.msra.mxu0 %v2602
    %2676 = vmatpush.msra.mxu0 %v2599
    %2677 = vmatpush.msra.mxu0 %v2596
    %2678 = vmatpush.msra.mxu0 %v2593
    %2679 = vmatmul.f32.gmra.mxu0 %v2641
    %v2680 = vpop.f32.mrf.mxu0
    %v2681 = vadd.f32 0.0, %v2680
    %2682 = vdwg.mxu0
    %2683 = vmatpush.msra.mxu0 %v2639
    %2684 = vmatpush.msra.mxu0 %v2636
    %2685 = vmatpush.msra.mxu0 %v2633
    %2686 = vmatpush.msra.mxu0 %v2630
    %2687 = vmatpush.msra.mxu0 %v2627
    %2688 = vmatpush.msra.mxu0 %v2624
    %2689 = vmatpush.msra.mxu0 %v2621
    %2690 = vmatpush.msra.mxu0 %v2618
    %2691 = vmatpush.msra.mxu0 %v2615
    %2692 = vmatpush.msra.mxu0 %v2612
    %2693 = vmatpush.msra.mxu0 %v2609
    %2694 = vmatpush.msra.mxu0 %v2606
    %2695 = vmatpush.msra.mxu0 %v2603
    %2696 = vmatpush.msra.mxu0 %v2600
    %2697 = vmatpush.msra.mxu0 %v2597
    %2698 = vmatpush.msra.mxu0 %v2594
    %2699 = vmatmul.f32.gmra.mxu0 %v2641
    %v2700 = vpop.f32.mrf.mxu0
    %v2701 = vadd.f32 0.0, %v2700
    %2702 = vdwg.mxu0
    %v2703 = vld [vmem:[%s5] sm:$0x1]
    %v2706 = vrot.slane %v2661, 4
    %v2707 = vrot.slane %v2681, 4
    %v2710 = vadd.f32 %v2589, %v2706
    %v2711 = vadd.f32 %v2590, %v2707
    %v2712 = vxor.u32 %v2710, 2147483648
    %v2713 = vxor.u32 %v2711, 2147483648
    %v2714 = vmul.f32 %v2712, 1.442695
    %v2715 = vpow.pop %v2714
    %v2716 = vmul.f32 %v2713, 1.442695
    %v2717 = vpow.pop %v2716
    %v2718 = vadd.f32 %v2715, 1.0
    %v2719 = vadd.f32 %v2717, 1.0
    %v2720 = vrcp.pop %v2718
    %v2721 = vmul.f32 %v2718, %v2720
    %v2722 = vsub.f32 1.0, %v2721
    %v2723 = vmul.f32 %v2720, %v2722
    %v2724 = vadd.f32 %v2720, %v2723
    %vm2725 = vweird.f32 %v2718
    %vm2726 = vweird.f32 %v2720
    %vm2727 = vmor %vm2725, %vm2726
    %v2728 = vsel %vm2727, %v2720, %v2724
    %v2729 = vand.u32 2147483647, %v2718
    %vm2730 = vcmp.eq.f32.partialorder %v2729, 8.507059e+37
    %v2731 = vand.u32 %v2718, 2147483648
    %v2732 = vor.u32 1.1754944e-38, %v2731
    %v2733 = vsel %vm2730, %v2732, %v2728
    %v2734 = vmul.f32 1.0, %v2733
    %v2735 = vrcp.pop %v2719
    %v2736 = vmul.f32 %v2719, %v2735
    %v2737 = vsub.f32 1.0, %v2736
    %v2738 = vmul.f32 %v2735, %v2737
    %v2739 = vadd.f32 %v2735, %v2738
    %vm2740 = vweird.f32 %v2719
    %vm2741 = vweird.f32 %v2735
    %vm2742 = vmor %vm2740, %vm2741
    %v2743 = vsel %vm2742, %v2735, %v2739
    %v2744 = vand.u32 2147483647, %v2719
    %vm2745 = vcmp.eq.f32.partialorder %v2744, 8.507059e+37
    %v2746 = vand.u32 %v2719, 2147483648
    %v2747 = vor.u32 1.1754944e-38, %v2746
    %v2748 = vsel %vm2745, %v2747, %v2743
    %v2749 = vmul.f32 1.0, %v2748
    %v2751 = vperm.slane %v2703, 0
    %v2753 = vadd.f32 %v2701, %v2751
    %v2755 = vrot.slane %v2753, 4
    %v2757 = vmul.f32 %v2734, %v2755
    %v2758 = vadd.f32 %v2591, %v2757
    %v2759 = vtanh.pop %v2758
    %v2760 = vsub.f32 1.0, %v2749
    %v2761 = vmul.f32 %v2760, %v2759
    %v2762 = vrot.slane %v2311, 6
    %v2764 = vmul.f32 %v2749, %v2762
    %v2765 = vadd.f32 %v2761, %v2764
    %v2766 = vld [vmem:[#allocation9] sm:$0xff]
    %v2767 = vld [vmem:[#allocation9 + $0x8] sm:$0xff]
    %v2768 = vld [vmem:[#allocation9 + $0x10] sm:$0xff]
    %v2769 = vld [vmem:[#allocation9 + $0x18] sm:$0xff]
    %v2770 = vld [vmem:[#allocation9 + $0x20] sm:$0xff]
    %v2771 = vld [vmem:[#allocation9 + $0x28] sm:$0xff]
    %v2772 = vld [vmem:[#allocation9 + $0x30] sm:$0xff]
    %v2773 = vld [vmem:[#allocation9 + $0x38] sm:$0xff]
    %v2774 = vld [vmem:[#allocation9 + $0x40] sm:$0xff]
    %v2775 = vld [vmem:[#allocation9 + $0x48] sm:$0xff]
    %v2776 = vld [vmem:[#allocation9 + $0x50] sm:$0xff]
    %v2777 = vld [vmem:[#allocation9 + $0x58] sm:$0xff]
    %v2778 = vld [vmem:[#allocation9 + $0x60] sm:$0xff]
    %v2779 = vld [vmem:[#allocation9 + $0x68] sm:$0xff]
    %v2780 = vld [vmem:[#allocation9 + $0x70] sm:$0xff]
    %v2781 = vld [vmem:[#allocation9 + $0x78] sm:$0xff]
    %v2782 = vld [vmem:[#allocation9 + $0x80] sm:$0xff]
    %v2783 = vld [vmem:[#allocation9 + $0x88] sm:$0xff]
    %v2784 = vld [vmem:[#allocation9 + $0x90] sm:$0xff]
    %v2785 = vld [vmem:[#allocation9 + $0x98] sm:$0xff]
    %v2786 = vld [vmem:[#allocation9 + $0xa0] sm:$0xff]
    %v2787 = vld [vmem:[#allocation9 + $0xa8] sm:$0xff]
    %v2788 = vld [vmem:[#allocation9 + $0xb0] sm:$0xff]
    %v2789 = vld [vmem:[#allocation9 + $0xb8] sm:$0xff]
    %v2790 = vld [vmem:[#allocation9 + $0xc0] sm:$0xff]
    %v2791 = vld [vmem:[#allocation9 + $0xc8] sm:$0xff]
    %v2792 = vld [vmem:[#allocation9 + $0xd0] sm:$0xff]
    %v2793 = vld [vmem:[#allocation9 + $0xd8] sm:$0xff]
    %v2794 = vld [vmem:[#allocation9 + $0xe0] sm:$0xff]
    %v2795 = vld [vmem:[#allocation9 + $0xe8] sm:$0xff]
    %v2796 = vld [vmem:[#allocation9 + $0xf0] sm:$0xff]
    %v2797 = vld [vmem:[#allocation9 + $0xf8] sm:$0xff]
    %v2798 = vld [vmem:[#allocation9 + $0x100] sm:$0xff]
    %v2799 = vld [vmem:[#allocation9 + $0x108] sm:$0xff]
    %v2800 = vld [vmem:[#allocation9 + $0x110] sm:$0xff]
    %v2801 = vld [vmem:[#allocation9 + $0x118] sm:$0xff]
    %v2802 = vld [vmem:[#allocation9 + $0x120] sm:$0xff]
    %v2803 = vld [vmem:[#allocation9 + $0x128] sm:$0xff]
    %v2804 = vld [vmem:[#allocation9 + $0x130] sm:$0xff]
    %v2805 = vld [vmem:[#allocation9 + $0x138] sm:$0xff]
    %v2806 = vld [vmem:[#allocation9 + $0x140] sm:$0xff]
    %v2807 = vld [vmem:[#allocation9 + $0x148] sm:$0xff]
    %v2808 = vld [vmem:[#allocation9 + $0x150] sm:$0xff]
    %v2809 = vld [vmem:[#allocation9 + $0x158] sm:$0xff]
    %v2810 = vld [vmem:[#allocation9 + $0x160] sm:$0xff]
    %v2811 = vld [vmem:[#allocation9 + $0x168] sm:$0xff]
    %v2812 = vld [vmem:[#allocation9 + $0x170] sm:$0xff]
    %v2813 = vld [vmem:[#allocation9 + $0x178] sm:$0xff]
    %v2814 = vld [vmem:[%s8] sm:$0x7]
    %v2816 = vperm.slane %v2814, 0
    %v2817 = vperm.slane %v2814, 1
    %v2818 = vperm.slane %v2814, 2
    %2822 = vmatpush.msra.mxu0 %v2811
    %2823 = vmatpush.msra.mxu0 %v2808
    %2824 = vmatpush.msra.mxu0 %v2805
    %2825 = vmatpush.msra.mxu0 %v2802
    %2826 = vmatpush.msra.mxu0 %v2799
    %2827 = vmatpush.msra.mxu0 %v2796
    %2828 = vmatpush.msra.mxu0 %v2793
    %2829 = vmatpush.msra.mxu0 %v2790
    %2830 = vmatpush.msra.mxu0 %v2787
    %2831 = vmatpush.msra.mxu0 %v2784
    %2832 = vmatpush.msra.mxu0 %v2781
    %2833 = vmatpush.msra.mxu0 %v2778
    %2834 = vmatpush.msra.mxu0 %v2775
    %2835 = vmatpush.msra.mxu0 %v2772
    %2836 = vmatpush.msra.mxu0 %v2769
    %2837 = vmatpush.msra.mxu0 %v2766
    %2838 = vmatmul.f32.gmra.mxu0 %v2641
    %v2839 = vpop.f32.mrf.mxu0
    %v2840 = vadd.f32 %v2816, %v2839
    %2841 = vdwg.mxu0
    %2842 = vmatpush.msra.mxu0 %v2812
    %2843 = vmatpush.msra.mxu0 %v2809
    %2844 = vmatpush.msra.mxu0 %v2806
    %2845 = vmatpush.msra.mxu0 %v2803
    %2846 = vmatpush.msra.mxu0 %v2800
    %2847 = vmatpush.msra.mxu0 %v2797
    %2848 = vmatpush.msra.mxu0 %v2794
    %2849 = vmatpush.msra.mxu0 %v2791
    %2850 = vmatpush.msra.mxu0 %v2788
    %2851 = vmatpush.msra.mxu0 %v2785
    %2852 = vmatpush.msra.mxu0 %v2782
    %2853 = vmatpush.msra.mxu0 %v2779
    %2854 = vmatpush.msra.mxu0 %v2776
    %2855 = vmatpush.msra.mxu0 %v2773
    %2856 = vmatpush.msra.mxu0 %v2770
    %2857 = vmatpush.msra.mxu0 %v2767
    %2858 = vmatmul.f32.gmra.mxu0 %v2641
    %v2859 = vpop.f32.mrf.mxu0
    %v2860 = vadd.f32 %v2817, %v2859
    %2861 = vdwg.mxu0
    %2862 = vmatpush.msra.mxu0 %v2813
    %2863 = vmatpush.msra.mxu0 %v2810
    %2864 = vmatpush.msra.mxu0 %v2807
    %2865 = vmatpush.msra.mxu0 %v2804
    %2866 = vmatpush.msra.mxu0 %v2801
    %2867 = vmatpush.msra.mxu0 %v2798
    %2868 = vmatpush.msra.mxu0 %v2795
    %2869 = vmatpush.msra.mxu0 %v2792
    %2870 = vmatpush.msra.mxu0 %v2789
    %2871 = vmatpush.msra.mxu0 %v2786
    %2872 = vmatpush.msra.mxu0 %v2783
    %2873 = vmatpush.msra.mxu0 %v2780
    %2874 = vmatpush.msra.mxu0 %v2777
    %2875 = vmatpush.msra.mxu0 %v2774
    %2876 = vmatpush.msra.mxu0 %v2771
    %2877 = vmatpush.msra.mxu0 %v2768
    %2878 = vmatmul.f32.gmra.mxu0 %v2641
    %v2879 = vpop.f32.mrf.mxu0
    %v2880 = vadd.f32 %v2818, %v2879
    %2881 = vdwg.mxu0
    %v2882 = vld [vmem:[#allocation10] sm:$0xff]
    %v2883 = vld [vmem:[#allocation10 + $0x8] sm:$0xff]
    %v2884 = vld [vmem:[#allocation10 + $0x10] sm:$0xff]
    %v2885 = vld [vmem:[#allocation10 + $0x18] sm:$0xff]
    %v2886 = vld [vmem:[#allocation10 + $0x20] sm:$0xff]
    %v2887 = vld [vmem:[#allocation10 + $0x28] sm:$0xff]
    %v2888 = vld [vmem:[#allocation10 + $0x30] sm:$0xff]
    %v2889 = vld [vmem:[#allocation10 + $0x38] sm:$0xff]
    %v2890 = vld [vmem:[#allocation10 + $0x40] sm:$0xff]
    %v2891 = vld [vmem:[#allocation10 + $0x48] sm:$0xff]
    %v2892 = vld [vmem:[#allocation10 + $0x50] sm:$0xff]
    %v2893 = vld [vmem:[#allocation10 + $0x58] sm:$0xff]
    %v2894 = vld [vmem:[#allocation10 + $0x60] sm:$0xff]
    %v2895 = vld [vmem:[#allocation10 + $0x68] sm:$0xff]
    %v2896 = vld [vmem:[#allocation10 + $0x70] sm:$0xff]
    %v2897 = vld [vmem:[#allocation10 + $0x78] sm:$0xff]
    %v2898 = vld [vmem:[#allocation10 + $0x80] sm:$0xff]
    %v2899 = vld [vmem:[#allocation10 + $0x88] sm:$0xff]
    %v2900 = vld [vmem:[#allocation10 + $0x90] sm:$0xff]
    %v2901 = vld [vmem:[#allocation10 + $0x98] sm:$0xff]
    %v2902 = vld [vmem:[#allocation10 + $0xa0] sm:$0xff]
    %v2903 = vld [vmem:[#allocation10 + $0xa8] sm:$0xff]
    %v2904 = vld [vmem:[#allocation10 + $0xb0] sm:$0xff]
    %v2905 = vld [vmem:[#allocation10 + $0xb8] sm:$0xff]
    %v2906 = vld [vmem:[#allocation10 + $0xc0] sm:$0xff]
    %v2907 = vld [vmem:[#allocation10 + $0xc8] sm:$0xff]
    %v2908 = vld [vmem:[#allocation10 + $0xd0] sm:$0xff]
    %v2909 = vld [vmem:[#allocation10 + $0xd8] sm:$0xff]
    %v2910 = vld [vmem:[#allocation10 + $0xe0] sm:$0xff]
    %v2911 = vld [vmem:[#allocation10 + $0xe8] sm:$0xff]
    %v2912 = vld [vmem:[#allocation10 + $0xf0] sm:$0xff]
    %v2913 = vld [vmem:[#allocation10 + $0xf8] sm:$0xff]
    %v2914 = vld [vmem:[#allocation10 + $0x100] sm:$0xff]
    %v2915 = vld [vmem:[#allocation10 + $0x108] sm:$0xff]
    %v2916 = vld [vmem:[#allocation10 + $0x110] sm:$0xff]
    %v2917 = vld [vmem:[#allocation10 + $0x118] sm:$0xff]
    %v2918 = vld [vmem:[#allocation10 + $0x120] sm:$0xff]
    %v2919 = vld [vmem:[#allocation10 + $0x128] sm:$0xff]
    %v2920 = vld [vmem:[#allocation10 + $0x130] sm:$0xff]
    %v2921 = vld [vmem:[#allocation10 + $0x138] sm:$0xff]
    %v2922 = vld [vmem:[#allocation10 + $0x140] sm:$0xff]
    %v2923 = vld [vmem:[#allocation10 + $0x148] sm:$0xff]
    %v2924 = vld [vmem:[#allocation10 + $0x150] sm:$0xff]
    %v2925 = vld [vmem:[#allocation10 + $0x158] sm:$0xff]
    %v2926 = vld [vmem:[#allocation10 + $0x160] sm:$0xff]
    %v2927 = vld [vmem:[#allocation10 + $0x168] sm:$0xff]
    %v2928 = vld [vmem:[#allocation10 + $0x170] sm:$0xff]
    %v2929 = vld [vmem:[#allocation10 + $0x178] sm:$0xff]
    %2930 = vmatpush.msra.mxu0 %v2927
    %2931 = vmatpush.msra.mxu0 %v2924
    %2932 = vmatpush.msra.mxu0 %v2921
    %2933 = vmatpush.msra.mxu0 %v2918
    %2934 = vmatpush.msra.mxu0 %v2915
    %2935 = vmatpush.msra.mxu0 %v2912
    %2936 = vmatpush.msra.mxu0 %v2909
    %2937 = vmatpush.msra.mxu0 %v2906
    %2938 = vmatpush.msra.mxu0 %v2903
    %2939 = vmatpush.msra.mxu0 %v2900
    %2940 = vmatpush.msra.mxu0 %v2897
    %2941 = vmatpush.msra.mxu0 %v2894
    %2942 = vmatpush.msra.mxu0 %v2891
    %2943 = vmatpush.msra.mxu0 %v2888
    %2944 = vmatpush.msra.mxu0 %v2885
    %2945 = vmatpush.msra.mxu0 %v2882
    %2946 = vmatmul.f32.gmra.mxu0 %v2587
    %v2947 = vpop.f32.mrf.mxu0
    %v2948 = vadd.f32 0.0, %v2947
    %2949 = vdwg.mxu0
    %2950 = vmatpush.msra.mxu0 %v2928
    %2951 = vmatpush.msra.mxu0 %v2925
    %2952 = vmatpush.msra.mxu0 %v2922
    %2953 = vmatpush.msra.mxu0 %v2919
    %2954 = vmatpush.msra.mxu0 %v2916
    %2955 = vmatpush.msra.mxu0 %v2913
    %2956 = vmatpush.msra.mxu0 %v2910
    %2957 = vmatpush.msra.mxu0 %v2907
    %2958 = vmatpush.msra.mxu0 %v2904
    %2959 = vmatpush.msra.mxu0 %v2901
    %2960 = vmatpush.msra.mxu0 %v2898
    %2961 = vmatpush.msra.mxu0 %v2895
    %2962 = vmatpush.msra.mxu0 %v2892
    %2963 = vmatpush.msra.mxu0 %v2889
    %2964 = vmatpush.msra.mxu0 %v2886
    %2965 = vmatpush.msra.mxu0 %v2883
    %2966 = vmatmul.f32.gmra.mxu0 %v2587
    %v2967 = vpop.f32.mrf.mxu0
    %v2968 = vadd.f32 0.0, %v2967
    %2969 = vdwg.mxu0
    %2970 = vmatpush.msra.mxu0 %v2929
    %2971 = vmatpush.msra.mxu0 %v2926
    %2972 = vmatpush.msra.mxu0 %v2923
    %2973 = vmatpush.msra.mxu0 %v2920
    %2974 = vmatpush.msra.mxu0 %v2917
    %2975 = vmatpush.msra.mxu0 %v2914
    %2976 = vmatpush.msra.mxu0 %v2911
    %2977 = vmatpush.msra.mxu0 %v2908
    %2978 = vmatpush.msra.mxu0 %v2905
    %2979 = vmatpush.msra.mxu0 %v2902
    %2980 = vmatpush.msra.mxu0 %v2899
    %2981 = vmatpush.msra.mxu0 %v2896
    %2982 = vmatpush.msra.mxu0 %v2893
    %2983 = vmatpush.msra.mxu0 %v2890
    %2984 = vmatpush.msra.mxu0 %v2887
    %2985 = vmatpush.msra.mxu0 %v2884
    %2986 = vmatmul.f32.gmra.mxu0 %v2587
    %v2987 = vpop.f32.mrf.mxu0
    %v2988 = vadd.f32 0.0, %v2987
    %2989 = vdwg.mxu0
    %v2990 = vld [vmem:[%s9] sm:$0x1]
    %v2991 = vadd.f32 %v2840, %v2948
    %v2992 = vadd.f32 %v2860, %v2968
    %v2993 = vxor.u32 %v2991, 2147483648
    %v2994 = vxor.u32 %v2992, 2147483648
    %v2995 = vmul.f32 %v2993, 1.442695
    %v2996 = vpow.pop %v2995
    %v2997 = vmul.f32 %v2994, 1.442695
    %v2998 = vpow.pop %v2997
    %v2999 = vadd.f32 %v2996, 1.0
    %v3000 = vadd.f32 %v2998, 1.0
    %v3001 = vrcp.pop %v2999
    %v3002 = vmul.f32 %v2999, %v3001
    %v3003 = vsub.f32 1.0, %v3002
    %v3004 = vmul.f32 %v3001, %v3003
    %v3005 = vadd.f32 %v3001, %v3004
    %vm3006 = vweird.f32 %v2999
    %vm3007 = vweird.f32 %v3001
    %vm3008 = vmor %vm3006, %vm3007
    %v3009 = vsel %vm3008, %v3001, %v3005
    %v3010 = vand.u32 2147483647, %v2999
    %vm3011 = vcmp.eq.f32.partialorder %v3010, 8.507059e+37
    %v3012 = vand.u32 %v2999, 2147483648
    %v3013 = vor.u32 1.1754944e-38, %v3012
    %v3014 = vsel %vm3011, %v3013, %v3009
    %v3015 = vmul.f32 1.0, %v3014
    %v3016 = vrcp.pop %v3000
    %v3017 = vmul.f32 %v3000, %v3016
    %v3018 = vsub.f32 1.0, %v3017
    %v3019 = vmul.f32 %v3016, %v3018
    %v3020 = vadd.f32 %v3016, %v3019
    %vm3021 = vweird.f32 %v3000
    %vm3022 = vweird.f32 %v3016
    %vm3023 = vmor %vm3021, %vm3022
    %v3024 = vsel %vm3023, %v3016, %v3020
    %v3025 = vand.u32 2147483647, %v3000
    %vm3026 = vcmp.eq.f32.partialorder %v3025, 8.507059e+37
    %v3027 = vand.u32 %v3000, 2147483648
    %v3028 = vor.u32 1.1754944e-38, %v3027
    %v3029 = vsel %vm3026, %v3028, %v3024
    %v3030 = vmul.f32 1.0, %v3029
    %v3032 = vperm.slane %v2990, 0
    %v3034 = vadd.f32 %v2988, %v3032
    %v3035 = vmul.f32 %v3015, %v3034
    %v3036 = vadd.f32 %v2880, %v3035
    %v3037 = vtanh.pop %v3036
    %v3038 = vsub.f32 1.0, %v3030
    %v3039 = vmul.f32 %v3038, %v3037
    %v3040 = vmul.f32 %v3030, %v2587
    %v3041 = vadd.f32 %v3039, %v3040
    %3042 = vst [vmem:[#allocation3 + $0xa] sm:$0x3] %v3041
    %v3043 = vld [vmem:[#allocation2 + $0x18] sm:$0xc0]
    %v3044 = vld [vmem:[#allocation2 + $0x20] sm:$0xc0]
    %v3045 = vld [vmem:[#allocation2 + $0x28] sm:$0xc0]
    %v3046 = vld [vmem:[#allocation7] sm:$0xff]
    %v3047 = vld [vmem:[#allocation7 + $0x8] sm:$0xff]
    %v3048 = vld [vmem:[#allocation7 + $0x10] sm:$0xff]
    %v3049 = vld [vmem:[#allocation7 + $0x18] sm:$0xff]
    %v3050 = vld [vmem:[#allocation7 + $0x20] sm:$0xff]
    %v3051 = vld [vmem:[#allocation7 + $0x28] sm:$0xff]
    %v3052 = vld [vmem:[#allocation7 + $0x30] sm:$0xff]
    %v3053 = vld [vmem:[#allocation7 + $0x38] sm:$0xff]
    %v3054 = vld [vmem:[#allocation7 + $0x40] sm:$0xff]
    %v3055 = vld [vmem:[#allocation7 + $0x48] sm:$0xff]
    %v3056 = vld [vmem:[#allocation7 + $0x50] sm:$0xff]
    %v3057 = vld [vmem:[#allocation7 + $0x58] sm:$0xff]
    %v3058 = vld [vmem:[#allocation7 + $0x60] sm:$0xff]
    %v3059 = vld [vmem:[#allocation7 + $0x68] sm:$0xff]
    %v3060 = vld [vmem:[#allocation7 + $0x70] sm:$0xff]
    %v3061 = vld [vmem:[#allocation7 + $0x78] sm:$0xff]
    %v3062 = vld [vmem:[#allocation7 + $0x80] sm:$0xff]
    %v3063 = vld [vmem:[#allocation7 + $0x88] sm:$0xff]
    %v3064 = vld [vmem:[#allocation7 + $0x90] sm:$0xff]
    %v3065 = vld [vmem:[#allocation7 + $0x98] sm:$0xff]
    %v3066 = vld [vmem:[#allocation7 + $0xa0] sm:$0xff]
    %v3067 = vld [vmem:[#allocation7 + $0xa8] sm:$0xff]
    %v3068 = vld [vmem:[#allocation7 + $0xb0] sm:$0xff]
    %v3069 = vld [vmem:[#allocation7 + $0xb8] sm:$0xff]
    %v3070 = vld [vmem:[#allocation7 + $0xc0] sm:$0xff]
    %v3071 = vld [vmem:[#allocation7 + $0xc8] sm:$0xff]
    %v3072 = vld [vmem:[#allocation7 + $0xd0] sm:$0xff]
    %v3073 = vld [vmem:[#allocation7 + $0xd8] sm:$0xff]
    %v3074 = vld [vmem:[#allocation7 + $0xe0] sm:$0xff]
    %v3075 = vld [vmem:[#allocation7 + $0xe8] sm:$0xff]
    %v3076 = vld [vmem:[#allocation7 + $0xf0] sm:$0xff]
    %v3077 = vld [vmem:[#allocation7 + $0xf8] sm:$0xff]
    %v3078 = vld [vmem:[#allocation7 + $0x100] sm:$0xff]
    %v3079 = vld [vmem:[#allocation7 + $0x108] sm:$0xff]
    %v3080 = vld [vmem:[#allocation7 + $0x110] sm:$0xff]
    %v3081 = vld [vmem:[#allocation7 + $0x118] sm:$0xff]
    %v3082 = vld [vmem:[#allocation7 + $0x120] sm:$0xff]
    %v3083 = vld [vmem:[#allocation7 + $0x128] sm:$0xff]
    %v3084 = vld [vmem:[#allocation7 + $0x130] sm:$0xff]
    %v3085 = vld [vmem:[#allocation7 + $0x138] sm:$0xff]
    %v3086 = vld [vmem:[#allocation7 + $0x140] sm:$0xff]
    %v3087 = vld [vmem:[#allocation7 + $0x148] sm:$0xff]
    %v3088 = vld [vmem:[#allocation7 + $0x150] sm:$0xff]
    %v3089 = vld [vmem:[#allocation7 + $0x158] sm:$0xff]
    %v3090 = vld [vmem:[#allocation7 + $0x160] sm:$0xff]
    %v3091 = vld [vmem:[#allocation7 + $0x168] sm:$0xff]
    %v3092 = vld [vmem:[#allocation7 + $0x170] sm:$0xff]
    %v3093 = vld [vmem:[#allocation7 + $0x178] sm:$0xff]
    %v3095 = vrot.slane %v2765, 4
    %3097 = vmatpush.msra.mxu0 %v3091
    %3098 = vmatpush.msra.mxu0 %v3088
    %3099 = vmatpush.msra.mxu0 %v3085
    %3100 = vmatpush.msra.mxu0 %v3082
    %3101 = vmatpush.msra.mxu0 %v3079
    %3102 = vmatpush.msra.mxu0 %v3076
    %3103 = vmatpush.msra.mxu0 %v3073
    %3104 = vmatpush.msra.mxu0 %v3070
    %3105 = vmatpush.msra.mxu0 %v3067
    %3106 = vmatpush.msra.mxu0 %v3064
    %3107 = vmatpush.msra.mxu0 %v3061
    %3108 = vmatpush.msra.mxu0 %v3058
    %3109 = vmatpush.msra.mxu0 %v3055
    %3110 = vmatpush.msra.mxu0 %v3052
    %3111 = vmatpush.msra.mxu0 %v3049
    %3112 = vmatpush.msra.mxu0 %v3046
    %3113 = vmatmul.f32.gmra.mxu0 %v3095
    %v3114 = vpop.f32.mrf.mxu0
    %v3115 = vadd.f32 0.0, %v3114
    %3116 = vdwg.mxu0
    %3117 = vmatpush.msra.mxu0 %v3092
    %3118 = vmatpush.msra.mxu0 %v3089
    %3119 = vmatpush.msra.mxu0 %v3086
    %3120 = vmatpush.msra.mxu0 %v3083
    %3121 = vmatpush.msra.mxu0 %v3080
    %3122 = vmatpush.msra.mxu0 %v3077
    %3123 = vmatpush.msra.mxu0 %v3074
    %3124 = vmatpush.msra.mxu0 %v3071
    %3125 = vmatpush.msra.mxu0 %v3068
    %3126 = vmatpush.msra.mxu0 %v3065
    %3127 = vmatpush.msra.mxu0 %v3062
    %3128 = vmatpush.msra.mxu0 %v3059
    %3129 = vmatpush.msra.mxu0 %v3056
    %3130 = vmatpush.msra.mxu0 %v3053
    %3131 = vmatpush.msra.mxu0 %v3050
    %3132 = vmatpush.msra.mxu0 %v3047
    %3133 = vmatmul.f32.gmra.mxu0 %v3095
    %v3134 = vpop.f32.mrf.mxu0
    %v3135 = vadd.f32 0.0, %v3134
    %3136 = vdwg.mxu0
    %3137 = vmatpush.msra.mxu0 %v3093
    %3138 = vmatpush.msra.mxu0 %v3090
    %3139 = vmatpush.msra.mxu0 %v3087
    %3140 = vmatpush.msra.mxu0 %v3084
    %3141 = vmatpush.msra.mxu0 %v3081
    %3142 = vmatpush.msra.mxu0 %v3078
    %3143 = vmatpush.msra.mxu0 %v3075
    %3144 = vmatpush.msra.mxu0 %v3072
    %3145 = vmatpush.msra.mxu0 %v3069
    %3146 = vmatpush.msra.mxu0 %v3066
    %3147 = vmatpush.msra.mxu0 %v3063
    %3148 = vmatpush.msra.mxu0 %v3060
    %3149 = vmatpush.msra.mxu0 %v3057
    %3150 = vmatpush.msra.mxu0 %v3054
    %3151 = vmatpush.msra.mxu0 %v3051
    %3152 = vmatpush.msra.mxu0 %v3048
    %3153 = vmatmul.f32.gmra.mxu0 %v3095
    %v3154 = vpop.f32.mrf.mxu0
    %v3155 = vadd.f32 0.0, %v3154
    %3156 = vdwg.mxu0
    %v3157 = vld [vmem:[%s5] sm:$0x1]
    %v3160 = vrot.slane %v3115, 2
    %v3161 = vrot.slane %v3135, 2
    %v3164 = vadd.f32 %v3043, %v3160
    %v3165 = vadd.f32 %v3044, %v3161
    %v3166 = vxor.u32 %v3164, 2147483648
    %v3167 = vxor.u32 %v3165, 2147483648
    %v3168 = vmul.f32 %v3166, 1.442695
    %v3169 = vpow.pop %v3168
    %v3170 = vmul.f32 %v3167, 1.442695
    %v3171 = vpow.pop %v3170
    %v3172 = vadd.f32 %v3169, 1.0
    %v3173 = vadd.f32 %v3171, 1.0
    %v3174 = vrcp.pop %v3172
    %v3175 = vmul.f32 %v3172, %v3174
    %v3176 = vsub.f32 1.0, %v3175
    %v3177 = vmul.f32 %v3174, %v3176
    %v3178 = vadd.f32 %v3174, %v3177
    %vm3179 = vweird.f32 %v3172
    %vm3180 = vweird.f32 %v3174
    %vm3181 = vmor %vm3179, %vm3180
    %v3182 = vsel %vm3181, %v3174, %v3178
    %v3183 = vand.u32 2147483647, %v3172
    %vm3184 = vcmp.eq.f32.partialorder %v3183, 8.507059e+37
    %v3185 = vand.u32 %v3172, 2147483648
    %v3186 = vor.u32 1.1754944e-38, %v3185
    %v3187 = vsel %vm3184, %v3186, %v3182
    %v3188 = vmul.f32 1.0, %v3187
    %v3189 = vrcp.pop %v3173
    %v3190 = vmul.f32 %v3173, %v3189
    %v3191 = vsub.f32 1.0, %v3190
    %v3192 = vmul.f32 %v3189, %v3191
    %v3193 = vadd.f32 %v3189, %v3192
    %vm3194 = vweird.f32 %v3173
    %vm3195 = vweird.f32 %v3189
    %vm3196 = vmor %vm3194, %vm3195
    %v3197 = vsel %vm3196, %v3189, %v3193
    %v3198 = vand.u32 2147483647, %v3173
    %vm3199 = vcmp.eq.f32.partialorder %v3198, 8.507059e+37
    %v3200 = vand.u32 %v3173, 2147483648
    %v3201 = vor.u32 1.1754944e-38, %v3200
    %v3202 = vsel %vm3199, %v3201, %v3197
    %v3203 = vmul.f32 1.0, %v3202
    %v3205 = vperm.slane %v3157, 0
    %v3207 = vadd.f32 %v3155, %v3205
    %v3209 = vrot.slane %v3207, 2
    %v3211 = vmul.f32 %v3188, %v3209
    %v3212 = vadd.f32 %v3045, %v3211
    %v3213 = vtanh.pop %v3212
    %v3214 = vsub.f32 1.0, %v3203
    %v3215 = vmul.f32 %v3214, %v3213
    %v3216 = vrot.slane %v2765, 6
    %v3218 = vmul.f32 %v3203, %v3216
    %v3219 = vadd.f32 %v3215, %v3218
    %v3220 = vld [vmem:[#allocation9] sm:$0xff]
    %v3221 = vld [vmem:[#allocation9 + $0x8] sm:$0xff]
    %v3222 = vld [vmem:[#allocation9 + $0x10] sm:$0xff]
    %v3223 = vld [vmem:[#allocation9 + $0x18] sm:$0xff]
    %v3224 = vld [vmem:[#allocation9 + $0x20] sm:$0xff]
    %v3225 = vld [vmem:[#allocation9 + $0x28] sm:$0xff]
    %v3226 = vld [vmem:[#allocation9 + $0x30] sm:$0xff]
    %v3227 = vld [vmem:[#allocation9 + $0x38] sm:$0xff]
    %v3228 = vld [vmem:[#allocation9 + $0x40] sm:$0xff]
    %v3229 = vld [vmem:[#allocation9 + $0x48] sm:$0xff]
    %v3230 = vld [vmem:[#allocation9 + $0x50] sm:$0xff]
    %v3231 = vld [vmem:[#allocation9 + $0x58] sm:$0xff]
    %v3232 = vld [vmem:[#allocation9 + $0x60] sm:$0xff]
    %v3233 = vld [vmem:[#allocation9 + $0x68] sm:$0xff]
    %v3234 = vld [vmem:[#allocation9 + $0x70] sm:$0xff]
    %v3235 = vld [vmem:[#allocation9 + $0x78] sm:$0xff]
    %v3236 = vld [vmem:[#allocation9 + $0x80] sm:$0xff]
    %v3237 = vld [vmem:[#allocation9 + $0x88] sm:$0xff]
    %v3238 = vld [vmem:[#allocation9 + $0x90] sm:$0xff]
    %v3239 = vld [vmem:[#allocation9 + $0x98] sm:$0xff]
    %v3240 = vld [vmem:[#allocation9 + $0xa0] sm:$0xff]
    %v3241 = vld [vmem:[#allocation9 + $0xa8] sm:$0xff]
    %v3242 = vld [vmem:[#allocation9 + $0xb0] sm:$0xff]
    %v3243 = vld [vmem:[#allocation9 + $0xb8] sm:$0xff]
    %v3244 = vld [vmem:[#allocation9 + $0xc0] sm:$0xff]
    %v3245 = vld [vmem:[#allocation9 + $0xc8] sm:$0xff]
    %v3246 = vld [vmem:[#allocation9 + $0xd0] sm:$0xff]
    %v3247 = vld [vmem:[#allocation9 + $0xd8] sm:$0xff]
    %v3248 = vld [vmem:[#allocation9 + $0xe0] sm:$0xff]
    %v3249 = vld [vmem:[#allocation9 + $0xe8] sm:$0xff]
    %v3250 = vld [vmem:[#allocation9 + $0xf0] sm:$0xff]
    %v3251 = vld [vmem:[#allocation9 + $0xf8] sm:$0xff]
    %v3252 = vld [vmem:[#allocation9 + $0x100] sm:$0xff]
    %v3253 = vld [vmem:[#allocation9 + $0x108] sm:$0xff]
    %v3254 = vld [vmem:[#allocation9 + $0x110] sm:$0xff]
    %v3255 = vld [vmem:[#allocation9 + $0x118] sm:$0xff]
    %v3256 = vld [vmem:[#allocation9 + $0x120] sm:$0xff]
    %v3257 = vld [vmem:[#allocation9 + $0x128] sm:$0xff]
    %v3258 = vld [vmem:[#allocation9 + $0x130] sm:$0xff]
    %v3259 = vld [vmem:[#allocation9 + $0x138] sm:$0xff]
    %v3260 = vld [vmem:[#allocation9 + $0x140] sm:$0xff]
    %v3261 = vld [vmem:[#allocation9 + $0x148] sm:$0xff]
    %v3262 = vld [vmem:[#allocation9 + $0x150] sm:$0xff]
    %v3263 = vld [vmem:[#allocation9 + $0x158] sm:$0xff]
    %v3264 = vld [vmem:[#allocation9 + $0x160] sm:$0xff]
    %v3265 = vld [vmem:[#allocation9 + $0x168] sm:$0xff]
    %v3266 = vld [vmem:[#allocation9 + $0x170] sm:$0xff]
    %v3267 = vld [vmem:[#allocation9 + $0x178] sm:$0xff]
    %v3268 = vld [vmem:[%s8] sm:$0x7]
    %v3270 = vperm.slane %v3268, 0
    %v3271 = vperm.slane %v3268, 1
    %v3272 = vperm.slane %v3268, 2
    %3276 = vmatpush.msra.mxu0 %v3265
    %3277 = vmatpush.msra.mxu0 %v3262
    %3278 = vmatpush.msra.mxu0 %v3259
    %3279 = vmatpush.msra.mxu0 %v3256
    %3280 = vmatpush.msra.mxu0 %v3253
    %3281 = vmatpush.msra.mxu0 %v3250
    %3282 = vmatpush.msra.mxu0 %v3247
    %3283 = vmatpush.msra.mxu0 %v3244
    %3284 = vmatpush.msra.mxu0 %v3241
    %3285 = vmatpush.msra.mxu0 %v3238
    %3286 = vmatpush.msra.mxu0 %v3235
    %3287 = vmatpush.msra.mxu0 %v3232
    %3288 = vmatpush.msra.mxu0 %v3229
    %3289 = vmatpush.msra.mxu0 %v3226
    %3290 = vmatpush.msra.mxu0 %v3223
    %3291 = vmatpush.msra.mxu0 %v3220
    %3292 = vmatmul.f32.gmra.mxu0 %v3095
    %v3293 = vpop.f32.mrf.mxu0
    %v3294 = vadd.f32 %v3270, %v3293
    %3295 = vdwg.mxu0
    %3296 = vmatpush.msra.mxu0 %v3266
    %3297 = vmatpush.msra.mxu0 %v3263
    %3298 = vmatpush.msra.mxu0 %v3260
    %3299 = vmatpush.msra.mxu0 %v3257
    %3300 = vmatpush.msra.mxu0 %v3254
    %3301 = vmatpush.msra.mxu0 %v3251
    %3302 = vmatpush.msra.mxu0 %v3248
    %3303 = vmatpush.msra.mxu0 %v3245
    %3304 = vmatpush.msra.mxu0 %v3242
    %3305 = vmatpush.msra.mxu0 %v3239
    %3306 = vmatpush.msra.mxu0 %v3236
    %3307 = vmatpush.msra.mxu0 %v3233
    %3308 = vmatpush.msra.mxu0 %v3230
    %3309 = vmatpush.msra.mxu0 %v3227
    %3310 = vmatpush.msra.mxu0 %v3224
    %3311 = vmatpush.msra.mxu0 %v3221
    %3312 = vmatmul.f32.gmra.mxu0 %v3095
    %v3313 = vpop.f32.mrf.mxu0
    %v3314 = vadd.f32 %v3271, %v3313
    %3315 = vdwg.mxu0
    %3316 = vmatpush.msra.mxu0 %v3267
    %3317 = vmatpush.msra.mxu0 %v3264
    %3318 = vmatpush.msra.mxu0 %v3261
    %3319 = vmatpush.msra.mxu0 %v3258
    %3320 = vmatpush.msra.mxu0 %v3255
    %3321 = vmatpush.msra.mxu0 %v3252
    %3322 = vmatpush.msra.mxu0 %v3249
    %3323 = vmatpush.msra.mxu0 %v3246
    %3324 = vmatpush.msra.mxu0 %v3243
    %3325 = vmatpush.msra.mxu0 %v3240
    %3326 = vmatpush.msra.mxu0 %v3237
    %3327 = vmatpush.msra.mxu0 %v3234
    %3328 = vmatpush.msra.mxu0 %v3231
    %3329 = vmatpush.msra.mxu0 %v3228
    %3330 = vmatpush.msra.mxu0 %v3225
    %3331 = vmatpush.msra.mxu0 %v3222
    %3332 = vmatmul.f32.gmra.mxu0 %v3095
    %v3333 = vpop.f32.mrf.mxu0
    %v3334 = vadd.f32 %v3272, %v3333
    %3335 = vdwg.mxu0
    %v3336 = vld [vmem:[#allocation10] sm:$0xff]
    %v3337 = vld [vmem:[#allocation10 + $0x8] sm:$0xff]
    %v3338 = vld [vmem:[#allocation10 + $0x10] sm:$0xff]
    %v3339 = vld [vmem:[#allocation10 + $0x18] sm:$0xff]
    %v3340 = vld [vmem:[#allocation10 + $0x20] sm:$0xff]
    %v3341 = vld [vmem:[#allocation10 + $0x28] sm:$0xff]
    %v3342 = vld [vmem:[#allocation10 + $0x30] sm:$0xff]
    %v3343 = vld [vmem:[#allocation10 + $0x38] sm:$0xff]
    %v3344 = vld [vmem:[#allocation10 + $0x40] sm:$0xff]
    %v3345 = vld [vmem:[#allocation10 + $0x48] sm:$0xff]
    %v3346 = vld [vmem:[#allocation10 + $0x50] sm:$0xff]
    %v3347 = vld [vmem:[#allocation10 + $0x58] sm:$0xff]
    %v3348 = vld [vmem:[#allocation10 + $0x60] sm:$0xff]
    %v3349 = vld [vmem:[#allocation10 + $0x68] sm:$0xff]
    %v3350 = vld [vmem:[#allocation10 + $0x70] sm:$0xff]
    %v3351 = vld [vmem:[#allocation10 + $0x78] sm:$0xff]
    %v3352 = vld [vmem:[#allocation10 + $0x80] sm:$0xff]
    %v3353 = vld [vmem:[#allocation10 + $0x88] sm:$0xff]
    %v3354 = vld [vmem:[#allocation10 + $0x90] sm:$0xff]
    %v3355 = vld [vmem:[#allocation10 + $0x98] sm:$0xff]
    %v3356 = vld [vmem:[#allocation10 + $0xa0] sm:$0xff]
    %v3357 = vld [vmem:[#allocation10 + $0xa8] sm:$0xff]
    %v3358 = vld [vmem:[#allocation10 + $0xb0] sm:$0xff]
    %v3359 = vld [vmem:[#allocation10 + $0xb8] sm:$0xff]
    %v3360 = vld [vmem:[#allocation10 + $0xc0] sm:$0xff]
    %v3361 = vld [vmem:[#allocation10 + $0xc8] sm:$0xff]
    %v3362 = vld [vmem:[#allocation10 + $0xd0] sm:$0xff]
    %v3363 = vld [vmem:[#allocation10 + $0xd8] sm:$0xff]
    %v3364 = vld [vmem:[#allocation10 + $0xe0] sm:$0xff]
    %v3365 = vld [vmem:[#allocation10 + $0xe8] sm:$0xff]
    %v3366 = vld [vmem:[#allocation10 + $0xf0] sm:$0xff]
    %v3367 = vld [vmem:[#allocation10 + $0xf8] sm:$0xff]
    %v3368 = vld [vmem:[#allocation10 + $0x100] sm:$0xff]
    %v3369 = vld [vmem:[#allocation10 + $0x108] sm:$0xff]
    %v3370 = vld [vmem:[#allocation10 + $0x110] sm:$0xff]
    %v3371 = vld [vmem:[#allocation10 + $0x118] sm:$0xff]
    %v3372 = vld [vmem:[#allocation10 + $0x120] sm:$0xff]
    %v3373 = vld [vmem:[#allocation10 + $0x128] sm:$0xff]
    %v3374 = vld [vmem:[#allocation10 + $0x130] sm:$0xff]
    %v3375 = vld [vmem:[#allocation10 + $0x138] sm:$0xff]
    %v3376 = vld [vmem:[#allocation10 + $0x140] sm:$0xff]
    %v3377 = vld [vmem:[#allocation10 + $0x148] sm:$0xff]
    %v3378 = vld [vmem:[#allocation10 + $0x150] sm:$0xff]
    %v3379 = vld [vmem:[#allocation10 + $0x158] sm:$0xff]
    %v3380 = vld [vmem:[#allocation10 + $0x160] sm:$0xff]
    %v3381 = vld [vmem:[#allocation10 + $0x168] sm:$0xff]
    %v3382 = vld [vmem:[#allocation10 + $0x170] sm:$0xff]
    %v3383 = vld [vmem:[#allocation10 + $0x178] sm:$0xff]
    %3384 = vmatpush.msra.mxu0 %v3381
    %3385 = vmatpush.msra.mxu0 %v3378
    %3386 = vmatpush.msra.mxu0 %v3375
    %3387 = vmatpush.msra.mxu0 %v3372
    %3388 = vmatpush.msra.mxu0 %v3369
    %3389 = vmatpush.msra.mxu0 %v3366
    %3390 = vmatpush.msra.mxu0 %v3363
    %3391 = vmatpush.msra.mxu0 %v3360
    %3392 = vmatpush.msra.mxu0 %v3357
    %3393 = vmatpush.msra.mxu0 %v3354
    %3394 = vmatpush.msra.mxu0 %v3351
    %3395 = vmatpush.msra.mxu0 %v3348
    %3396 = vmatpush.msra.mxu0 %v3345
    %3397 = vmatpush.msra.mxu0 %v3342
    %3398 = vmatpush.msra.mxu0 %v3339
    %3399 = vmatpush.msra.mxu0 %v3336
    %3400 = vmatmul.f32.gmra.mxu0 %v3041
    %v3401 = vpop.f32.mrf.mxu0
    %v3402 = vadd.f32 0.0, %v3401
    %3403 = vdwg.mxu0
    %3404 = vmatpush.msra.mxu0 %v3382
    %3405 = vmatpush.msra.mxu0 %v3379
    %3406 = vmatpush.msra.mxu0 %v3376
    %3407 = vmatpush.msra.mxu0 %v3373
    %3408 = vmatpush.msra.mxu0 %v3370
    %3409 = vmatpush.msra.mxu0 %v3367
    %3410 = vmatpush.msra.mxu0 %v3364
    %3411 = vmatpush.msra.mxu0 %v3361
    %3412 = vmatpush.msra.mxu0 %v3358
    %3413 = vmatpush.msra.mxu0 %v3355
    %3414 = vmatpush.msra.mxu0 %v3352
    %3415 = vmatpush.msra.mxu0 %v3349
    %3416 = vmatpush.msra.mxu0 %v3346
    %3417 = vmatpush.msra.mxu0 %v3343
    %3418 = vmatpush.msra.mxu0 %v3340
    %3419 = vmatpush.msra.mxu0 %v3337
    %3420 = vmatmul.f32.gmra.mxu0 %v3041
    %v3421 = vpop.f32.mrf.mxu0
    %v3422 = vadd.f32 0.0, %v3421
    %3423 = vdwg.mxu0
    %3424 = vmatpush.msra.mxu0 %v3383
    %3425 = vmatpush.msra.mxu0 %v3380
    %3426 = vmatpush.msra.mxu0 %v3377
    %3427 = vmatpush.msra.mxu0 %v3374
    %3428 = vmatpush.msra.mxu0 %v3371
    %3429 = vmatpush.msra.mxu0 %v3368
    %3430 = vmatpush.msra.mxu0 %v3365
    %3431 = vmatpush.msra.mxu0 %v3362
    %3432 = vmatpush.msra.mxu0 %v3359
    %3433 = vmatpush.msra.mxu0 %v3356
    %3434 = vmatpush.msra.mxu0 %v3353
    %3435 = vmatpush.msra.mxu0 %v3350
    %3436 = vmatpush.msra.mxu0 %v3347
    %3437 = vmatpush.msra.mxu0 %v3344
    %3438 = vmatpush.msra.mxu0 %v3341
    %3439 = vmatpush.msra.mxu0 %v3338
    %3440 = vmatmul.f32.gmra.mxu0 %v3041
    %v3441 = vpop.f32.mrf.mxu0
    %v3442 = vadd.f32 0.0, %v3441
    %3443 = vdwg.mxu0
    %v3444 = vld [vmem:[%s9] sm:$0x1]
    %v3445 = vadd.f32 %v3294, %v3402
    %v3446 = vadd.f32 %v3314, %v3422
    %v3447 = vxor.u32 %v3445, 2147483648
    %v3448 = vxor.u32 %v3446, 2147483648
    %v3449 = vmul.f32 %v3447, 1.442695
    %v3450 = vpow.pop %v3449
    %v3451 = vmul.f32 %v3448, 1.442695
    %v3452 = vpow.pop %v3451
    %v3453 = vadd.f32 %v3450, 1.0
    %v3454 = vadd.f32 %v3452, 1.0
    %v3455 = vrcp.pop %v3453
    %v3456 = vmul.f32 %v3453, %v3455
    %v3457 = vsub.f32 1.0, %v3456
    %v3458 = vmul.f32 %v3455, %v3457
    %v3459 = vadd.f32 %v3455, %v3458
    %vm3460 = vweird.f32 %v3453
    %vm3461 = vweird.f32 %v3455
    %vm3462 = vmor %vm3460, %vm3461
    %v3463 = vsel %vm3462, %v3455, %v3459
    %v3464 = vand.u32 2147483647, %v3453
    %vm3465 = vcmp.eq.f32.partialorder %v3464, 8.507059e+37
    %v3466 = vand.u32 %v3453, 2147483648
    %v3467 = vor.u32 1.1754944e-38, %v3466
    %v3468 = vsel %vm3465, %v3467, %v3463
    %v3469 = vmul.f32 1.0, %v3468
    %v3470 = vrcp.pop %v3454
    %v3471 = vmul.f32 %v3454, %v3470
    %v3472 = vsub.f32 1.0, %v3471
    %v3473 = vmul.f32 %v3470, %v3472
    %v3474 = vadd.f32 %v3470, %v3473
    %vm3475 = vweird.f32 %v3454
    %vm3476 = vweird.f32 %v3470
    %vm3477 = vmor %vm3475, %vm3476
    %v3478 = vsel %vm3477, %v3470, %v3474
    %v3479 = vand.u32 2147483647, %v3454
    %vm3480 = vcmp.eq.f32.partialorder %v3479, 8.507059e+37
    %v3481 = vand.u32 %v3454, 2147483648
    %v3482 = vor.u32 1.1754944e-38, %v3481
    %v3483 = vsel %vm3480, %v3482, %v3478
    %v3484 = vmul.f32 1.0, %v3483
    %v3486 = vperm.slane %v3444, 0
    %v3488 = vadd.f32 %v3442, %v3486
    %v3489 = vmul.f32 %v3469, %v3488
    %v3490 = vadd.f32 %v3334, %v3489
    %v3491 = vtanh.pop %v3490
    %v3492 = vsub.f32 1.0, %v3484
    %v3493 = vmul.f32 %v3492, %v3491
    %v3494 = vmul.f32 %v3484, %v3041
    %v3495 = vadd.f32 %v3493, %v3494
    %3496 = vst [vmem:[#allocation3 + $0xc] sm:$0x3] %v3495
    %v3497 = vld [vmem:[#allocation9] sm:$0xff]
    %v3498 = vld [vmem:[#allocation9 + $0x8] sm:$0xff]
    %v3499 = vld [vmem:[#allocation9 + $0x10] sm:$0xff]
    %v3500 = vld [vmem:[#allocation9 + $0x18] sm:$0xff]
    %v3501 = vld [vmem:[#allocation9 + $0x20] sm:$0xff]
    %v3502 = vld [vmem:[#allocation9 + $0x28] sm:$0xff]
    %v3503 = vld [vmem:[#allocation9 + $0x30] sm:$0xff]
    %v3504 = vld [vmem:[#allocation9 + $0x38] sm:$0xff]
    %v3505 = vld [vmem:[#allocation9 + $0x40] sm:$0xff]
    %v3506 = vld [vmem:[#allocation9 + $0x48] sm:$0xff]
    %v3507 = vld [vmem:[#allocation9 + $0x50] sm:$0xff]
    %v3508 = vld [vmem:[#allocation9 + $0x58] sm:$0xff]
    %v3509 = vld [vmem:[#allocation9 + $0x60] sm:$0xff]
    %v3510 = vld [vmem:[#allocation9 + $0x68] sm:$0xff]
    %v3511 = vld [vmem:[#allocation9 + $0x70] sm:$0xff]
    %v3512 = vld [vmem:[#allocation9 + $0x78] sm:$0xff]
    %v3513 = vld [vmem:[#allocation9 + $0x80] sm:$0xff]
    %v3514 = vld [vmem:[#allocation9 + $0x88] sm:$0xff]
    %v3515 = vld [vmem:[#allocation9 + $0x90] sm:$0xff]
    %v3516 = vld [vmem:[#allocation9 + $0x98] sm:$0xff]
    %v3517 = vld [vmem:[#allocation9 + $0xa0] sm:$0xff]
    %v3518 = vld [vmem:[#allocation9 + $0xa8] sm:$0xff]
    %v3519 = vld [vmem:[#allocation9 + $0xb0] sm:$0xff]
    %v3520 = vld [vmem:[#allocation9 + $0xb8] sm:$0xff]
    %v3521 = vld [vmem:[#allocation9 + $0xc0] sm:$0xff]
    %v3522 = vld [vmem:[#allocation9 + $0xc8] sm:$0xff]
    %v3523 = vld [vmem:[#allocation9 + $0xd0] sm:$0xff]
    %v3524 = vld [vmem:[#allocation9 + $0xd8] sm:$0xff]
    %v3525 = vld [vmem:[#allocation9 + $0xe0] sm:$0xff]
    %v3526 = vld [vmem:[#allocation9 + $0xe8] sm:$0xff]
    %v3527 = vld [vmem:[#allocation9 + $0xf0] sm:$0xff]
    %v3528 = vld [vmem:[#allocation9 + $0xf8] sm:$0xff]
    %v3529 = vld [vmem:[#allocation9 + $0x100] sm:$0xff]
    %v3530 = vld [vmem:[#allocation9 + $0x108] sm:$0xff]
    %v3531 = vld [vmem:[#allocation9 + $0x110] sm:$0xff]
    %v3532 = vld [vmem:[#allocation9 + $0x118] sm:$0xff]
    %v3533 = vld [vmem:[#allocation9 + $0x120] sm:$0xff]
    %v3534 = vld [vmem:[#allocation9 + $0x128] sm:$0xff]
    %v3535 = vld [vmem:[#allocation9 + $0x130] sm:$0xff]
    %v3536 = vld [vmem:[#allocation9 + $0x138] sm:$0xff]
    %v3537 = vld [vmem:[#allocation9 + $0x140] sm:$0xff]
    %v3538 = vld [vmem:[#allocation9 + $0x148] sm:$0xff]
    %v3539 = vld [vmem:[#allocation9 + $0x150] sm:$0xff]
    %v3540 = vld [vmem:[#allocation9 + $0x158] sm:$0xff]
    %v3541 = vld [vmem:[#allocation9 + $0x160] sm:$0xff]
    %v3542 = vld [vmem:[#allocation9 + $0x168] sm:$0xff]
    %v3543 = vld [vmem:[#allocation9 + $0x170] sm:$0xff]
    %v3544 = vld [vmem:[#allocation9 + $0x178] sm:$0xff]
    %v3545 = vld [vmem:[%s8] sm:$0x7]
    %v3547 = vperm.slane %v3545, 0
    %v3548 = vperm.slane %v3545, 1
    %v3549 = vperm.slane %v3545, 2
    %v3554 = vrot.slane %v3219, 6
    %3556 = vmatpush.msra.mxu0 %v3542
    %3557 = vmatpush.msra.mxu0 %v3539
    %3558 = vmatpush.msra.mxu0 %v3536
    %3559 = vmatpush.msra.mxu0 %v3533
    %3560 = vmatpush.msra.mxu0 %v3530
    %3561 = vmatpush.msra.mxu0 %v3527
    %3562 = vmatpush.msra.mxu0 %v3524
    %3563 = vmatpush.msra.mxu0 %v3521
    %3564 = vmatpush.msra.mxu0 %v3518
    %3565 = vmatpush.msra.mxu0 %v3515
    %3566 = vmatpush.msra.mxu0 %v3512
    %3567 = vmatpush.msra.mxu0 %v3509
    %3568 = vmatpush.msra.mxu0 %v3506
    %3569 = vmatpush.msra.mxu0 %v3503
    %3570 = vmatpush.msra.mxu0 %v3500
    %3571 = vmatpush.msra.mxu0 %v3497
    %3572 = vmatmul.f32.gmra.mxu0 %v3554
    %v3573 = vpop.f32.mrf.mxu0
    %v3574 = vadd.f32 %v3547, %v3573
    %3575 = vdwg.mxu0
    %3576 = vmatpush.msra.mxu0 %v3543
    %3577 = vmatpush.msra.mxu0 %v3540
    %3578 = vmatpush.msra.mxu0 %v3537
    %3579 = vmatpush.msra.mxu0 %v3534
    %3580 = vmatpush.msra.mxu0 %v3531
    %3581 = vmatpush.msra.mxu0 %v3528
    %3582 = vmatpush.msra.mxu0 %v3525
    %3583 = vmatpush.msra.mxu0 %v3522
    %3584 = vmatpush.msra.mxu0 %v3519
    %3585 = vmatpush.msra.mxu0 %v3516
    %3586 = vmatpush.msra.mxu0 %v3513
    %3587 = vmatpush.msra.mxu0 %v3510
    %3588 = vmatpush.msra.mxu0 %v3507
    %3589 = vmatpush.msra.mxu0 %v3504
    %3590 = vmatpush.msra.mxu0 %v3501
    %3591 = vmatpush.msra.mxu0 %v3498
    %3592 = vmatmul.f32.gmra.mxu0 %v3554
    %v3593 = vpop.f32.mrf.mxu0
    %v3594 = vadd.f32 %v3548, %v3593
    %3595 = vdwg.mxu0
    %3596 = vmatpush.msra.mxu0 %v3544
    %3597 = vmatpush.msra.mxu0 %v3541
    %3598 = vmatpush.msra.mxu0 %v3538
    %3599 = vmatpush.msra.mxu0 %v3535
    %3600 = vmatpush.msra.mxu0 %v3532
    %3601 = vmatpush.msra.mxu0 %v3529
    %3602 = vmatpush.msra.mxu0 %v3526
    %3603 = vmatpush.msra.mxu0 %v3523
    %3604 = vmatpush.msra.mxu0 %v3520
    %3605 = vmatpush.msra.mxu0 %v3517
    %3606 = vmatpush.msra.mxu0 %v3514
    %3607 = vmatpush.msra.mxu0 %v3511
    %3608 = vmatpush.msra.mxu0 %v3508
    %3609 = vmatpush.msra.mxu0 %v3505
    %3610 = vmatpush.msra.mxu0 %v3502
    %3611 = vmatpush.msra.mxu0 %v3499
    %3612 = vmatmul.f32.gmra.mxu0 %v3554
    %v3613 = vpop.f32.mrf.mxu0
    %v3614 = vadd.f32 %v3549, %v3613
    %3615 = vdwg.mxu0
    %v3616 = vld [vmem:[#allocation10] sm:$0xff]
    %v3617 = vld [vmem:[#allocation10 + $0x8] sm:$0xff]
    %v3618 = vld [vmem:[#allocation10 + $0x10] sm:$0xff]
    %v3619 = vld [vmem:[#allocation10 + $0x18] sm:$0xff]
    %v3620 = vld [vmem:[#allocation10 + $0x20] sm:$0xff]
    %v3621 = vld [vmem:[#allocation10 + $0x28] sm:$0xff]
    %v3622 = vld [vmem:[#allocation10 + $0x30] sm:$0xff]
    %v3623 = vld [vmem:[#allocation10 + $0x38] sm:$0xff]
    %v3624 = vld [vmem:[#allocation10 + $0x40] sm:$0xff]
    %v3625 = vld [vmem:[#allocation10 + $0x48] sm:$0xff]
    %v3626 = vld [vmem:[#allocation10 + $0x50] sm:$0xff]
    %v3627 = vld [vmem:[#allocation10 + $0x58] sm:$0xff]
    %v3628 = vld [vmem:[#allocation10 + $0x60] sm:$0xff]
    %v3629 = vld [vmem:[#allocation10 + $0x68] sm:$0xff]
    %v3630 = vld [vmem:[#allocation10 + $0x70] sm:$0xff]
    %v3631 = vld [vmem:[#allocation10 + $0x78] sm:$0xff]
    %v3632 = vld [vmem:[#allocation10 + $0x80] sm:$0xff]
    %v3633 = vld [vmem:[#allocation10 + $0x88] sm:$0xff]
    %v3634 = vld [vmem:[#allocation10 + $0x90] sm:$0xff]
    %v3635 = vld [vmem:[#allocation10 + $0x98] sm:$0xff]
    %v3636 = vld [vmem:[#allocation10 + $0xa0] sm:$0xff]
    %v3637 = vld [vmem:[#allocation10 + $0xa8] sm:$0xff]
    %v3638 = vld [vmem:[#allocation10 + $0xb0] sm:$0xff]
    %v3639 = vld [vmem:[#allocation10 + $0xb8] sm:$0xff]
    %v3640 = vld [vmem:[#allocation10 + $0xc0] sm:$0xff]
    %v3641 = vld [vmem:[#allocation10 + $0xc8] sm:$0xff]
    %v3642 = vld [vmem:[#allocation10 + $0xd0] sm:$0xff]
    %v3643 = vld [vmem:[#allocation10 + $0xd8] sm:$0xff]
    %v3644 = vld [vmem:[#allocation10 + $0xe0] sm:$0xff]
    %v3645 = vld [vmem:[#allocation10 + $0xe8] sm:$0xff]
    %v3646 = vld [vmem:[#allocation10 + $0xf0] sm:$0xff]
    %v3647 = vld [vmem:[#allocation10 + $0xf8] sm:$0xff]
    %v3648 = vld [vmem:[#allocation10 + $0x100] sm:$0xff]
    %v3649 = vld [vmem:[#allocation10 + $0x108] sm:$0xff]
    %v3650 = vld [vmem:[#allocation10 + $0x110] sm:$0xff]
    %v3651 = vld [vmem:[#allocation10 + $0x118] sm:$0xff]
    %v3652 = vld [vmem:[#allocation10 + $0x120] sm:$0xff]
    %v3653 = vld [vmem:[#allocation10 + $0x128] sm:$0xff]
    %v3654 = vld [vmem:[#allocation10 + $0x130] sm:$0xff]
    %v3655 = vld [vmem:[#allocation10 + $0x138] sm:$0xff]
    %v3656 = vld [vmem:[#allocation10 + $0x140] sm:$0xff]
    %v3657 = vld [vmem:[#allocation10 + $0x148] sm:$0xff]
    %v3658 = vld [vmem:[#allocation10 + $0x150] sm:$0xff]
    %v3659 = vld [vmem:[#allocation10 + $0x158] sm:$0xff]
    %v3660 = vld [vmem:[#allocation10 + $0x160] sm:$0xff]
    %v3661 = vld [vmem:[#allocation10 + $0x168] sm:$0xff]
    %v3662 = vld [vmem:[#allocation10 + $0x170] sm:$0xff]
    %v3663 = vld [vmem:[#allocation10 + $0x178] sm:$0xff]
    %3664 = vmatpush.msra.mxu0 %v3661
    %3665 = vmatpush.msra.mxu0 %v3658
    %3666 = vmatpush.msra.mxu0 %v3655
    %3667 = vmatpush.msra.mxu0 %v3652
    %3668 = vmatpush.msra.mxu0 %v3649
    %3669 = vmatpush.msra.mxu0 %v3646
    %3670 = vmatpush.msra.mxu0 %v3643
    %3671 = vmatpush.msra.mxu0 %v3640
    %3672 = vmatpush.msra.mxu0 %v3637
    %3673 = vmatpush.msra.mxu0 %v3634
    %3674 = vmatpush.msra.mxu0 %v3631
    %3675 = vmatpush.msra.mxu0 %v3628
    %3676 = vmatpush.msra.mxu0 %v3625
    %3677 = vmatpush.msra.mxu0 %v3622
    %3678 = vmatpush.msra.mxu0 %v3619
    %3679 = vmatpush.msra.mxu0 %v3616
    %3680 = vmatmul.f32.gmra.mxu0 %v3495
    %v3681 = vpop.f32.mrf.mxu0
    %v3682 = vadd.f32 0.0, %v3681
    %3683 = vdwg.mxu0
    %3684 = vmatpush.msra.mxu0 %v3662
    %3685 = vmatpush.msra.mxu0 %v3659
    %3686 = vmatpush.msra.mxu0 %v3656
    %3687 = vmatpush.msra.mxu0 %v3653
    %3688 = vmatpush.msra.mxu0 %v3650
    %3689 = vmatpush.msra.mxu0 %v3647
    %3690 = vmatpush.msra.mxu0 %v3644
    %3691 = vmatpush.msra.mxu0 %v3641
    %3692 = vmatpush.msra.mxu0 %v3638
    %3693 = vmatpush.msra.mxu0 %v3635
    %3694 = vmatpush.msra.mxu0 %v3632
    %3695 = vmatpush.msra.mxu0 %v3629
    %3696 = vmatpush.msra.mxu0 %v3626
    %3697 = vmatpush.msra.mxu0 %v3623
    %3698 = vmatpush.msra.mxu0 %v3620
    %3699 = vmatpush.msra.mxu0 %v3617
    %3700 = vmatmul.f32.gmra.mxu0 %v3495
    %v3701 = vpop.f32.mrf.mxu0
    %v3702 = vadd.f32 0.0, %v3701
    %3703 = vdwg.mxu0
    %3704 = vmatpush.msra.mxu0 %v3663
    %3705 = vmatpush.msra.mxu0 %v3660
    %3706 = vmatpush.msra.mxu0 %v3657
    %3707 = vmatpush.msra.mxu0 %v3654
    %3708 = vmatpush.msra.mxu0 %v3651
    %3709 = vmatpush.msra.mxu0 %v3648
    %3710 = vmatpush.msra.mxu0 %v3645
    %3711 = vmatpush.msra.mxu0 %v3642
    %3712 = vmatpush.msra.mxu0 %v3639
    %3713 = vmatpush.msra.mxu0 %v3636
    %3714 = vmatpush.msra.mxu0 %v3633
    %3715 = vmatpush.msra.mxu0 %v3630
    %3716 = vmatpush.msra.mxu0 %v3627
    %3717 = vmatpush.msra.mxu0 %v3624
    %3718 = vmatpush.msra.mxu0 %v3621
    %3719 = vmatpush.msra.mxu0 %v3618
    %3720 = vmatmul.f32.gmra.mxu0 %v3495
    %v3721 = vpop.f32.mrf.mxu0
    %v3722 = vadd.f32 0.0, %v3721
    %3723 = vdwg.mxu0
    %v3724 = vld [vmem:[%s9] sm:$0x1]
    %v3725 = vadd.f32 %v3574, %v3682
    %v3726 = vadd.f32 %v3594, %v3702
    %v3727 = vxor.u32 %v3725, 2147483648
    %v3728 = vxor.u32 %v3726, 2147483648
    %v3729 = vmul.f32 %v3727, 1.442695
    %v3730 = vpow.pop %v3729
    %v3731 = vmul.f32 %v3728, 1.442695
    %v3732 = vpow.pop %v3731
    %v3733 = vadd.f32 %v3730, 1.0
    %v3734 = vadd.f32 %v3732, 1.0
    %v3735 = vrcp.pop %v3733
    %v3736 = vmul.f32 %v3733, %v3735
    %v3737 = vsub.f32 1.0, %v3736
    %v3738 = vmul.f32 %v3735, %v3737
    %v3739 = vadd.f32 %v3735, %v3738
    %vm3740 = vweird.f32 %v3733
    %vm3741 = vweird.f32 %v3735
    %vm3742 = vmor %vm3740, %vm3741
    %v3743 = vsel %vm3742, %v3735, %v3739
    %v3744 = vand.u32 2147483647, %v3733
    %vm3745 = vcmp.eq.f32.partialorder %v3744, 8.507059e+37
    %v3746 = vand.u32 %v3733, 2147483648
    %v3747 = vor.u32 1.1754944e-38, %v3746
    %v3748 = vsel %vm3745, %v3747, %v3743
    %v3749 = vmul.f32 1.0, %v3748
    %v3750 = vrcp.pop %v3734
    %v3751 = vmul.f32 %v3734, %v3750
    %v3752 = vsub.f32 1.0, %v3751
    %v3753 = vmul.f32 %v3750, %v3752
    %v3754 = vadd.f32 %v3750, %v3753
    %vm3755 = vweird.f32 %v3734
    %vm3756 = vweird.f32 %v3750
    %vm3757 = vmor %vm3755, %vm3756
    %v3758 = vsel %vm3757, %v3750, %v3754
    %v3759 = vand.u32 2147483647, %v3734
    %vm3760 = vcmp.eq.f32.partialorder %v3759, 8.507059e+37
    %v3761 = vand.u32 %v3734, 2147483648
    %v3762 = vor.u32 1.1754944e-38, %v3761
    %v3763 = vsel %vm3760, %v3762, %v3758
    %v3764 = vmul.f32 1.0, %v3763
    %v3766 = vperm.slane %v3724, 0
    %v3768 = vadd.f32 %v3722, %v3766
    %v3769 = vmul.f32 %v3749, %v3768
    %v3770 = vadd.f32 %v3614, %v3769
    %v3771 = vtanh.pop %v3770
    %v3772 = vsub.f32 1.0, %v3764
    %v3773 = vmul.f32 %v3772, %v3771
    %v3774 = vmul.f32 %v3764, %v3495
    %v3775 = vadd.f32 %v3773, %v3774
    %3776 = vst [vmem:[#allocation3 + $0xe] sm:$0x3] %v3775
    %3777 = vst [vmem:[#allocation13 - $0x6] sm:$0xc0] %v3219
    %s3778 = scalar_lea.vmem [#allocation13], 2
    %3779 = vst [vmem:[%s3778] sm:$0x3] %v3775
    %v3780 = vld [vmem:[#allocation3] sm:$0xff]
    %v3781 = vld [vmem:[#allocation3 + $0x8] sm:$0xff]
    %v3782 = vld [vmem:[#allocation12] sm:$0xff]
    %v3783 = vld [vmem:[#allocation12 + $0x8] sm:$0xff]
    %v3784 = vld [vmem:[#allocation12 + $0x10] sm:$0xff]
    %v3785 = vld [vmem:[#allocation12 + $0x18] sm:$0xff]
    %v3786 = vld [vmem:[#allocation12 + $0x20] sm:$0xff]
    %v3787 = vld [vmem:[#allocation12 + $0x28] sm:$0xff]
    %v3788 = vld [vmem:[#allocation12 + $0x30] sm:$0xff]
    %v3789 = vld [vmem:[#allocation12 + $0x38] sm:$0xff]
    %v3790 = vld [vmem:[#allocation12 + $0x40] sm:$0xff]
    %v3791 = vld [vmem:[#allocation12 + $0x48] sm:$0xff]
    %v3792 = vld [vmem:[#allocation12 + $0x50] sm:$0xff]
    %v3793 = vld [vmem:[#allocation12 + $0x58] sm:$0xff]
    %v3794 = vld [vmem:[#allocation12 + $0x60] sm:$0xff]
    %v3795 = vld [vmem:[#allocation12 + $0x68] sm:$0xff]
    %v3796 = vld [vmem:[#allocation12 + $0x70] sm:$0xff]
    %v3797 = vld [vmem:[#allocation12 + $0x78] sm:$0xff]
    %v3798 = vld [vmem:[%s11] sm:$0x1]
    %v3800 = vperm.slane %v3798, 0
    %3802 = vmatpush.msra.mxu0 %v3797
    %3803 = vmatpush.msra.mxu0 %v3796
    %3804 = vmatpush.msra.mxu0 %v3795
    %3805 = vmatpush.msra.mxu0 %v3794
    %3806 = vmatpush.msra.mxu0 %v3793
    %3807 = vmatpush.msra.mxu0 %v3792
    %3808 = vmatpush.msra.mxu0 %v3791
    %3809 = vmatpush.msra.mxu0 %v3790
    %3810 = vmatpush.msra.mxu0 %v3789
    %3811 = vmatpush.msra.mxu0 %v3788
    %3812 = vmatpush.msra.mxu0 %v3787
    %3813 = vmatpush.msra.mxu0 %v3786
    %3814 = vmatpush.msra.mxu0 %v3785
    %3815 = vmatpush.msra.mxu0 %v3784
    %3816 = vmatpush.msra.mxu0 %v3783
    %3817 = vmatpush.msra.mxu0 %v3782
    %3818 = vmatmul.f32.gmra.mxu0 %v3780
    %v3819 = vpop.f32.mrf.mxu0
    %v3820 = vadd.f32 %v3800, %v3819
    %3821 = vmatmul.f32.gmra.mxu0 %v3781
    %v3822 = vpop.f32.mrf.mxu0
    %v3823 = vadd.f32 %v3800, %v3822
    %3824 = vdwg.mxu0
    %3825 = vst [vmem:[%s12] sm:$0xff] %v3820
    %3826 = vst [vmem:[%s12 + $0x8] sm:$0xff] %v3823
    // Predicated region
    $region70: #{decoder_gru_forward.1} parent=1 // pred_check
      _
    $region71: #{decoder_gru_forward.1} parent=1 // pred_check_branch
      %3828 = sbr.rel (0) target = $region73
    $region72: #{decoder_gru_forward.1} parent=1 // pred_region
      _
    $region73: #{decoder_gru_forward.1} parent=1 // pred_fallthru
      _
    // Predicated region
    $region74: #{decoder_gru_forward.1} parent=1 // pred_check
      _
    $region75: #{decoder_gru_forward.1} parent=1 // pred_check_branch
      %3830 = sbr.rel (0) target = $region77
    $region76: #{decoder_gru_forward.1} parent=1 // pred_region
      %3832 = vsyncadd [#allocation6], 0
      %s3833 = sshll.u32 [#allocation13], 4
      %s3834 = int_to_ptr.vmem [resolvable:$true] %s3833
      %s3835 = sshll.u32 %s13, 4
      %s3836 = int_to_ptr.hbm [resolvable:$true] %s3835
      %3841 = dma.vmem_to_hbm [thread:$0]  %s3834, 64, %s3836, [#allocation6], 32, 32, 2
    $region77: #{decoder_gru_forward.1} parent=1 // pred_fallthru
      _
    // Predicated region
    $region78: #{decoder_gru_forward.1} parent=1 // pred_check
      _
    $region79: #{decoder_gru_forward.1} parent=1 // pred_check_branch
      %3843 = sbr.rel (0) target = $region81
    $region80: #{decoder_gru_forward.1} parent=1 // pred_region
      _
    $region81: #{decoder_gru_forward.1} parent=1 // pred_fallthru
      _
    // Predicated region
    $region82: #{decoder_gru_forward.1} parent=1 // pred_check
      _
    $region83: #{decoder_gru_forward.1} parent=1 // pred_check_branch
      %3845 = sbr.rel (0) target = $region85
    $region84: #{decoder_gru_forward.1} parent=1 // pred_region
      %3847 = dma.done [#allocation6], 64
    $region85: #{decoder_gru_forward.1} parent=1 // pred_fallthru
      _
    %3848 = vsyncpa [#allocation5], 1
    %3849 = vsyncpa [#allocation8], 1
    %3850 = vsyncpa [#allocation11], 1
    %3851 = vsyncpa [#allocation6], 1

</llo_original>
